<compile_context>
chip_gen: v7x
topology: tpu7x:2x2x1
jax: 0.10.0
libtpu: 0.0.40
codegen_flags: <defaults>
</compile_context>

<pallas_src>
import functools

import numpy as np
import jax
import jax.numpy as jnp
from jax.experimental import pallas as pl
from jax.experimental.pallas import tpu as pltpu

BN_EPS = 1e-5


# ------------------------------- fused kernel --------------------------------

def _fgrm_kernel(depup_ref, curx_ref, premap_ref,
                 wup_ref, wc2_ref, wd1_ref, wd2_ref, wd3_ref, wom_ref,
                 maskd_ref, mask3_ref, mask7_ref, pmask_ref,
                 refine_ref, omap_ref,
                 *, C1, H, W, L):
    """Whole FGRM forward for the whole batch.  Activations are lane-dense
    (C, L=B*H*W) f32 slabs; every conv is one bf16 im2col MXU matmul."""

    def shift_flat(x, dy, dx):
        # result[:, idx] = x[:, idx + dy*W + dx]   (circular; border handled
        # by the 0/1 tap masks, and |dy*W+dx| < H*W keeps valid taps inside
        # the same sample of the flat (b,h,w) axis).
        s = (-(dy * W + dx)) % L
        return pltpu.roll(x, s, 1) if s else x

    def conv(x, w_ref, K, mask_ref, relu, dilation=1):
        """'Same' KxK (optionally dilated) conv over the whole batch as one
        matmul.  x: (Cin, L) f32; w_ref: (Cout, Cin*K*K+1) bf16 with the bias
        folded as the last column; mask_ref: (K*K, L) f32 border masks."""
        P = K // 2
        masks = mask_ref[...]
        taps = []
        for ky in range(K):
            for kx in range(K):
                t = ky * K + kx
                dy, dx = (ky - P) * dilation, (kx - P) * dilation
                taps.append(shift_flat(x, dy, dx) * masks[t:t + 1, :])
        taps.append(jnp.ones((1, L), jnp.float32))            # bias row
        col = jnp.concatenate(taps, axis=0).astype(jnp.bfloat16)
        out = jnp.dot(w_ref[...], col, preferred_element_type=jnp.float32)
        return jnp.maximum(out, 0.0) if relu else out

    # ---- up = ReLU(BN(Conv3x3(dep_x))); PixelShuffle(2) ---------------------
    # Evaluated directly at full resolution: a dilation-2 conv on the
    # nearest-x2 copy of dep_x puts, in row block p*C1:(p+1)*C1, the value
    # that pixel-shuffle phase p = 2r+s would place at each full-res pixel;
    # the disjoint 0/1 phase masks then keep the one that belongs there.
    # (Eval-mode BN scale is folded into wup; ReLU commutes with the
    # disjoint selection.)
    up = conv(depup_ref[...], wup_ref, 3, maskd_ref, relu=False, dilation=2)
    pm = pmask_ref[...]                                        # (4, L)
    dep_ps = pm[0:1, :] * up[0:C1, :]
    for p in range(1, 4):
        dep_ps = dep_ps + pm[p:p + 1, :] * up[p * C1:(p + 1) * C1, :]
    dep_ps = jnp.maximum(dep_ps, 0.0)                          # (C1, L)

    # ---- input_map = Sigmoid(bilinear x2(in_map)); focus_background ---------
    m = jax.nn.sigmoid(premap_ref[...])                        # (1, L)
    m3 = mask3_ref[...]
    dil = m                                                    # center tap
    for ky in range(3):
        for kx in range(3):
            if ky == 1 and kx == 1:
                continue
            t = ky * 3 + kx
            dil = jnp.maximum(dil, shift_flat(m, ky - 1, kx - 1) * m3[t:t + 1, :])
    # UpsamplingBilinear2d(scale_factor=1) is the identity; sigmoid > 0 so the
    # masked-out zeros never win the max (== cv2.dilate, whose border does not
    # contribute).
    b_feat = curx_ref[...] * (dil - m)                         # (C1, L)

    # ---- fn = conv2(b_feature); xin = dep_ps + beta*fn (beta folded) --------
    fn = conv(b_feat, wc2_ref, 3, mask3_ref, relu=False)
    x = dep_ps + fn

    # ---- refine2 = Basic_Conv^3(xin)  (BN folded into the weights) ----------
    x = conv(x, wd1_ref, 3, mask3_ref, relu=True)
    x = conv(x, wd2_ref, 3, mask3_ref, relu=True)
    x = conv(x, wd3_ref, 3, mask3_ref, relu=True)
    refine_ref[...] = x                                        # lane-dense store

    # ---- output_map = Conv7x7(refine2, pad=3) --------------------------------
    omap_ref[...] = conv(x, wom_ref, 7, mask7_ref, relu=False)


# ------------------------------ host-side prep -------------------------------

def _bilinear_matrix(n_in, n_out):
    """Interpolation matrix of nn.UpsamplingBilinear2d (align_corners=True)."""
    M = np.zeros((n_out, n_in), np.float32)
    if n_in == 1:
        M[:, 0] = 1.0
        return M
    for i in range(n_out):
        src = i * (n_in - 1) / (n_out - 1)
        i0 = min(int(np.floor(src)), n_in - 1)
        i1 = min(i0 + 1, n_in - 1)
        f = src - i0
        M[i, i0] += 1.0 - f
        M[i, i1] += f
    return M


def _tap_masks(H, W, B, K, dilation=1):
    """(K*K, B*H*W) 0/1 'tap stays inside the image' masks for the roll-based
    im2col (identical per sample -> tiled across B along the flat axis)."""
    P = K // 2
    hh, ww = np.meshgrid(np.arange(H), np.arange(W), indexing="ij")
    rows = []
    for ky in range(K):
        for kx in range(K):
            dy, dx = (ky - P) * dilation, (kx - P) * dilation
            ok = ((hh + dy >= 0) & (hh + dy < H) &
                  (ww + dx >= 0) & (ww + dx < W))
            rows.append(ok.reshape(-1))
    mm = np.stack(rows, 0).astype(np.float32)
    return np.tile(mm, (1, B))


def _phase_masks(H, W, B):
    """(4, B*H*W) 0/1 masks selecting pixel-shuffle phase p = 2r+s pixels."""
    hh, ww = np.meshgrid(np.arange(H), np.arange(W), indexing="ij")
    rows = [(((hh % 2) == r) & ((ww % 2) == s)).reshape(-1)
            for r in range(2) for s in range(2)]
    mm = np.stack(rows, 0).astype(np.float32)
    return np.tile(mm, (1, B))


def _augment_weight(w, b):
    """Torch OIHW conv weight + bias -> (Cout, K*K*Cin + 1) im2col LHS
    (tap-major / Cin-minor columns, trailing column = bias)."""
    Cout, Cin, K, _ = w.shape
    wf = jnp.transpose(w, (0, 2, 3, 1)).reshape(Cout, K * K * Cin)
    return jnp.concatenate([wf, b.reshape(Cout, 1)], axis=1)


def init_params(key, c1, c2):
    ks = jax.random.split(key, 12)
    w = lambda k, s: (0.05 * jax.random.normal(k, s)).astype(jnp.float32)
    p = {}
    p["w_up"] = w(ks[0], (4 * c1, c2, 3, 3)); p["b_up"] = w(ks[1], (4 * c1,))
    p["w_c2"] = w(ks[2], (c1, c1, 3, 3));     p["b_c2"] = w(ks[3], (c1,))
    p["w_d1"] = w(ks[4], (c1, c1, 3, 3));     p["b_d1"] = w(ks[5], (c1,))
    p["w_d2"] = w(ks[6], (c1, c1, 3, 3));     p["b_d2"] = w(ks[7], (c1,))
    p["w_d3"] = w(ks[8], (c1, c1, 3, 3));     p["b_d3"] = w(ks[9], (c1,))
    p["w_om"] = w(ks[10], (1, c1, 7, 7));     p["b_om"] = w(ks[11], (1,))
    p["beta"] = jnp.ones((1,), jnp.float32)   # nn.Parameter(torch.ones(1))
    return p


def fgrm_forward(p, cur_x, dep_x, in_map):
    B, C1, H, W = cur_x.shape
    _, C2, Hh, Wh = dep_x.shape
    L = B * H * W

    # Eval-mode BatchNorm with default running stats (mean=0, var=1, gamma=1,
    # beta=0) folds to a single scale fused into the conv weights/bias at
    # trace time; a trained checkpoint's stats would fold likewise.
    s_bn = float(1.0 / np.sqrt(1.0 + BN_EPS))
    bf16 = lambda a: a.astype(jnp.bfloat16)

    w_up = _augment_weight(p["w_up"] * s_bn, p["b_up"] * s_bn)       # (4C1,9C2+1)
    # reorder rows phase-major: new row p*C1 + c  <-  old conv channel 4c + p
    w_up = w_up.reshape(C1, 4, -1).transpose(1, 0, 2).reshape(4 * C1, -1)
    w_c2 = _augment_weight(p["w_c2"], p["b_c2"]) * p["beta"][0]      # beta folded
    w_d1 = _augment_weight(p["w_d1"] * s_bn, p["b_d1"] * s_bn)
    w_d2 = _augment_weight(p["w_d2"] * s_bn, p["b_d2"] * s_bn)
    w_d3 = _augment_weight(p["w_d3"] * s_bn, p["b_d3"] * s_bn)
    w_om = _augment_weight(p["w_om"], p["b_om"])                     # (1,49C1+1)

    # Lane-dense (C, B*H*W) activation slabs (wrapper-side layout plumbing).
    curx = jnp.transpose(cur_x, (1, 0, 2, 3)).reshape(C1, L)
    dep_up = jnp.transpose(dep_x, (1, 0, 2, 3))                      # (C2,B,Hh,Wh)
    dep_up = jnp.repeat(jnp.repeat(dep_up, 2, axis=2), 2, axis=3).reshape(C2, L)
    LH = jnp.asarray(_bilinear_matrix(Hh, H))                        # (H, Hh)
    LW = jnp.asarray(_bilinear_matrix(Wh, W))                        # (W, Wh)
    premap = jnp.einsum("hi,bij,wj->bhw", LH, in_map[:, 0], LW,
                        precision="highest").reshape(1, L)

    maskd = jnp.asarray(_tap_masks(H, W, B, 3, dilation=2))          # (9, L)
    mask3 = jnp.asarray(_tap_masks(H, W, B, 3, dilation=1))          # (9, L)
    mask7 = jnp.asarray(_tap_masks(H, W, B, 7, dilation=1))          # (49, L)
    pmask = jnp.asarray(_phase_masks(H, W, B))                       # (4, L)

    kern = functools.partial(_fgrm_kernel, C1=C1, H=H, W=W, L=L)

    def full(shape):
        nd = len(shape)
        return pl.BlockSpec(shape, lambda i, _nd=nd: (0,) * _nd)

    args = (dep_up, curx, premap,
            bf16(w_up), bf16(w_c2), bf16(w_d1), bf16(w_d2), bf16(w_d3),
            bf16(w_om), maskd, mask3, mask7, pmask)

    refine_flat, omap_flat = pl.pallas_call(
        kern,
        out_shape=(jax.ShapeDtypeStruct((C1, L), jnp.float32),
                   jax.ShapeDtypeStruct((1, L), jnp.float32)),
        grid=(1,),
        in_specs=[full(a.shape) for a in args],
        out_specs=(full((C1, L)), full((1, L))),
        compiler_params=pltpu.CompilerParams(
            dimension_semantics=("arbitrary",)),
    )(*args)

    refine2 = refine_flat.reshape(C1, B, H, W).transpose(1, 0, 2, 3)
    out_map = omap_flat.reshape(1, B, H, W).transpose(1, 0, 2, 3)
    return refine2, out_map


# ----------------------------- pure-JAX reference ----------------------------

def _conv_ref(x, w, b, pad):
    y = jax.lax.conv_general_dilated(
        x, w, window_strides=(1, 1), padding=[(pad, pad), (pad, pad)],
        dimension_numbers=("NCHW", "OIHW", "NCHW"))
    return y + b[None, :, None, None]


def fgrm_ref(p, cur_x, dep_x, in_map):
    B, C1, H, W = cur_x.shape
    _, _, Hh, Wh = dep_x.shape
    s_bn = float(1.0 / np.sqrt(1.0 + BN_EPS))
    up = jax.nn.relu(_conv_ref(dep_x, p["w_up"], p["b_up"], 1) * s_bn)
    dep_ps = up.reshape(B, C1, 2, 2, Hh, Wh).transpose(0, 1, 4, 2, 5, 3)
    dep_ps = dep_ps.reshape(B, C1, H, W)
    Lh = jnp.asarray(_bilinear_matrix(Hh, H))
    Lw = jnp.asarray(_bilinear_matrix(Wh, W))
    m = jax.nn.sigmoid(jnp.einsum("oh,bchw,pw->bcop", Lh, in_map, Lw))
    dil = jax.lax.reduce_window(m, -jnp.inf, jax.lax.max,
                                (1, 1, 3, 3), (1, 1, 1, 1), "SAME")
    b_feat = cur_x * (dil - m)
    fn = _conv_ref(b_feat, p["w_c2"], p["b_c2"], 1)
    xin = dep_ps + p["beta"][0] * fn
    r = jax.nn.relu(_conv_ref(xin, p["w_d1"], p["b_d1"], 1) * s_bn)
    r = jax.nn.relu(_conv_ref(r,   p["w_d2"], p["b_d2"], 1) * s_bn)
    r = jax.nn.relu(_conv_ref(r,   p["w_d3"], p["b_d3"], 1) * s_bn)
    out_map = _conv_ref(r, p["w_om"], p["b_om"], 3)
    return r, out_map


# ----------------------------------- main ------------------------------------

if __name__ == "__main__":
    key = jax.random.PRNGKey(0)
    kx, kd, km, kp = jax.random.split(key, 4)
    B, C1, C2, H, W = 2, 4, 8, 16, 16
    Hh, Wh = H // 2, W // 2

    cur_x = jax.random.normal(kx, (B, C1, H, W), jnp.float32)
    dep_x = jax.random.normal(kd, (B, C2, Hh, Wh), jnp.float32)
    in_map = jax.random.normal(km, (B, 1, Hh, Wh), jnp.float32)
    params = init_params(kp, C1, C2)

    fwd = jax.jit(fgrm_forward)
    refine2, out_map = fwd(params, cur_x, dep_x, in_map)
    jax.block_until_ready((refine2, out_map))

    assert refine2.shape == (B, C1, H, W) and out_map.shape == (B, 1, H, W)

    ref_r, ref_o = fgrm_ref(params, cur_x, dep_x, in_map)
    e1 = float(jnp.max(jnp.abs(refine2 - ref_r)))
    e2 = float(jnp.max(jnp.abs(out_map - ref_o)))
    # Tight enough to catch layout / indexing / shift-direction bugs (those
    # give O(0.1-1) errors) while allowing bf16 MXU-operand rounding.
    assert e1 < 3e-2 and e2 < 3e-2, (e1, e2)

    print("KERNEL_OK")
</pallas_src>

<mosaic_0001>
module attributes {stable_mosaic.version = 11 : i64} {
  func.func @_fgrm_kernel(%arg0: i32, %arg1: memref<8x512xf32, #tpu.memory_space<vmem>>, %arg2: memref<4x512xf32, #tpu.memory_space<vmem>>, %arg3: memref<1x512xf32, #tpu.memory_space<vmem>>, %arg4: memref<16x73xbf16, #tpu.memory_space<vmem>>, %arg5: memref<4x37xbf16, #tpu.memory_space<vmem>>, %arg6: memref<4x37xbf16, #tpu.memory_space<vmem>>, %arg7: memref<4x37xbf16, #tpu.memory_space<vmem>>, %arg8: memref<4x37xbf16, #tpu.memory_space<vmem>>, %arg9: memref<1x197xbf16, #tpu.memory_space<vmem>>, %arg10: memref<9x512xf32, #tpu.memory_space<vmem>>, %arg11: memref<9x512xf32, #tpu.memory_space<vmem>>, %arg12: memref<49x512xf32, #tpu.memory_space<vmem>>, %arg13: memref<4x512xf32, #tpu.memory_space<vmem>>, %arg14: memref<4x512xf32, #tpu.memory_space<vmem>>, %arg15: memref<1x512xf32, #tpu.memory_space<vmem>>) attributes {dimension_semantics = [#tpu.dimension_semantics<arbitrary>], iteration_bounds = array<i64: 1>, scalar_prefetch = 0 : i64, scratch_operands = 0 : i64, tpu.core_type = #tpu.core_type<tc>, window_params = [{pipeline_mode = #tpu.pipeline_mode<synchronous>, transform_indices = @transform_0, window_bounds = array<i64: 8, 512>}, {pipeline_mode = #tpu.pipeline_mode<synchronous>, transform_indices = @transform_1, window_bounds = array<i64: 4, 512>}, {pipeline_mode = #tpu.pipeline_mode<synchronous>, transform_indices = @transform_2, window_bounds = array<i64: 1, 512>}, {pipeline_mode = #tpu.pipeline_mode<synchronous>, transform_indices = @transform_3, window_bounds = array<i64: 16, 73>}, {pipeline_mode = #tpu.pipeline_mode<synchronous>, transform_indices = @transform_4, window_bounds = array<i64: 4, 37>}, {pipeline_mode = #tpu.pipeline_mode<synchronous>, transform_indices = @transform_5, window_bounds = array<i64: 4, 37>}, {pipeline_mode = #tpu.pipeline_mode<synchronous>, transform_indices = @transform_6, window_bounds = array<i64: 4, 37>}, {pipeline_mode = #tpu.pipeline_mode<synchronous>, transform_indices = @transform_7, window_bounds = array<i64: 4, 37>}, {pipeline_mode = #tpu.pipeline_mode<synchronous>, transform_indices = @transform_8, window_bounds = array<i64: 1, 197>}, {pipeline_mode = #tpu.pipeline_mode<synchronous>, transform_indices = @transform_9, window_bounds = array<i64: 9, 512>}, {pipeline_mode = #tpu.pipeline_mode<synchronous>, transform_indices = @transform_10, window_bounds = array<i64: 9, 512>}, {pipeline_mode = #tpu.pipeline_mode<synchronous>, transform_indices = @transform_11, window_bounds = array<i64: 49, 512>}, {pipeline_mode = #tpu.pipeline_mode<synchronous>, transform_indices = @transform_12, window_bounds = array<i64: 4, 512>}, {pipeline_mode = #tpu.pipeline_mode<synchronous>, transform_indices = @transform_13, window_bounds = array<i64: 4, 512>}, {pipeline_mode = #tpu.pipeline_mode<synchronous>, transform_indices = @transform_14, window_bounds = array<i64: 1, 512>}]} {
    %c0 = arith.constant 0 : index
    %c0_0 = arith.constant 0 : index
    %0 = vector.load %arg1[%c0, %c0_0] : memref<8x512xf32, #tpu.memory_space<vmem>>, vector<8x512xf32>
    %c0_1 = arith.constant 0 : index
    %c0_2 = arith.constant 0 : index
    %1 = vector.load %arg10[%c0_1, %c0_2] : memref<9x512xf32, #tpu.memory_space<vmem>>, vector<9x512xf32>
    %c34_i32 = arith.constant 34 : i32
    %2 = tpu.dynamic_rotate %0 by %c34_i32 dim 1 : vector<8x512xf32>, i32 -> vector<8x512xf32>
    %3 = vector.extract_strided_slice %1 {offsets = [0, 0], sizes = [1, 512], strides = [1, 1]} : vector<9x512xf32> to vector<1x512xf32>
    %4 = vector.broadcast %3 : vector<1x512xf32> to vector<8x512xf32>
    %5 = arith.mulf %2, %4 : vector<8x512xf32>
    %c32_i32 = arith.constant 32 : i32
    %6 = tpu.dynamic_rotate %0 by %c32_i32 dim 1 : vector<8x512xf32>, i32 -> vector<8x512xf32>
    %7 = vector.extract_strided_slice %1 {offsets = [1, 0], sizes = [1, 512], strides = [1, 1]} : vector<9x512xf32> to vector<1x512xf32>
    %8 = vector.broadcast %7 : vector<1x512xf32> to vector<8x512xf32>
    %9 = arith.mulf %6, %8 : vector<8x512xf32>
    %c30_i32 = arith.constant 30 : i32
    %10 = tpu.dynamic_rotate %0 by %c30_i32 dim 1 : vector<8x512xf32>, i32 -> vector<8x512xf32>
    %11 = vector.extract_strided_slice %1 {offsets = [2, 0], sizes = [1, 512], strides = [1, 1]} : vector<9x512xf32> to vector<1x512xf32>
    %12 = vector.broadcast %11 : vector<1x512xf32> to vector<8x512xf32>
    %13 = arith.mulf %10, %12 : vector<8x512xf32>
    %c2_i32 = arith.constant 2 : i32
    %14 = tpu.dynamic_rotate %0 by %c2_i32 dim 1 : vector<8x512xf32>, i32 -> vector<8x512xf32>
    %15 = vector.extract_strided_slice %1 {offsets = [3, 0], sizes = [1, 512], strides = [1, 1]} : vector<9x512xf32> to vector<1x512xf32>
    %16 = vector.broadcast %15 : vector<1x512xf32> to vector<8x512xf32>
    %17 = arith.mulf %14, %16 : vector<8x512xf32>
    %18 = vector.extract_strided_slice %1 {offsets = [4, 0], sizes = [1, 512], strides = [1, 1]} : vector<9x512xf32> to vector<1x512xf32>
    %19 = vector.broadcast %18 : vector<1x512xf32> to vector<8x512xf32>
    %20 = arith.mulf %0, %19 : vector<8x512xf32>
    %c510_i32 = arith.constant 510 : i32
    %21 = tpu.dynamic_rotate %0 by %c510_i32 dim 1 : vector<8x512xf32>, i32 -> vector<8x512xf32>
    %22 = vector.extract_strided_slice %1 {offsets = [5, 0], sizes = [1, 512], strides = [1, 1]} : vector<9x512xf32> to vector<1x512xf32>
    %23 = vector.broadcast %22 : vector<1x512xf32> to vector<8x512xf32>
    %24 = arith.mulf %21, %23 : vector<8x512xf32>
    %c482_i32 = arith.constant 482 : i32
    %25 = tpu.dynamic_rotate %0 by %c482_i32 dim 1 : vector<8x512xf32>, i32 -> vector<8x512xf32>
    %26 = vector.extract_strided_slice %1 {offsets = [6, 0], sizes = [1, 512], strides = [1, 1]} : vector<9x512xf32> to vector<1x512xf32>
    %27 = vector.broadcast %26 : vector<1x512xf32> to vector<8x512xf32>
    %28 = arith.mulf %25, %27 : vector<8x512xf32>
    %c480_i32 = arith.constant 480 : i32
    %29 = tpu.dynamic_rotate %0 by %c480_i32 dim 1 : vector<8x512xf32>, i32 -> vector<8x512xf32>
    %30 = vector.extract_strided_slice %1 {offsets = [7, 0], sizes = [1, 512], strides = [1, 1]} : vector<9x512xf32> to vector<1x512xf32>
    %31 = vector.broadcast %30 : vector<1x512xf32> to vector<8x512xf32>
    %32 = arith.mulf %29, %31 : vector<8x512xf32>
    %c478_i32 = arith.constant 478 : i32
    %33 = tpu.dynamic_rotate %0 by %c478_i32 dim 1 : vector<8x512xf32>, i32 -> vector<8x512xf32>
    %34 = vector.extract_strided_slice %1 {offsets = [8, 0], sizes = [1, 512], strides = [1, 1]} : vector<9x512xf32> to vector<1x512xf32>
    %35 = vector.broadcast %34 : vector<1x512xf32> to vector<8x512xf32>
    %36 = arith.mulf %33, %35 : vector<8x512xf32>
    %cst = arith.constant 1.000000e+00 : f32
    %37 = vector.broadcast %cst : f32 to vector<1x512xf32>
    %38 = tpu.concatenate %5, %9, %13, %17, %20, %24, %28, %32, %36, %37 in 0 : vector<8x512xf32>, vector<8x512xf32>, vector<8x512xf32>, vector<8x512xf32>, vector<8x512xf32>, vector<8x512xf32>, vector<8x512xf32>, vector<8x512xf32>, vector<8x512xf32>, vector<1x512xf32> -> vector<73x512xf32>
    %39 = arith.truncf %38 : vector<73x512xf32> to vector<73x512xbf16>
    %c0_3 = arith.constant 0 : index
    %c0_4 = arith.constant 0 : index
    %40 = vector.load %arg4[%c0_3, %c0_4] : memref<16x73xbf16, #tpu.memory_space<vmem>>, vector<16x73xbf16>
    %cst_5 = arith.constant dense<0.000000e+00> : vector<16x512xf32>
    %41 = tpu.matmul %40, %39, %cst_5 {dimension_numbers = #tpu.dot_dimension_numbers<[1], [0], [0], [1], [0, 0, 1, 1], [], []>} : vector<16x73xbf16>, vector<73x512xbf16>, vector<16x512xf32> -> vector<16x512xf32>
    %c0_6 = arith.constant 0 : index
    %c0_7 = arith.constant 0 : index
    %42 = vector.load %arg13[%c0_6, %c0_7] : memref<4x512xf32, #tpu.memory_space<vmem>>, vector<4x512xf32>
    %43 = vector.extract_strided_slice %42 {offsets = [0, 0], sizes = [1, 512], strides = [1, 1]} : vector<4x512xf32> to vector<1x512xf32>
    %44 = vector.extract_strided_slice %41 {offsets = [0, 0], sizes = [4, 512], strides = [1, 1]} : vector<16x512xf32> to vector<4x512xf32>
    %45 = vector.broadcast %43 : vector<1x512xf32> to vector<4x512xf32>
    %46 = arith.mulf %45, %44 : vector<4x512xf32>
    %47 = vector.extract_strided_slice %42 {offsets = [1, 0], sizes = [1, 512], strides = [1, 1]} : vector<4x512xf32> to vector<1x512xf32>
    %48 = vector.extract_strided_slice %41 {offsets = [4, 0], sizes = [4, 512], strides = [1, 1]} : vector<16x512xf32> to vector<4x512xf32>
    %49 = vector.broadcast %47 : vector<1x512xf32> to vector<4x512xf32>
    %50 = arith.mulf %49, %48 : vector<4x512xf32>
    %51 = arith.addf %46, %50 : vector<4x512xf32>
    %52 = vector.extract_strided_slice %42 {offsets = [2, 0], sizes = [1, 512], strides = [1, 1]} : vector<4x512xf32> to vector<1x512xf32>
    %53 = vector.extract_strided_slice %41 {offsets = [8, 0], sizes = [4, 512], strides = [1, 1]} : vector<16x512xf32> to vector<4x512xf32>
    %54 = vector.broadcast %52 : vector<1x512xf32> to vector<4x512xf32>
    %55 = arith.mulf %54, %53 : vector<4x512xf32>
    %56 = arith.addf %51, %55 : vector<4x512xf32>
    %57 = vector.extract_strided_slice %42 {offsets = [3, 0], sizes = [1, 512], strides = [1, 1]} : vector<4x512xf32> to vector<1x512xf32>
    %58 = vector.extract_strided_slice %41 {offsets = [12, 0], sizes = [4, 512], strides = [1, 1]} : vector<16x512xf32> to vector<4x512xf32>
    %59 = vector.broadcast %57 : vector<1x512xf32> to vector<4x512xf32>
    %60 = arith.mulf %59, %58 : vector<4x512xf32>
    %61 = arith.addf %56, %60 : vector<4x512xf32>
    %cst_8 = arith.constant 0.000000e+00 : f32
    %62 = vector.broadcast %cst_8 : f32 to vector<4x512xf32>
    %63 = arith.maximumf %61, %62 : vector<4x512xf32>
    %c0_9 = arith.constant 0 : index
    %c0_10 = arith.constant 0 : index
    %64 = vector.load %arg3[%c0_9, %c0_10] : memref<1x512xf32, #tpu.memory_space<vmem>>, vector<1x512xf32>
    %65 = arith.negf %64 : vector<1x512xf32>
    %66 = math.exp %65 : vector<1x512xf32>
    %cst_11 = arith.constant 1.000000e+00 : f32
    %67 = vector.broadcast %cst_11 : f32 to vector<1x512xf32>
    %68 = arith.addf %67, %66 : vector<1x512xf32>
    %69 = arith.divf %67, %68 : vector<1x512xf32>
    %c0_12 = arith.constant 0 : index
    %c0_13 = arith.constant 0 : index
    %70 = vector.load %arg11[%c0_12, %c0_13] : memref<9x512xf32, #tpu.memory_space<vmem>>, vector<9x512xf32>
    %c17_i32 = arith.constant 17 : i32
    %71 = tpu.dynamic_rotate %69 by %c17_i32 dim 1 : vector<1x512xf32>, i32 -> vector<1x512xf32>
    %72 = vector.extract_strided_slice %70 {offsets = [0, 0], sizes = [1, 512], strides = [1, 1]} : vector<9x512xf32> to vector<1x512xf32>
    %73 = arith.mulf %71, %72 : vector<1x512xf32>
    %74 = arith.maximumf %69, %73 : vector<1x512xf32>
    %c16_i32 = arith.constant 16 : i32
    %75 = tpu.dynamic_rotate %69 by %c16_i32 dim 1 : vector<1x512xf32>, i32 -> vector<1x512xf32>
    %76 = vector.extract_strided_slice %70 {offsets = [1, 0], sizes = [1, 512], strides = [1, 1]} : vector<9x512xf32> to vector<1x512xf32>
    %77 = arith.mulf %75, %76 : vector<1x512xf32>
    %78 = arith.maximumf %74, %77 : vector<1x512xf32>
    %c15_i32 = arith.constant 15 : i32
    %79 = tpu.dynamic_rotate %69 by %c15_i32 dim 1 : vector<1x512xf32>, i32 -> vector<1x512xf32>
    %80 = vector.extract_strided_slice %70 {offsets = [2, 0], sizes = [1, 512], strides = [1, 1]} : vector<9x512xf32> to vector<1x512xf32>
    %81 = arith.mulf %79, %80 : vector<1x512xf32>
    %82 = arith.maximumf %78, %81 : vector<1x512xf32>
    %c1_i32 = arith.constant 1 : i32
    %83 = tpu.dynamic_rotate %69 by %c1_i32 dim 1 : vector<1x512xf32>, i32 -> vector<1x512xf32>
    %84 = vector.extract_strided_slice %70 {offsets = [3, 0], sizes = [1, 512], strides = [1, 1]} : vector<9x512xf32> to vector<1x512xf32>
    %85 = arith.mulf %83, %84 : vector<1x512xf32>
    %86 = arith.maximumf %82, %85 : vector<1x512xf32>
    %c511_i32 = arith.constant 511 : i32
    %87 = tpu.dynamic_rotate %69 by %c511_i32 dim 1 : vector<1x512xf32>, i32 -> vector<1x512xf32>
    %88 = vector.extract_strided_slice %70 {offsets = [5, 0], sizes = [1, 512], strides = [1, 1]} : vector<9x512xf32> to vector<1x512xf32>
    %89 = arith.mulf %87, %88 : vector<1x512xf32>
    %90 = arith.maximumf %86, %89 : vector<1x512xf32>
    %c497_i32 = arith.constant 497 : i32
    %91 = tpu.dynamic_rotate %69 by %c497_i32 dim 1 : vector<1x512xf32>, i32 -> vector<1x512xf32>
    %92 = vector.extract_strided_slice %70 {offsets = [6, 0], sizes = [1, 512], strides = [1, 1]} : vector<9x512xf32> to vector<1x512xf32>
    %93 = arith.mulf %91, %92 : vector<1x512xf32>
    %94 = arith.maximumf %90, %93 : vector<1x512xf32>
    %c496_i32 = arith.constant 496 : i32
    %95 = tpu.dynamic_rotate %69 by %c496_i32 dim 1 : vector<1x512xf32>, i32 -> vector<1x512xf32>
    %96 = vector.extract_strided_slice %70 {offsets = [7, 0], sizes = [1, 512], strides = [1, 1]} : vector<9x512xf32> to vector<1x512xf32>
    %97 = arith.mulf %95, %96 : vector<1x512xf32>
    %98 = arith.maximumf %94, %97 : vector<1x512xf32>
    %c495_i32 = arith.constant 495 : i32
    %99 = tpu.dynamic_rotate %69 by %c495_i32 dim 1 : vector<1x512xf32>, i32 -> vector<1x512xf32>
    %100 = vector.extract_strided_slice %70 {offsets = [8, 0], sizes = [1, 512], strides = [1, 1]} : vector<9x512xf32> to vector<1x512xf32>
    %101 = arith.mulf %99, %100 : vector<1x512xf32>
    %102 = arith.maximumf %98, %101 : vector<1x512xf32>
    %c0_14 = arith.constant 0 : index
    %c0_15 = arith.constant 0 : index
    %103 = vector.load %arg2[%c0_14, %c0_15] : memref<4x512xf32, #tpu.memory_space<vmem>>, vector<4x512xf32>
    %104 = arith.subf %102, %69 : vector<1x512xf32>
    %105 = vector.broadcast %104 : vector<1x512xf32> to vector<4x512xf32>
    %106 = arith.mulf %103, %105 : vector<4x512xf32>
    %c0_16 = arith.constant 0 : index
    %c0_17 = arith.constant 0 : index
    %107 = vector.load %arg11[%c0_16, %c0_17] : memref<9x512xf32, #tpu.memory_space<vmem>>, vector<9x512xf32>
    %c17_i32_18 = arith.constant 17 : i32
    %108 = tpu.dynamic_rotate %106 by %c17_i32_18 dim 1 : vector<4x512xf32>, i32 -> vector<4x512xf32>
    %109 = vector.extract_strided_slice %107 {offsets = [0, 0], sizes = [1, 512], strides = [1, 1]} : vector<9x512xf32> to vector<1x512xf32>
    %110 = vector.broadcast %109 : vector<1x512xf32> to vector<4x512xf32>
    %111 = arith.mulf %108, %110 : vector<4x512xf32>
    %c16_i32_19 = arith.constant 16 : i32
    %112 = tpu.dynamic_rotate %106 by %c16_i32_19 dim 1 : vector<4x512xf32>, i32 -> vector<4x512xf32>
    %113 = vector.extract_strided_slice %107 {offsets = [1, 0], sizes = [1, 512], strides = [1, 1]} : vector<9x512xf32> to vector<1x512xf32>
    %114 = vector.broadcast %113 : vector<1x512xf32> to vector<4x512xf32>
    %115 = arith.mulf %112, %114 : vector<4x512xf32>
    %c15_i32_20 = arith.constant 15 : i32
    %116 = tpu.dynamic_rotate %106 by %c15_i32_20 dim 1 : vector<4x512xf32>, i32 -> vector<4x512xf32>
    %117 = vector.extract_strided_slice %107 {offsets = [2, 0], sizes = [1, 512], strides = [1, 1]} : vector<9x512xf32> to vector<1x512xf32>
    %118 = vector.broadcast %117 : vector<1x512xf32> to vector<4x512xf32>
    %119 = arith.mulf %116, %118 : vector<4x512xf32>
    %c1_i32_21 = arith.constant 1 : i32
    %120 = tpu.dynamic_rotate %106 by %c1_i32_21 dim 1 : vector<4x512xf32>, i32 -> vector<4x512xf32>
    %121 = vector.extract_strided_slice %107 {offsets = [3, 0], sizes = [1, 512], strides = [1, 1]} : vector<9x512xf32> to vector<1x512xf32>
    %122 = vector.broadcast %121 : vector<1x512xf32> to vector<4x512xf32>
    %123 = arith.mulf %120, %122 : vector<4x512xf32>
    %124 = vector.extract_strided_slice %107 {offsets = [4, 0], sizes = [1, 512], strides = [1, 1]} : vector<9x512xf32> to vector<1x512xf32>
    %125 = vector.broadcast %124 : vector<1x512xf32> to vector<4x512xf32>
    %126 = arith.mulf %106, %125 : vector<4x512xf32>
    %c511_i32_22 = arith.constant 511 : i32
    %127 = tpu.dynamic_rotate %106 by %c511_i32_22 dim 1 : vector<4x512xf32>, i32 -> vector<4x512xf32>
    %128 = vector.extract_strided_slice %107 {offsets = [5, 0], sizes = [1, 512], strides = [1, 1]} : vector<9x512xf32> to vector<1x512xf32>
    %129 = vector.broadcast %128 : vector<1x512xf32> to vector<4x512xf32>
    %130 = arith.mulf %127, %129 : vector<4x512xf32>
    %c497_i32_23 = arith.constant 497 : i32
    %131 = tpu.dynamic_rotate %106 by %c497_i32_23 dim 1 : vector<4x512xf32>, i32 -> vector<4x512xf32>
    %132 = vector.extract_strided_slice %107 {offsets = [6, 0], sizes = [1, 512], strides = [1, 1]} : vector<9x512xf32> to vector<1x512xf32>
    %133 = vector.broadcast %132 : vector<1x512xf32> to vector<4x512xf32>
    %134 = arith.mulf %131, %133 : vector<4x512xf32>
    %c496_i32_24 = arith.constant 496 : i32
    %135 = tpu.dynamic_rotate %106 by %c496_i32_24 dim 1 : vector<4x512xf32>, i32 -> vector<4x512xf32>
    %136 = vector.extract_strided_slice %107 {offsets = [7, 0], sizes = [1, 512], strides = [1, 1]} : vector<9x512xf32> to vector<1x512xf32>
    %137 = vector.broadcast %136 : vector<1x512xf32> to vector<4x512xf32>
    %138 = arith.mulf %135, %137 : vector<4x512xf32>
    %c495_i32_25 = arith.constant 495 : i32
    %139 = tpu.dynamic_rotate %106 by %c495_i32_25 dim 1 : vector<4x512xf32>, i32 -> vector<4x512xf32>
    %140 = vector.extract_strided_slice %107 {offsets = [8, 0], sizes = [1, 512], strides = [1, 1]} : vector<9x512xf32> to vector<1x512xf32>
    %141 = vector.broadcast %140 : vector<1x512xf32> to vector<4x512xf32>
    %142 = arith.mulf %139, %141 : vector<4x512xf32>
    %cst_26 = arith.constant 1.000000e+00 : f32
    %143 = vector.broadcast %cst_26 : f32 to vector<1x512xf32>
    %144 = tpu.concatenate %111, %115, %119, %123, %126, %130, %134, %138, %142, %143 in 0 : vector<4x512xf32>, vector<4x512xf32>, vector<4x512xf32>, vector<4x512xf32>, vector<4x512xf32>, vector<4x512xf32>, vector<4x512xf32>, vector<4x512xf32>, vector<4x512xf32>, vector<1x512xf32> -> vector<37x512xf32>
    %145 = arith.truncf %144 : vector<37x512xf32> to vector<37x512xbf16>
    %c0_27 = arith.constant 0 : index
    %c0_28 = arith.constant 0 : index
    %146 = vector.load %arg5[%c0_27, %c0_28] : memref<4x37xbf16, #tpu.memory_space<vmem>>, vector<4x37xbf16>
    %cst_29 = arith.constant dense<0.000000e+00> : vector<4x512xf32>
    %147 = tpu.matmul %146, %145, %cst_29 {dimension_numbers = #tpu.dot_dimension_numbers<[1], [0], [0], [1], [0, 0, 1, 1], [], []>} : vector<4x37xbf16>, vector<37x512xbf16>, vector<4x512xf32> -> vector<4x512xf32>
    %148 = arith.addf %63, %147 : vector<4x512xf32>
    %c0_30 = arith.constant 0 : index
    %c0_31 = arith.constant 0 : index
    %149 = vector.load %arg11[%c0_30, %c0_31] : memref<9x512xf32, #tpu.memory_space<vmem>>, vector<9x512xf32>
    %c17_i32_32 = arith.constant 17 : i32
    %150 = tpu.dynamic_rotate %148 by %c17_i32_32 dim 1 : vector<4x512xf32>, i32 -> vector<4x512xf32>
    %151 = vector.extract_strided_slice %149 {offsets = [0, 0], sizes = [1, 512], strides = [1, 1]} : vector<9x512xf32> to vector<1x512xf32>
    %152 = vector.broadcast %151 : vector<1x512xf32> to vector<4x512xf32>
    %153 = arith.mulf %150, %152 : vector<4x512xf32>
    %c16_i32_33 = arith.constant 16 : i32
    %154 = tpu.dynamic_rotate %148 by %c16_i32_33 dim 1 : vector<4x512xf32>, i32 -> vector<4x512xf32>
    %155 = vector.extract_strided_slice %149 {offsets = [1, 0], sizes = [1, 512], strides = [1, 1]} : vector<9x512xf32> to vector<1x512xf32>
    %156 = vector.broadcast %155 : vector<1x512xf32> to vector<4x512xf32>
    %157 = arith.mulf %154, %156 : vector<4x512xf32>
    %c15_i32_34 = arith.constant 15 : i32
    %158 = tpu.dynamic_rotate %148 by %c15_i32_34 dim 1 : vector<4x512xf32>, i32 -> vector<4x512xf32>
    %159 = vector.extract_strided_slice %149 {offsets = [2, 0], sizes = [1, 512], strides = [1, 1]} : vector<9x512xf32> to vector<1x512xf32>
    %160 = vector.broadcast %159 : vector<1x512xf32> to vector<4x512xf32>
    %161 = arith.mulf %158, %160 : vector<4x512xf32>
    %c1_i32_35 = arith.constant 1 : i32
    %162 = tpu.dynamic_rotate %148 by %c1_i32_35 dim 1 : vector<4x512xf32>, i32 -> vector<4x512xf32>
    %163 = vector.extract_strided_slice %149 {offsets = [3, 0], sizes = [1, 512], strides = [1, 1]} : vector<9x512xf32> to vector<1x512xf32>
    %164 = vector.broadcast %163 : vector<1x512xf32> to vector<4x512xf32>
    %165 = arith.mulf %162, %164 : vector<4x512xf32>
    %166 = vector.extract_strided_slice %149 {offsets = [4, 0], sizes = [1, 512], strides = [1, 1]} : vector<9x512xf32> to vector<1x512xf32>
    %167 = vector.broadcast %166 : vector<1x512xf32> to vector<4x512xf32>
    %168 = arith.mulf %148, %167 : vector<4x512xf32>
    %c511_i32_36 = arith.constant 511 : i32
    %169 = tpu.dynamic_rotate %148 by %c511_i32_36 dim 1 : vector<4x512xf32>, i32 -> vector<4x512xf32>
    %170 = vector.extract_strided_slice %149 {offsets = [5, 0], sizes = [1, 512], strides = [1, 1]} : vector<9x512xf32> to vector<1x512xf32>
    %171 = vector.broadcast %170 : vector<1x512xf32> to vector<4x512xf32>
    %172 = arith.mulf %169, %171 : vector<4x512xf32>
    %c497_i32_37 = arith.constant 497 : i32
    %173 = tpu.dynamic_rotate %148 by %c497_i32_37 dim 1 : vector<4x512xf32>, i32 -> vector<4x512xf32>
    %174 = vector.extract_strided_slice %149 {offsets = [6, 0], sizes = [1, 512], strides = [1, 1]} : vector<9x512xf32> to vector<1x512xf32>
    %175 = vector.broadcast %174 : vector<1x512xf32> to vector<4x512xf32>
    %176 = arith.mulf %173, %175 : vector<4x512xf32>
    %c496_i32_38 = arith.constant 496 : i32
    %177 = tpu.dynamic_rotate %148 by %c496_i32_38 dim 1 : vector<4x512xf32>, i32 -> vector<4x512xf32>
    %178 = vector.extract_strided_slice %149 {offsets = [7, 0], sizes = [1, 512], strides = [1, 1]} : vector<9x512xf32> to vector<1x512xf32>
    %179 = vector.broadcast %178 : vector<1x512xf32> to vector<4x512xf32>
    %180 = arith.mulf %177, %179 : vector<4x512xf32>
    %c495_i32_39 = arith.constant 495 : i32
    %181 = tpu.dynamic_rotate %148 by %c495_i32_39 dim 1 : vector<4x512xf32>, i32 -> vector<4x512xf32>
    %182 = vector.extract_strided_slice %149 {offsets = [8, 0], sizes = [1, 512], strides = [1, 1]} : vector<9x512xf32> to vector<1x512xf32>
    %183 = vector.broadcast %182 : vector<1x512xf32> to vector<4x512xf32>
    %184 = arith.mulf %181, %183 : vector<4x512xf32>
    %cst_40 = arith.constant 1.000000e+00 : f32
    %185 = vector.broadcast %cst_40 : f32 to vector<1x512xf32>
    %186 = tpu.concatenate %153, %157, %161, %165, %168, %172, %176, %180, %184, %185 in 0 : vector<4x512xf32>, vector<4x512xf32>, vector<4x512xf32>, vector<4x512xf32>, vector<4x512xf32>, vector<4x512xf32>, vector<4x512xf32>, vector<4x512xf32>, vector<4x512xf32>, vector<1x512xf32> -> vector<37x512xf32>
    %187 = arith.truncf %186 : vector<37x512xf32> to vector<37x512xbf16>
    %c0_41 = arith.constant 0 : index
    %c0_42 = arith.constant 0 : index
    %188 = vector.load %arg6[%c0_41, %c0_42] : memref<4x37xbf16, #tpu.memory_space<vmem>>, vector<4x37xbf16>
    %cst_43 = arith.constant dense<0.000000e+00> : vector<4x512xf32>
    %189 = tpu.matmul %188, %187, %cst_43 {dimension_numbers = #tpu.dot_dimension_numbers<[1], [0], [0], [1], [0, 0, 1, 1], [], []>} : vector<4x37xbf16>, vector<37x512xbf16>, vector<4x512xf32> -> vector<4x512xf32>
    %cst_44 = arith.constant 0.000000e+00 : f32
    %190 = vector.broadcast %cst_44 : f32 to vector<4x512xf32>
    %191 = arith.maximumf %189, %190 : vector<4x512xf32>
    %c0_45 = arith.constant 0 : index
    %c0_46 = arith.constant 0 : index
    %192 = vector.load %arg11[%c0_45, %c0_46] : memref<9x512xf32, #tpu.memory_space<vmem>>, vector<9x512xf32>
    %c17_i32_47 = arith.constant 17 : i32
    %193 = tpu.dynamic_rotate %191 by %c17_i32_47 dim 1 : vector<4x512xf32>, i32 -> vector<4x512xf32>
    %194 = vector.extract_strided_slice %192 {offsets = [0, 0], sizes = [1, 512], strides = [1, 1]} : vector<9x512xf32> to vector<1x512xf32>
    %195 = vector.broadcast %194 : vector<1x512xf32> to vector<4x512xf32>
    %196 = arith.mulf %193, %195 : vector<4x512xf32>
    %c16_i32_48 = arith.constant 16 : i32
    %197 = tpu.dynamic_rotate %191 by %c16_i32_48 dim 1 : vector<4x512xf32>, i32 -> vector<4x512xf32>
    %198 = vector.extract_strided_slice %192 {offsets = [1, 0], sizes = [1, 512], strides = [1, 1]} : vector<9x512xf32> to vector<1x512xf32>
    %199 = vector.broadcast %198 : vector<1x512xf32> to vector<4x512xf32>
    %200 = arith.mulf %197, %199 : vector<4x512xf32>
    %c15_i32_49 = arith.constant 15 : i32
    %201 = tpu.dynamic_rotate %191 by %c15_i32_49 dim 1 : vector<4x512xf32>, i32 -> vector<4x512xf32>
    %202 = vector.extract_strided_slice %192 {offsets = [2, 0], sizes = [1, 512], strides = [1, 1]} : vector<9x512xf32> to vector<1x512xf32>
    %203 = vector.broadcast %202 : vector<1x512xf32> to vector<4x512xf32>
    %204 = arith.mulf %201, %203 : vector<4x512xf32>
    %c1_i32_50 = arith.constant 1 : i32
    %205 = tpu.dynamic_rotate %191 by %c1_i32_50 dim 1 : vector<4x512xf32>, i32 -> vector<4x512xf32>
    %206 = vector.extract_strided_slice %192 {offsets = [3, 0], sizes = [1, 512], strides = [1, 1]} : vector<9x512xf32> to vector<1x512xf32>
    %207 = vector.broadcast %206 : vector<1x512xf32> to vector<4x512xf32>
    %208 = arith.mulf %205, %207 : vector<4x512xf32>
    %209 = vector.extract_strided_slice %192 {offsets = [4, 0], sizes = [1, 512], strides = [1, 1]} : vector<9x512xf32> to vector<1x512xf32>
    %210 = vector.broadcast %209 : vector<1x512xf32> to vector<4x512xf32>
    %211 = arith.mulf %191, %210 : vector<4x512xf32>
    %c511_i32_51 = arith.constant 511 : i32
    %212 = tpu.dynamic_rotate %191 by %c511_i32_51 dim 1 : vector<4x512xf32>, i32 -> vector<4x512xf32>
    %213 = vector.extract_strided_slice %192 {offsets = [5, 0], sizes = [1, 512], strides = [1, 1]} : vector<9x512xf32> to vector<1x512xf32>
    %214 = vector.broadcast %213 : vector<1x512xf32> to vector<4x512xf32>
    %215 = arith.mulf %212, %214 : vector<4x512xf32>
    %c497_i32_52 = arith.constant 497 : i32
    %216 = tpu.dynamic_rotate %191 by %c497_i32_52 dim 1 : vector<4x512xf32>, i32 -> vector<4x512xf32>
    %217 = vector.extract_strided_slice %192 {offsets = [6, 0], sizes = [1, 512], strides = [1, 1]} : vector<9x512xf32> to vector<1x512xf32>
    %218 = vector.broadcast %217 : vector<1x512xf32> to vector<4x512xf32>
    %219 = arith.mulf %216, %218 : vector<4x512xf32>
    %c496_i32_53 = arith.constant 496 : i32
    %220 = tpu.dynamic_rotate %191 by %c496_i32_53 dim 1 : vector<4x512xf32>, i32 -> vector<4x512xf32>
    %221 = vector.extract_strided_slice %192 {offsets = [7, 0], sizes = [1, 512], strides = [1, 1]} : vector<9x512xf32> to vector<1x512xf32>
    %222 = vector.broadcast %221 : vector<1x512xf32> to vector<4x512xf32>
    %223 = arith.mulf %220, %222 : vector<4x512xf32>
    %c495_i32_54 = arith.constant 495 : i32
    %224 = tpu.dynamic_rotate %191 by %c495_i32_54 dim 1 : vector<4x512xf32>, i32 -> vector<4x512xf32>
    %225 = vector.extract_strided_slice %192 {offsets = [8, 0], sizes = [1, 512], strides = [1, 1]} : vector<9x512xf32> to vector<1x512xf32>
    %226 = vector.broadcast %225 : vector<1x512xf32> to vector<4x512xf32>
    %227 = arith.mulf %224, %226 : vector<4x512xf32>
    %cst_55 = arith.constant 1.000000e+00 : f32
    %228 = vector.broadcast %cst_55 : f32 to vector<1x512xf32>
    %229 = tpu.concatenate %196, %200, %204, %208, %211, %215, %219, %223, %227, %228 in 0 : vector<4x512xf32>, vector<4x512xf32>, vector<4x512xf32>, vector<4x512xf32>, vector<4x512xf32>, vector<4x512xf32>, vector<4x512xf32>, vector<4x512xf32>, vector<4x512xf32>, vector<1x512xf32> -> vector<37x512xf32>
    %230 = arith.truncf %229 : vector<37x512xf32> to vector<37x512xbf16>
    %c0_56 = arith.constant 0 : index
    %c0_57 = arith.constant 0 : index
    %231 = vector.load %arg7[%c0_56, %c0_57] : memref<4x37xbf16, #tpu.memory_space<vmem>>, vector<4x37xbf16>
    %cst_58 = arith.constant dense<0.000000e+00> : vector<4x512xf32>
    %232 = tpu.matmul %231, %230, %cst_58 {dimension_numbers = #tpu.dot_dimension_numbers<[1], [0], [0], [1], [0, 0, 1, 1], [], []>} : vector<4x37xbf16>, vector<37x512xbf16>, vector<4x512xf32> -> vector<4x512xf32>
    %cst_59 = arith.constant 0.000000e+00 : f32
    %233 = vector.broadcast %cst_59 : f32 to vector<4x512xf32>
    %234 = arith.maximumf %232, %233 : vector<4x512xf32>
    %c0_60 = arith.constant 0 : index
    %c0_61 = arith.constant 0 : index
    %235 = vector.load %arg11[%c0_60, %c0_61] : memref<9x512xf32, #tpu.memory_space<vmem>>, vector<9x512xf32>
    %c17_i32_62 = arith.constant 17 : i32
    %236 = tpu.dynamic_rotate %234 by %c17_i32_62 dim 1 : vector<4x512xf32>, i32 -> vector<4x512xf32>
    %237 = vector.extract_strided_slice %235 {offsets = [0, 0], sizes = [1, 512], strides = [1, 1]} : vector<9x512xf32> to vector<1x512xf32>
    %238 = vector.broadcast %237 : vector<1x512xf32> to vector<4x512xf32>
    %239 = arith.mulf %236, %238 : vector<4x512xf32>
    %c16_i32_63 = arith.constant 16 : i32
    %240 = tpu.dynamic_rotate %234 by %c16_i32_63 dim 1 : vector<4x512xf32>, i32 -> vector<4x512xf32>
    %241 = vector.extract_strided_slice %235 {offsets = [1, 0], sizes = [1, 512], strides = [1, 1]} : vector<9x512xf32> to vector<1x512xf32>
    %242 = vector.broadcast %241 : vector<1x512xf32> to vector<4x512xf32>
    %243 = arith.mulf %240, %242 : vector<4x512xf32>
    %c15_i32_64 = arith.constant 15 : i32
    %244 = tpu.dynamic_rotate %234 by %c15_i32_64 dim 1 : vector<4x512xf32>, i32 -> vector<4x512xf32>
    %245 = vector.extract_strided_slice %235 {offsets = [2, 0], sizes = [1, 512], strides = [1, 1]} : vector<9x512xf32> to vector<1x512xf32>
    %246 = vector.broadcast %245 : vector<1x512xf32> to vector<4x512xf32>
    %247 = arith.mulf %244, %246 : vector<4x512xf32>
    %c1_i32_65 = arith.constant 1 : i32
    %248 = tpu.dynamic_rotate %234 by %c1_i32_65 dim 1 : vector<4x512xf32>, i32 -> vector<4x512xf32>
    %249 = vector.extract_strided_slice %235 {offsets = [3, 0], sizes = [1, 512], strides = [1, 1]} : vector<9x512xf32> to vector<1x512xf32>
    %250 = vector.broadcast %249 : vector<1x512xf32> to vector<4x512xf32>
    %251 = arith.mulf %248, %250 : vector<4x512xf32>
    %252 = vector.extract_strided_slice %235 {offsets = [4, 0], sizes = [1, 512], strides = [1, 1]} : vector<9x512xf32> to vector<1x512xf32>
    %253 = vector.broadcast %252 : vector<1x512xf32> to vector<4x512xf32>
    %254 = arith.mulf %234, %253 : vector<4x512xf32>
    %c511_i32_66 = arith.constant 511 : i32
    %255 = tpu.dynamic_rotate %234 by %c511_i32_66 dim 1 : vector<4x512xf32>, i32 -> vector<4x512xf32>
    %256 = vector.extract_strided_slice %235 {offsets = [5, 0], sizes = [1, 512], strides = [1, 1]} : vector<9x512xf32> to vector<1x512xf32>
    %257 = vector.broadcast %256 : vector<1x512xf32> to vector<4x512xf32>
    %258 = arith.mulf %255, %257 : vector<4x512xf32>
    %c497_i32_67 = arith.constant 497 : i32
    %259 = tpu.dynamic_rotate %234 by %c497_i32_67 dim 1 : vector<4x512xf32>, i32 -> vector<4x512xf32>
    %260 = vector.extract_strided_slice %235 {offsets = [6, 0], sizes = [1, 512], strides = [1, 1]} : vector<9x512xf32> to vector<1x512xf32>
    %261 = vector.broadcast %260 : vector<1x512xf32> to vector<4x512xf32>
    %262 = arith.mulf %259, %261 : vector<4x512xf32>
    %c496_i32_68 = arith.constant 496 : i32
    %263 = tpu.dynamic_rotate %234 by %c496_i32_68 dim 1 : vector<4x512xf32>, i32 -> vector<4x512xf32>
    %264 = vector.extract_strided_slice %235 {offsets = [7, 0], sizes = [1, 512], strides = [1, 1]} : vector<9x512xf32> to vector<1x512xf32>
    %265 = vector.broadcast %264 : vector<1x512xf32> to vector<4x512xf32>
    %266 = arith.mulf %263, %265 : vector<4x512xf32>
    %c495_i32_69 = arith.constant 495 : i32
    %267 = tpu.dynamic_rotate %234 by %c495_i32_69 dim 1 : vector<4x512xf32>, i32 -> vector<4x512xf32>
    %268 = vector.extract_strided_slice %235 {offsets = [8, 0], sizes = [1, 512], strides = [1, 1]} : vector<9x512xf32> to vector<1x512xf32>
    %269 = vector.broadcast %268 : vector<1x512xf32> to vector<4x512xf32>
    %270 = arith.mulf %267, %269 : vector<4x512xf32>
    %cst_70 = arith.constant 1.000000e+00 : f32
    %271 = vector.broadcast %cst_70 : f32 to vector<1x512xf32>
    %272 = tpu.concatenate %239, %243, %247, %251, %254, %258, %262, %266, %270, %271 in 0 : vector<4x512xf32>, vector<4x512xf32>, vector<4x512xf32>, vector<4x512xf32>, vector<4x512xf32>, vector<4x512xf32>, vector<4x512xf32>, vector<4x512xf32>, vector<4x512xf32>, vector<1x512xf32> -> vector<37x512xf32>
    %273 = arith.truncf %272 : vector<37x512xf32> to vector<37x512xbf16>
    %c0_71 = arith.constant 0 : index
    %c0_72 = arith.constant 0 : index
    %274 = vector.load %arg8[%c0_71, %c0_72] : memref<4x37xbf16, #tpu.memory_space<vmem>>, vector<4x37xbf16>
    %cst_73 = arith.constant dense<0.000000e+00> : vector<4x512xf32>
    %275 = tpu.matmul %274, %273, %cst_73 {dimension_numbers = #tpu.dot_dimension_numbers<[1], [0], [0], [1], [0, 0, 1, 1], [], []>} : vector<4x37xbf16>, vector<37x512xbf16>, vector<4x512xf32> -> vector<4x512xf32>
    %cst_74 = arith.constant 0.000000e+00 : f32
    %276 = vector.broadcast %cst_74 : f32 to vector<4x512xf32>
    %277 = arith.maximumf %275, %276 : vector<4x512xf32>
    %c0_75 = arith.constant 0 : index
    %c0_76 = arith.constant 0 : index
    %278 = vector.load %arg14[%c0_75, %c0_76] : memref<4x512xf32, #tpu.memory_space<vmem>>, vector<4x512xf32>
    tpu.vector_store %arg14[%c0_75, %c0_76], %277 {strides = array<i32>} : memref<4x512xf32, #tpu.memory_space<vmem>>, vector<4x512xf32>,
    %c0_77 = arith.constant 0 : index
    %c0_78 = arith.constant 0 : index
    %279 = vector.load %arg12[%c0_77, %c0_78] : memref<49x512xf32, #tpu.memory_space<vmem>>, vector<49x512xf32>
    %c51_i32 = arith.constant 51 : i32
    %280 = tpu.dynamic_rotate %277 by %c51_i32 dim 1 : vector<4x512xf32>, i32 -> vector<4x512xf32>
    %281 = vector.extract_strided_slice %279 {offsets = [0, 0], sizes = [1, 512], strides = [1, 1]} : vector<49x512xf32> to vector<1x512xf32>
    %282 = vector.broadcast %281 : vector<1x512xf32> to vector<4x512xf32>
    %283 = arith.mulf %280, %282 : vector<4x512xf32>
    %c50_i32 = arith.constant 50 : i32
    %284 = tpu.dynamic_rotate %277 by %c50_i32 dim 1 : vector<4x512xf32>, i32 -> vector<4x512xf32>
    %285 = vector.extract_strided_slice %279 {offsets = [1, 0], sizes = [1, 512], strides = [1, 1]} : vector<49x512xf32> to vector<1x512xf32>
    %286 = vector.broadcast %285 : vector<1x512xf32> to vector<4x512xf32>
    %287 = arith.mulf %284, %286 : vector<4x512xf32>
    %c49_i32 = arith.constant 49 : i32
    %288 = tpu.dynamic_rotate %277 by %c49_i32 dim 1 : vector<4x512xf32>, i32 -> vector<4x512xf32>
    %289 = vector.extract_strided_slice %279 {offsets = [2, 0], sizes = [1, 512], strides = [1, 1]} : vector<49x512xf32> to vector<1x512xf32>
    %290 = vector.broadcast %289 : vector<1x512xf32> to vector<4x512xf32>
    %291 = arith.mulf %288, %290 : vector<4x512xf32>
    %c48_i32 = arith.constant 48 : i32
    %292 = tpu.dynamic_rotate %277 by %c48_i32 dim 1 : vector<4x512xf32>, i32 -> vector<4x512xf32>
    %293 = vector.extract_strided_slice %279 {offsets = [3, 0], sizes = [1, 512], strides = [1, 1]} : vector<49x512xf32> to vector<1x512xf32>
    %294 = vector.broadcast %293 : vector<1x512xf32> to vector<4x512xf32>
    %295 = arith.mulf %292, %294 : vector<4x512xf32>
    %c47_i32 = arith.constant 47 : i32
    %296 = tpu.dynamic_rotate %277 by %c47_i32 dim 1 : vector<4x512xf32>, i32 -> vector<4x512xf32>
    %297 = vector.extract_strided_slice %279 {offsets = [4, 0], sizes = [1, 512], strides = [1, 1]} : vector<49x512xf32> to vector<1x512xf32>
    %298 = vector.broadcast %297 : vector<1x512xf32> to vector<4x512xf32>
    %299 = arith.mulf %296, %298 : vector<4x512xf32>
    %c46_i32 = arith.constant 46 : i32
    %300 = tpu.dynamic_rotate %277 by %c46_i32 dim 1 : vector<4x512xf32>, i32 -> vector<4x512xf32>
    %301 = vector.extract_strided_slice %279 {offsets = [5, 0], sizes = [1, 512], strides = [1, 1]} : vector<49x512xf32> to vector<1x512xf32>
    %302 = vector.broadcast %301 : vector<1x512xf32> to vector<4x512xf32>
    %303 = arith.mulf %300, %302 : vector<4x512xf32>
    %c45_i32 = arith.constant 45 : i32
    %304 = tpu.dynamic_rotate %277 by %c45_i32 dim 1 : vector<4x512xf32>, i32 -> vector<4x512xf32>
    %305 = vector.extract_strided_slice %279 {offsets = [6, 0], sizes = [1, 512], strides = [1, 1]} : vector<49x512xf32> to vector<1x512xf32>
    %306 = vector.broadcast %305 : vector<1x512xf32> to vector<4x512xf32>
    %307 = arith.mulf %304, %306 : vector<4x512xf32>
    %c35_i32 = arith.constant 35 : i32
    %308 = tpu.dynamic_rotate %277 by %c35_i32 dim 1 : vector<4x512xf32>, i32 -> vector<4x512xf32>
    %309 = vector.extract_strided_slice %279 {offsets = [7, 0], sizes = [1, 512], strides = [1, 1]} : vector<49x512xf32> to vector<1x512xf32>
    %310 = vector.broadcast %309 : vector<1x512xf32> to vector<4x512xf32>
    %311 = arith.mulf %308, %310 : vector<4x512xf32>
    %c34_i32_79 = arith.constant 34 : i32
    %312 = tpu.dynamic_rotate %277 by %c34_i32_79 dim 1 : vector<4x512xf32>, i32 -> vector<4x512xf32>
    %313 = vector.extract_strided_slice %279 {offsets = [8, 0], sizes = [1, 512], strides = [1, 1]} : vector<49x512xf32> to vector<1x512xf32>
    %314 = vector.broadcast %313 : vector<1x512xf32> to vector<4x512xf32>
    %315 = arith.mulf %312, %314 : vector<4x512xf32>
    %c33_i32 = arith.constant 33 : i32
    %316 = tpu.dynamic_rotate %277 by %c33_i32 dim 1 : vector<4x512xf32>, i32 -> vector<4x512xf32>
    %317 = vector.extract_strided_slice %279 {offsets = [9, 0], sizes = [1, 512], strides = [1, 1]} : vector<49x512xf32> to vector<1x512xf32>
    %318 = vector.broadcast %317 : vector<1x512xf32> to vector<4x512xf32>
    %319 = arith.mulf %316, %318 : vector<4x512xf32>
    %c32_i32_80 = arith.constant 32 : i32
    %320 = tpu.dynamic_rotate %277 by %c32_i32_80 dim 1 : vector<4x512xf32>, i32 -> vector<4x512xf32>
    %321 = vector.extract_strided_slice %279 {offsets = [10, 0], sizes = [1, 512], strides = [1, 1]} : vector<49x512xf32> to vector<1x512xf32>
    %322 = vector.broadcast %321 : vector<1x512xf32> to vector<4x512xf32>
    %323 = arith.mulf %320, %322 : vector<4x512xf32>
    %c31_i32 = arith.constant 31 : i32
    %324 = tpu.dynamic_rotate %277 by %c31_i32 dim 1 : vector<4x512xf32>, i32 -> vector<4x512xf32>
    %325 = vector.extract_strided_slice %279 {offsets = [11, 0], sizes = [1, 512], strides = [1, 1]} : vector<49x512xf32> to vector<1x512xf32>
    %326 = vector.broadcast %325 : vector<1x512xf32> to vector<4x512xf32>
    %327 = arith.mulf %324, %326 : vector<4x512xf32>
    %c30_i32_81 = arith.constant 30 : i32
    %328 = tpu.dynamic_rotate %277 by %c30_i32_81 dim 1 : vector<4x512xf32>, i32 -> vector<4x512xf32>
    %329 = vector.extract_strided_slice %279 {offsets = [12, 0], sizes = [1, 512], strides = [1, 1]} : vector<49x512xf32> to vector<1x512xf32>
    %330 = vector.broadcast %329 : vector<1x512xf32> to vector<4x512xf32>
    %331 = arith.mulf %328, %330 : vector<4x512xf32>
    %c29_i32 = arith.constant 29 : i32
    %332 = tpu.dynamic_rotate %277 by %c29_i32 dim 1 : vector<4x512xf32>, i32 -> vector<4x512xf32>
    %333 = vector.extract_strided_slice %279 {offsets = [13, 0], sizes = [1, 512], strides = [1, 1]} : vector<49x512xf32> to vector<1x512xf32>
    %334 = vector.broadcast %333 : vector<1x512xf32> to vector<4x512xf32>
    %335 = arith.mulf %332, %334 : vector<4x512xf32>
    %c19_i32 = arith.constant 19 : i32
    %336 = tpu.dynamic_rotate %277 by %c19_i32 dim 1 : vector<4x512xf32>, i32 -> vector<4x512xf32>
    %337 = vector.extract_strided_slice %279 {offsets = [14, 0], sizes = [1, 512], strides = [1, 1]} : vector<49x512xf32> to vector<1x512xf32>
    %338 = vector.broadcast %337 : vector<1x512xf32> to vector<4x512xf32>
    %339 = arith.mulf %336, %338 : vector<4x512xf32>
    %c18_i32 = arith.constant 18 : i32
    %340 = tpu.dynamic_rotate %277 by %c18_i32 dim 1 : vector<4x512xf32>, i32 -> vector<4x512xf32>
    %341 = vector.extract_strided_slice %279 {offsets = [15, 0], sizes = [1, 512], strides = [1, 1]} : vector<49x512xf32> to vector<1x512xf32>
    %342 = vector.broadcast %341 : vector<1x512xf32> to vector<4x512xf32>
    %343 = arith.mulf %340, %342 : vector<4x512xf32>
    %c17_i32_82 = arith.constant 17 : i32
    %344 = tpu.dynamic_rotate %277 by %c17_i32_82 dim 1 : vector<4x512xf32>, i32 -> vector<4x512xf32>
    %345 = vector.extract_strided_slice %279 {offsets = [16, 0], sizes = [1, 512], strides = [1, 1]} : vector<49x512xf32> to vector<1x512xf32>
    %346 = vector.broadcast %345 : vector<1x512xf32> to vector<4x512xf32>
    %347 = arith.mulf %344, %346 : vector<4x512xf32>
    %c16_i32_83 = arith.constant 16 : i32
    %348 = tpu.dynamic_rotate %277 by %c16_i32_83 dim 1 : vector<4x512xf32>, i32 -> vector<4x512xf32>
    %349 = vector.extract_strided_slice %279 {offsets = [17, 0], sizes = [1, 512], strides = [1, 1]} : vector<49x512xf32> to vector<1x512xf32>
    %350 = vector.broadcast %349 : vector<1x512xf32> to vector<4x512xf32>
    %351 = arith.mulf %348, %350 : vector<4x512xf32>
    %c15_i32_84 = arith.constant 15 : i32
    %352 = tpu.dynamic_rotate %277 by %c15_i32_84 dim 1 : vector<4x512xf32>, i32 -> vector<4x512xf32>
    %353 = vector.extract_strided_slice %279 {offsets = [18, 0], sizes = [1, 512], strides = [1, 1]} : vector<49x512xf32> to vector<1x512xf32>
    %354 = vector.broadcast %353 : vector<1x512xf32> to vector<4x512xf32>
    %355 = arith.mulf %352, %354 : vector<4x512xf32>
    %c14_i32 = arith.constant 14 : i32
    %356 = tpu.dynamic_rotate %277 by %c14_i32 dim 1 : vector<4x512xf32>, i32 -> vector<4x512xf32>
    %357 = vector.extract_strided_slice %279 {offsets = [19, 0], sizes = [1, 512], strides = [1, 1]} : vector<49x512xf32> to vector<1x512xf32>
    %358 = vector.broadcast %357 : vector<1x512xf32> to vector<4x512xf32>
    %359 = arith.mulf %356, %358 : vector<4x512xf32>
    %c13_i32 = arith.constant 13 : i32
    %360 = tpu.dynamic_rotate %277 by %c13_i32 dim 1 : vector<4x512xf32>, i32 -> vector<4x512xf32>
    %361 = vector.extract_strided_slice %279 {offsets = [20, 0], sizes = [1, 512], strides = [1, 1]} : vector<49x512xf32> to vector<1x512xf32>
    %362 = vector.broadcast %361 : vector<1x512xf32> to vector<4x512xf32>
    %363 = arith.mulf %360, %362 : vector<4x512xf32>
    %c3_i32 = arith.constant 3 : i32
    %364 = tpu.dynamic_rotate %277 by %c3_i32 dim 1 : vector<4x512xf32>, i32 -> vector<4x512xf32>
    %365 = vector.extract_strided_slice %279 {offsets = [21, 0], sizes = [1, 512], strides = [1, 1]} : vector<49x512xf32> to vector<1x512xf32>
    %366 = vector.broadcast %365 : vector<1x512xf32> to vector<4x512xf32>
    %367 = arith.mulf %364, %366 : vector<4x512xf32>
    %c2_i32_85 = arith.constant 2 : i32
    %368 = tpu.dynamic_rotate %277 by %c2_i32_85 dim 1 : vector<4x512xf32>, i32 -> vector<4x512xf32>
    %369 = vector.extract_strided_slice %279 {offsets = [22, 0], sizes = [1, 512], strides = [1, 1]} : vector<49x512xf32> to vector<1x512xf32>
    %370 = vector.broadcast %369 : vector<1x512xf32> to vector<4x512xf32>
    %371 = arith.mulf %368, %370 : vector<4x512xf32>
    %c1_i32_86 = arith.constant 1 : i32
    %372 = tpu.dynamic_rotate %277 by %c1_i32_86 dim 1 : vector<4x512xf32>, i32 -> vector<4x512xf32>
    %373 = vector.extract_strided_slice %279 {offsets = [23, 0], sizes = [1, 512], strides = [1, 1]} : vector<49x512xf32> to vector<1x512xf32>
    %374 = vector.broadcast %373 : vector<1x512xf32> to vector<4x512xf32>
    %375 = arith.mulf %372, %374 : vector<4x512xf32>
    %376 = vector.extract_strided_slice %279 {offsets = [24, 0], sizes = [1, 512], strides = [1, 1]} : vector<49x512xf32> to vector<1x512xf32>
    %377 = vector.broadcast %376 : vector<1x512xf32> to vector<4x512xf32>
    %378 = arith.mulf %277, %377 : vector<4x512xf32>
    %c511_i32_87 = arith.constant 511 : i32
    %379 = tpu.dynamic_rotate %277 by %c511_i32_87 dim 1 : vector<4x512xf32>, i32 -> vector<4x512xf32>
    %380 = vector.extract_strided_slice %279 {offsets = [25, 0], sizes = [1, 512], strides = [1, 1]} : vector<49x512xf32> to vector<1x512xf32>
    %381 = vector.broadcast %380 : vector<1x512xf32> to vector<4x512xf32>
    %382 = arith.mulf %379, %381 : vector<4x512xf32>
    %c510_i32_88 = arith.constant 510 : i32
    %383 = tpu.dynamic_rotate %277 by %c510_i32_88 dim 1 : vector<4x512xf32>, i32 -> vector<4x512xf32>
    %384 = vector.extract_strided_slice %279 {offsets = [26, 0], sizes = [1, 512], strides = [1, 1]} : vector<49x512xf32> to vector<1x512xf32>
    %385 = vector.broadcast %384 : vector<1x512xf32> to vector<4x512xf32>
    %386 = arith.mulf %383, %385 : vector<4x512xf32>
    %c509_i32 = arith.constant 509 : i32
    %387 = tpu.dynamic_rotate %277 by %c509_i32 dim 1 : vector<4x512xf32>, i32 -> vector<4x512xf32>
    %388 = vector.extract_strided_slice %279 {offsets = [27, 0], sizes = [1, 512], strides = [1, 1]} : vector<49x512xf32> to vector<1x512xf32>
    %389 = vector.broadcast %388 : vector<1x512xf32> to vector<4x512xf32>
    %390 = arith.mulf %387, %389 : vector<4x512xf32>
    %c499_i32 = arith.constant 499 : i32
    %391 = tpu.dynamic_rotate %277 by %c499_i32 dim 1 : vector<4x512xf32>, i32 -> vector<4x512xf32>
    %392 = vector.extract_strided_slice %279 {offsets = [28, 0], sizes = [1, 512], strides = [1, 1]} : vector<49x512xf32> to vector<1x512xf32>
    %393 = vector.broadcast %392 : vector<1x512xf32> to vector<4x512xf32>
    %394 = arith.mulf %391, %393 : vector<4x512xf32>
    %c498_i32 = arith.constant 498 : i32
    %395 = tpu.dynamic_rotate %277 by %c498_i32 dim 1 : vector<4x512xf32>, i32 -> vector<4x512xf32>
    %396 = vector.extract_strided_slice %279 {offsets = [29, 0], sizes = [1, 512], strides = [1, 1]} : vector<49x512xf32> to vector<1x512xf32>
    %397 = vector.broadcast %396 : vector<1x512xf32> to vector<4x512xf32>
    %398 = arith.mulf %395, %397 : vector<4x512xf32>
    %c497_i32_89 = arith.constant 497 : i32
    %399 = tpu.dynamic_rotate %277 by %c497_i32_89 dim 1 : vector<4x512xf32>, i32 -> vector<4x512xf32>
    %400 = vector.extract_strided_slice %279 {offsets = [30, 0], sizes = [1, 512], strides = [1, 1]} : vector<49x512xf32> to vector<1x512xf32>
    %401 = vector.broadcast %400 : vector<1x512xf32> to vector<4x512xf32>
    %402 = arith.mulf %399, %401 : vector<4x512xf32>
    %c496_i32_90 = arith.constant 496 : i32
    %403 = tpu.dynamic_rotate %277 by %c496_i32_90 dim 1 : vector<4x512xf32>, i32 -> vector<4x512xf32>
    %404 = vector.extract_strided_slice %279 {offsets = [31, 0], sizes = [1, 512], strides = [1, 1]} : vector<49x512xf32> to vector<1x512xf32>
    %405 = vector.broadcast %404 : vector<1x512xf32> to vector<4x512xf32>
    %406 = arith.mulf %403, %405 : vector<4x512xf32>
    %c495_i32_91 = arith.constant 495 : i32
    %407 = tpu.dynamic_rotate %277 by %c495_i32_91 dim 1 : vector<4x512xf32>, i32 -> vector<4x512xf32>
    %408 = vector.extract_strided_slice %279 {offsets = [32, 0], sizes = [1, 512], strides = [1, 1]} : vector<49x512xf32> to vector<1x512xf32>
    %409 = vector.broadcast %408 : vector<1x512xf32> to vector<4x512xf32>
    %410 = arith.mulf %407, %409 : vector<4x512xf32>
    %c494_i32 = arith.constant 494 : i32
    %411 = tpu.dynamic_rotate %277 by %c494_i32 dim 1 : vector<4x512xf32>, i32 -> vector<4x512xf32>
    %412 = vector.extract_strided_slice %279 {offsets = [33, 0], sizes = [1, 512], strides = [1, 1]} : vector<49x512xf32> to vector<1x512xf32>
    %413 = vector.broadcast %412 : vector<1x512xf32> to vector<4x512xf32>
    %414 = arith.mulf %411, %413 : vector<4x512xf32>
    %c493_i32 = arith.constant 493 : i32
    %415 = tpu.dynamic_rotate %277 by %c493_i32 dim 1 : vector<4x512xf32>, i32 -> vector<4x512xf32>
    %416 = vector.extract_strided_slice %279 {offsets = [34, 0], sizes = [1, 512], strides = [1, 1]} : vector<49x512xf32> to vector<1x512xf32>
    %417 = vector.broadcast %416 : vector<1x512xf32> to vector<4x512xf32>
    %418 = arith.mulf %415, %417 : vector<4x512xf32>
    %c483_i32 = arith.constant 483 : i32
    %419 = tpu.dynamic_rotate %277 by %c483_i32 dim 1 : vector<4x512xf32>, i32 -> vector<4x512xf32>
    %420 = vector.extract_strided_slice %279 {offsets = [35, 0], sizes = [1, 512], strides = [1, 1]} : vector<49x512xf32> to vector<1x512xf32>
    %421 = vector.broadcast %420 : vector<1x512xf32> to vector<4x512xf32>
    %422 = arith.mulf %419, %421 : vector<4x512xf32>
    %c482_i32_92 = arith.constant 482 : i32
    %423 = tpu.dynamic_rotate %277 by %c482_i32_92 dim 1 : vector<4x512xf32>, i32 -> vector<4x512xf32>
    %424 = vector.extract_strided_slice %279 {offsets = [36, 0], sizes = [1, 512], strides = [1, 1]} : vector<49x512xf32> to vector<1x512xf32>
    %425 = vector.broadcast %424 : vector<1x512xf32> to vector<4x512xf32>
    %426 = arith.mulf %423, %425 : vector<4x512xf32>
    %c481_i32 = arith.constant 481 : i32
    %427 = tpu.dynamic_rotate %277 by %c481_i32 dim 1 : vector<4x512xf32>, i32 -> vector<4x512xf32>
    %428 = vector.extract_strided_slice %279 {offsets = [37, 0], sizes = [1, 512], strides = [1, 1]} : vector<49x512xf32> to vector<1x512xf32>
    %429 = vector.broadcast %428 : vector<1x512xf32> to vector<4x512xf32>
    %430 = arith.mulf %427, %429 : vector<4x512xf32>
    %c480_i32_93 = arith.constant 480 : i32
    %431 = tpu.dynamic_rotate %277 by %c480_i32_93 dim 1 : vector<4x512xf32>, i32 -> vector<4x512xf32>
    %432 = vector.extract_strided_slice %279 {offsets = [38, 0], sizes = [1, 512], strides = [1, 1]} : vector<49x512xf32> to vector<1x512xf32>
    %433 = vector.broadcast %432 : vector<1x512xf32> to vector<4x512xf32>
    %434 = arith.mulf %431, %433 : vector<4x512xf32>
    %c479_i32 = arith.constant 479 : i32
    %435 = tpu.dynamic_rotate %277 by %c479_i32 dim 1 : vector<4x512xf32>, i32 -> vector<4x512xf32>
    %436 = vector.extract_strided_slice %279 {offsets = [39, 0], sizes = [1, 512], strides = [1, 1]} : vector<49x512xf32> to vector<1x512xf32>
    %437 = vector.broadcast %436 : vector<1x512xf32> to vector<4x512xf32>
    %438 = arith.mulf %435, %437 : vector<4x512xf32>
    %c478_i32_94 = arith.constant 478 : i32
    %439 = tpu.dynamic_rotate %277 by %c478_i32_94 dim 1 : vector<4x512xf32>, i32 -> vector<4x512xf32>
    %440 = vector.extract_strided_slice %279 {offsets = [40, 0], sizes = [1, 512], strides = [1, 1]} : vector<49x512xf32> to vector<1x512xf32>
    %441 = vector.broadcast %440 : vector<1x512xf32> to vector<4x512xf32>
    %442 = arith.mulf %439, %441 : vector<4x512xf32>
    %c477_i32 = arith.constant 477 : i32
    %443 = tpu.dynamic_rotate %277 by %c477_i32 dim 1 : vector<4x512xf32>, i32 -> vector<4x512xf32>
    %444 = vector.extract_strided_slice %279 {offsets = [41, 0], sizes = [1, 512], strides = [1, 1]} : vector<49x512xf32> to vector<1x512xf32>
    %445 = vector.broadcast %444 : vector<1x512xf32> to vector<4x512xf32>
    %446 = arith.mulf %443, %445 : vector<4x512xf32>
    %c467_i32 = arith.constant 467 : i32
    %447 = tpu.dynamic_rotate %277 by %c467_i32 dim 1 : vector<4x512xf32>, i32 -> vector<4x512xf32>
    %448 = vector.extract_strided_slice %279 {offsets = [42, 0], sizes = [1, 512], strides = [1, 1]} : vector<49x512xf32> to vector<1x512xf32>
    %449 = vector.broadcast %448 : vector<1x512xf32> to vector<4x512xf32>
    %450 = arith.mulf %447, %449 : vector<4x512xf32>
    %c466_i32 = arith.constant 466 : i32
    %451 = tpu.dynamic_rotate %277 by %c466_i32 dim 1 : vector<4x512xf32>, i32 -> vector<4x512xf32>
    %452 = vector.extract_strided_slice %279 {offsets = [43, 0], sizes = [1, 512], strides = [1, 1]} : vector<49x512xf32> to vector<1x512xf32>
    %453 = vector.broadcast %452 : vector<1x512xf32> to vector<4x512xf32>
    %454 = arith.mulf %451, %453 : vector<4x512xf32>
    %c465_i32 = arith.constant 465 : i32
    %455 = tpu.dynamic_rotate %277 by %c465_i32 dim 1 : vector<4x512xf32>, i32 -> vector<4x512xf32>
    %456 = vector.extract_strided_slice %279 {offsets = [44, 0], sizes = [1, 512], strides = [1, 1]} : vector<49x512xf32> to vector<1x512xf32>
    %457 = vector.broadcast %456 : vector<1x512xf32> to vector<4x512xf32>
    %458 = arith.mulf %455, %457 : vector<4x512xf32>
    %c464_i32 = arith.constant 464 : i32
    %459 = tpu.dynamic_rotate %277 by %c464_i32 dim 1 : vector<4x512xf32>, i32 -> vector<4x512xf32>
    %460 = vector.extract_strided_slice %279 {offsets = [45, 0], sizes = [1, 512], strides = [1, 1]} : vector<49x512xf32> to vector<1x512xf32>
    %461 = vector.broadcast %460 : vector<1x512xf32> to vector<4x512xf32>
    %462 = arith.mulf %459, %461 : vector<4x512xf32>
    %c463_i32 = arith.constant 463 : i32
    %463 = tpu.dynamic_rotate %277 by %c463_i32 dim 1 : vector<4x512xf32>, i32 -> vector<4x512xf32>
    %464 = vector.extract_strided_slice %279 {offsets = [46, 0], sizes = [1, 512], strides = [1, 1]} : vector<49x512xf32> to vector<1x512xf32>
    %465 = vector.broadcast %464 : vector<1x512xf32> to vector<4x512xf32>
    %466 = arith.mulf %463, %465 : vector<4x512xf32>
    %c462_i32 = arith.constant 462 : i32
    %467 = tpu.dynamic_rotate %277 by %c462_i32 dim 1 : vector<4x512xf32>, i32 -> vector<4x512xf32>
    %468 = vector.extract_strided_slice %279 {offsets = [47, 0], sizes = [1, 512], strides = [1, 1]} : vector<49x512xf32> to vector<1x512xf32>
    %469 = vector.broadcast %468 : vector<1x512xf32> to vector<4x512xf32>
    %470 = arith.mulf %467, %469 : vector<4x512xf32>
    %c461_i32 = arith.constant 461 : i32
    %471 = tpu.dynamic_rotate %277 by %c461_i32 dim 1 : vector<4x512xf32>, i32 -> vector<4x512xf32>
    %472 = vector.extract_strided_slice %279 {offsets = [48, 0], sizes = [1, 512], strides = [1, 1]} : vector<49x512xf32> to vector<1x512xf32>
    %473 = vector.broadcast %472 : vector<1x512xf32> to vector<4x512xf32>
    %474 = arith.mulf %471, %473 : vector<4x512xf32>
    %cst_95 = arith.constant 1.000000e+00 : f32
    %475 = vector.broadcast %cst_95 : f32 to vector<1x512xf32>
    %476 = tpu.concatenate %283, %287, %291, %295, %299, %303, %307, %311, %315, %319, %323, %327, %331, %335, %339, %343 in 0 : vector<4x512xf32>, vector<4x512xf32>, vector<4x512xf32>, vector<4x512xf32>, vector<4x512xf32>, vector<4x512xf32>, vector<4x512xf32>, vector<4x512xf32>, vector<4x512xf32>, vector<4x512xf32>, vector<4x512xf32>, vector<4x512xf32>, vector<4x512xf32>, vector<4x512xf32>, vector<4x512xf32>, vector<4x512xf32> -> vector<64x512xf32>
    %477 = tpu.concatenate %347, %351, %355, %359, %363, %367, %371, %375, %378, %382, %386, %390, %394, %398, %402, %406 in 0 : vector<4x512xf32>, vector<4x512xf32>, vector<4x512xf32>, vector<4x512xf32>, vector<4x512xf32>, vector<4x512xf32>, vector<4x512xf32>, vector<4x512xf32>, vector<4x512xf32>, vector<4x512xf32>, vector<4x512xf32>, vector<4x512xf32>, vector<4x512xf32>, vector<4x512xf32>, vector<4x512xf32>, vector<4x512xf32> -> vector<64x512xf32>
    %478 = tpu.concatenate %410, %414, %418, %422, %426, %430, %434, %438, %442, %446, %450, %454, %458, %462, %466, %470 in 0 : vector<4x512xf32>, vector<4x512xf32>, vector<4x512xf32>, vector<4x512xf32>, vector<4x512xf32>, vector<4x512xf32>, vector<4x512xf32>, vector<4x512xf32>, vector<4x512xf32>, vector<4x512xf32>, vector<4x512xf32>, vector<4x512xf32>, vector<4x512xf32>, vector<4x512xf32>, vector<4x512xf32>, vector<4x512xf32> -> vector<64x512xf32>
    %479 = tpu.concatenate %474, %475 in 0 : vector<4x512xf32>, vector<1x512xf32> -> vector<5x512xf32>
    %480 = tpu.concatenate %476, %477, %478, %479 in 0 : vector<64x512xf32>, vector<64x512xf32>, vector<64x512xf32>, vector<5x512xf32> -> vector<197x512xf32>
    %481 = arith.truncf %480 : vector<197x512xf32> to vector<197x512xbf16>
    %c0_96 = arith.constant 0 : index
    %c0_97 = arith.constant 0 : index
    %482 = vector.load %arg9[%c0_96, %c0_97] : memref<1x197xbf16, #tpu.memory_space<vmem>>, vector<1x197xbf16>
    %cst_98 = arith.constant dense<0.000000e+00> : vector<1x512xf32>
    %483 = tpu.matmul %482, %481, %cst_98 {dimension_numbers = #tpu.dot_dimension_numbers<[1], [0], [0], [1], [0, 0, 1, 1], [], []>} : vector<1x197xbf16>, vector<197x512xbf16>, vector<1x512xf32> -> vector<1x512xf32>
    %c0_99 = arith.constant 0 : index
    %c0_100 = arith.constant 0 : index
    %484 = vector.load %arg15[%c0_99, %c0_100] : memref<1x512xf32, #tpu.memory_space<vmem>>, vector<1x512xf32>
    tpu.vector_store %arg15[%c0_99, %c0_100], %483 {strides = array<i32>} : memref<1x512xf32, #tpu.memory_space<vmem>>, vector<1x512xf32>,
    return
  }
  func.func @transform_0(%arg0: i32) -> (i32, i32) {
    %c0_i32 = arith.constant 0 : i32
    %c0_i32_0 = arith.constant 0 : i32
    %c0_i32_1 = arith.constant 0 : i32
    return %c0_i32, %c0_i32_0 : i32, i32
  }
  func.func @transform_1(%arg0: i32) -> (i32, i32) {
    %c0_i32 = arith.constant 0 : i32
    %c0_i32_0 = arith.constant 0 : i32
    %c0_i32_1 = arith.constant 0 : i32
    return %c0_i32, %c0_i32_0 : i32, i32
  }
  func.func @transform_2(%arg0: i32) -> (i32, i32) {
    %c0_i32 = arith.constant 0 : i32
    %c0_i32_0 = arith.constant 0 : i32
    %c0_i32_1 = arith.constant 0 : i32
    return %c0_i32, %c0_i32_0 : i32, i32
  }
  func.func @transform_3(%arg0: i32) -> (i32, i32) {
    %c0_i32 = arith.constant 0 : i32
    %c0_i32_0 = arith.constant 0 : i32
    %c0_i32_1 = arith.constant 0 : i32
    return %c0_i32, %c0_i32_0 : i32, i32
  }
  func.func @transform_4(%arg0: i32) -> (i32, i32) {
    %c0_i32 = arith.constant 0 : i32
    %c0_i32_0 = arith.constant 0 : i32
    %c0_i32_1 = arith.constant 0 : i32
    return %c0_i32, %c0_i32_0 : i32, i32
  }
  func.func @transform_5(%arg0: i32) -> (i32, i32) {
    %c0_i32 = arith.constant 0 : i32
    %c0_i32_0 = arith.constant 0 : i32
    %c0_i32_1 = arith.constant 0 : i32
    return %c0_i32, %c0_i32_0 : i32, i32
  }
  func.func @transform_6(%arg0: i32) -> (i32, i32) {
    %c0_i32 = arith.constant 0 : i32
    %c0_i32_0 = arith.constant 0 : i32
    %c0_i32_1 = arith.constant 0 : i32
    return %c0_i32, %c0_i32_0 : i32, i32
  }
  func.func @transform_7(%arg0: i32) -> (i32, i32) {
    %c0_i32 = arith.constant 0 : i32
    %c0_i32_0 = arith.constant 0 : i32
    %c0_i32_1 = arith.constant 0 : i32
    return %c0_i32, %c0_i32_0 : i32, i32
  }
  func.func @transform_8(%arg0: i32) -> (i32, i32) {
    %c0_i32 = arith.constant 0 : i32
    %c0_i32_0 = arith.constant 0 : i32
    %c0_i32_1 = arith.constant 0 : i32
    return %c0_i32, %c0_i32_0 : i32, i32
  }
  func.func @transform_9(%arg0: i32) -> (i32, i32) {
    %c0_i32 = arith.constant 0 : i32
    %c0_i32_0 = arith.constant 0 : i32
    %c0_i32_1 = arith.constant 0 : i32
    return %c0_i32, %c0_i32_0 : i32, i32
  }
  func.func @transform_10(%arg0: i32) -> (i32, i32) {
    %c0_i32 = arith.constant 0 : i32
    %c0_i32_0 = arith.constant 0 : i32
    %c0_i32_1 = arith.constant 0 : i32
    return %c0_i32, %c0_i32_0 : i32, i32
  }
  func.func @transform_11(%arg0: i32) -> (i32, i32) {
    %c0_i32 = arith.constant 0 : i32
    %c0_i32_0 = arith.constant 0 : i32
    %c0_i32_1 = arith.constant 0 : i32
    return %c0_i32, %c0_i32_0 : i32, i32
  }
  func.func @transform_12(%arg0: i32) -> (i32, i32) {
    %c0_i32 = arith.constant 0 : i32
    %c0_i32_0 = arith.constant 0 : i32
    %c0_i32_1 = arith.constant 0 : i32
    return %c0_i32, %c0_i32_0 : i32, i32
  }
  func.func @transform_13(%arg0: i32) -> (i32, i32) {
    %c0_i32 = arith.constant 0 : i32
    %c0_i32_0 = arith.constant 0 : i32
    %c0_i32_1 = arith.constant 0 : i32
    return %c0_i32, %c0_i32_0 : i32, i32
  }
  func.func @transform_14(%arg0: i32) -> (i32, i32) {
    %c0_i32 = arith.constant 0 : i32
    %c0_i32_0 = arith.constant 0 : i32
    %c0_i32_1 = arith.constant 0 : i32
    return %c0_i32, %c0_i32_0 : i32, i32
  }
}

</mosaic_0001>

<llo_original>
// kernel: fgrm_forward.1
$region0: #{fgrm_forward.1}
  #allocation0 [shape = 'u32[]', space=smem, size = 0x4, offset = 0x4, fixed_abs, tag = 'smem constant byte address 0x4 - core index']
  #allocation1 [shape = 'u32[144,128]{1,0:T(1,128)}', space=vmem, size = 0x12000, scoped, tag = 'internal scratch']
  %s0 = inlined_call_operand.vmem [shape: f32[8,512], index: 0, kind: input, shape index: {}]
  %s1 = inlined_call_operand.vmem [shape: f32[4,512], index: 1, kind: input, shape index: {}]
  %s2 = inlined_call_operand.vmem [shape: f32[1,512], index: 2, kind: input, shape index: {}]
  %s3 = inlined_call_operand.vmem [shape: bf16[16,73], index: 3, kind: input, shape index: {}]
  %s4 = inlined_call_operand.vmem [shape: bf16[4,37], index: 4, kind: input, shape index: {}]
  %s5 = inlined_call_operand.vmem [shape: bf16[4,37], index: 5, kind: input, shape index: {}]
  %s6 = inlined_call_operand.vmem [shape: bf16[4,37], index: 6, kind: input, shape index: {}]
  %s7 = inlined_call_operand.vmem [shape: bf16[4,37], index: 7, kind: input, shape index: {}]
  %s8 = inlined_call_operand.vmem [shape: bf16[1,197], index: 8, kind: input, shape index: {}]
  %s9 = inlined_call_operand.vmem [shape: f32[9,512], index: 9, kind: input, shape index: {}]
  %s10 = inlined_call_operand.vmem [shape: f32[9,512], index: 10, kind: input, shape index: {}]
  %s11 = inlined_call_operand.vmem [shape: f32[49,512], index: 11, kind: input, shape index: {}]
  %s12 = inlined_call_operand.vmem [shape: f32[4,512], index: 12, kind: input, shape index: {}]
  %s13 = inlined_call_operand.vmem [shape: f32[4,512], index: 13, kind: output, shape index: {0}]
  %s14 = inlined_call_operand.vmem [shape: f32[1,512], index: 14, kind: output, shape index: {1}]
  %15 = xla_tuple %s13, %s14
  %s16 = sld [smem:[#allocation0]]
  $region70: #{fgrm_forward.1} parent=0
    _
  %s18 = ssub.s32 1, %s16
  %s19 = scalar_select 0, %s18, %s16
  // Predicated region
  $region2: #{fgrm_forward.1} parent=0 // pred_check
    _
  $region3: #{fgrm_forward.1} parent=0 // pred_check_branch
    %21 = sbr.rel (0) target = $region5
  $region4: #{fgrm_forward.1} parent=0 // pred_region
    _
  $region5: #{fgrm_forward.1} parent=0 // pred_fallthru
    _
  // Predicated region
  $region6: #{fgrm_forward.1} parent=0 // pred_check
    _
  $region7: #{fgrm_forward.1} parent=0 // pred_check_branch
    %23 = sbr.rel (0) target = $region9
  $region8: #{fgrm_forward.1} parent=0 // pred_region
    _
  $region9: #{fgrm_forward.1} parent=0 // pred_fallthru
    _
  // Predicated region
  $region10: #{fgrm_forward.1} parent=0 // pred_check
    _
  $region11: #{fgrm_forward.1} parent=0 // pred_check_branch
    %25 = sbr.rel (0) target = $region13
  $region12: #{fgrm_forward.1} parent=0 // pred_region
    _
  $region13: #{fgrm_forward.1} parent=0 // pred_fallthru
    _
  // Predicated region
  $region14: #{fgrm_forward.1} parent=0 // pred_check
    _
  $region15: #{fgrm_forward.1} parent=0 // pred_check_branch
    %27 = sbr.rel (0) target = $region17
  $region16: #{fgrm_forward.1} parent=0 // pred_region
    _
  $region17: #{fgrm_forward.1} parent=0 // pred_fallthru
    _
  // Predicated region
  $region18: #{fgrm_forward.1} parent=0 // pred_check
    _
  $region19: #{fgrm_forward.1} parent=0 // pred_check_branch
    %29 = sbr.rel (0) target = $region21
  $region20: #{fgrm_forward.1} parent=0 // pred_region
    _
  $region21: #{fgrm_forward.1} parent=0 // pred_fallthru
    _
  // Predicated region
  $region22: #{fgrm_forward.1} parent=0 // pred_check
    _
  $region23: #{fgrm_forward.1} parent=0 // pred_check_branch
    %31 = sbr.rel (0) target = $region25
  $region24: #{fgrm_forward.1} parent=0 // pred_region
    _
  $region25: #{fgrm_forward.1} parent=0 // pred_fallthru
    _
  // Predicated region
  $region26: #{fgrm_forward.1} parent=0 // pred_check
    _
  $region27: #{fgrm_forward.1} parent=0 // pred_check_branch
    %33 = sbr.rel (0) target = $region29
  $region28: #{fgrm_forward.1} parent=0 // pred_region
    _
  $region29: #{fgrm_forward.1} parent=0 // pred_fallthru
    _
  // Predicated region
  $region30: #{fgrm_forward.1} parent=0 // pred_check
    _
  $region31: #{fgrm_forward.1} parent=0 // pred_check_branch
    %35 = sbr.rel (0) target = $region33
  $region32: #{fgrm_forward.1} parent=0 // pred_region
    _
  $region33: #{fgrm_forward.1} parent=0 // pred_fallthru
    _
  // Predicated region
  $region34: #{fgrm_forward.1} parent=0 // pred_check
    _
  $region35: #{fgrm_forward.1} parent=0 // pred_check_branch
    %37 = sbr.rel (0) target = $region37
  $region36: #{fgrm_forward.1} parent=0 // pred_region
    _
  $region37: #{fgrm_forward.1} parent=0 // pred_fallthru
    _
  // Predicated region
  $region38: #{fgrm_forward.1} parent=0 // pred_check
    _
  $region39: #{fgrm_forward.1} parent=0 // pred_check_branch
    %39 = sbr.rel (0) target = $region41
  $region40: #{fgrm_forward.1} parent=0 // pred_region
    _
  $region41: #{fgrm_forward.1} parent=0 // pred_fallthru
    _
  // Predicated region
  $region42: #{fgrm_forward.1} parent=0 // pred_check
    _
  $region43: #{fgrm_forward.1} parent=0 // pred_check_branch
    %41 = sbr.rel (0) target = $region45
  $region44: #{fgrm_forward.1} parent=0 // pred_region
    _
  $region45: #{fgrm_forward.1} parent=0 // pred_fallthru
    _
  // Predicated region
  $region46: #{fgrm_forward.1} parent=0 // pred_check
    _
  $region47: #{fgrm_forward.1} parent=0 // pred_check_branch
    %43 = sbr.rel (0) target = $region49
  $region48: #{fgrm_forward.1} parent=0 // pred_region
    _
  $region49: #{fgrm_forward.1} parent=0 // pred_fallthru
    _
  // Predicated region
  $region50: #{fgrm_forward.1} parent=0 // pred_check
    _
  $region51: #{fgrm_forward.1} parent=0 // pred_check_branch
    %45 = sbr.rel (0) target = $region53
  $region52: #{fgrm_forward.1} parent=0 // pred_region
    _
  $region53: #{fgrm_forward.1} parent=0 // pred_fallthru
    _
  %v47 = vld [vmem:[%s0] sm:$0xff]
  %v48 = vld [vmem:[%s0 + $0x8] sm:$0xff]
  %v49 = vld [vmem:[%s0 + $0x10] sm:$0xff]
  %v50 = vld [vmem:[%s0 + $0x18] sm:$0xff]
  %v51 = vld [vmem:[%s9] sm:$0xff]
  %v52 = vld [vmem:[%s9 + $0x8] sm:$0xff]
  %v53 = vld [vmem:[%s9 + $0x10] sm:$0xff]
  %v54 = vld [vmem:[%s9 + $0x18] sm:$0xff]
  %v55 = vld [vmem:[%s9 + $0x20] sm:$0x1]
  %v56 = vld [vmem:[%s9 + $0x28] sm:$0x1]
  %v57 = vld [vmem:[%s9 + $0x30] sm:$0x1]
  %v58 = vld [vmem:[%s9 + $0x38] sm:$0x1]
  %59 = vrot.lane.b32.xlu0 %v47, 34
  %v60 = vpop.permute.xlu0 %59
  %61 = vrot.lane.b32.xlu0 %v48, 34
  %v62 = vpop.permute.xlu0 %61
  %63 = vrot.lane.b32.xlu0 %v49, 34
  %v64 = vpop.permute.xlu0 %63
  %65 = vrot.lane.b32.xlu0 %v50, 34
  %v66 = vpop.permute.xlu0 %65
  %v67 = vlaneseq
  %v68 = vand.u32 %v67, 127
  %vm69 = vcmp.lt.s32.totalorder %v68, 34
  %v70 = vsel %vm69, %v64, %v66
  %v71 = vsel %vm69, %v62, %v64
  %v72 = vsel %vm69, %v60, %v62
  %v73 = vsel %vm69, %v66, %v60
  %v74 = vlaneseq
  %v75 = vshrl.u32 %v74, 7
  %v76 = vsub.s32 0, %v75
  %v77 = vrot.slane %v51, %v76
  %v78 = vlaneseq
  %v79 = vshrl.u32 %v78, 7
  %v80 = vsub.s32 0, %v79
  %v81 = vrot.slane %v52, %v80
  %v82 = vlaneseq
  %v83 = vshrl.u32 %v82, 7
  %v84 = vsub.s32 0, %v83
  %v85 = vrot.slane %v53, %v84
  %v86 = vlaneseq
  %v87 = vshrl.u32 %v86, 7
  %v88 = vsub.s32 0, %v87
  %v89 = vrot.slane %v54, %v88
  %v90 = vmul.f32 %v73, %v77
  %v91 = vmul.f32 %v72, %v81
  %v92 = vmul.f32 %v71, %v85
  %v93 = vmul.f32 %v70, %v89
  %94 = vrot.lane.b32.xlu0 %v47, 32
  %v95 = vpop.permute.xlu0 %94
  %96 = vrot.lane.b32.xlu0 %v48, 32
  %v97 = vpop.permute.xlu0 %96
  %98 = vrot.lane.b32.xlu0 %v49, 32
  %v99 = vpop.permute.xlu0 %98
  %100 = vrot.lane.b32.xlu0 %v50, 32
  %v101 = vpop.permute.xlu0 %100
  %vm102 = vcmp.lt.s32.totalorder %v68, 32
  %v103 = vsel %vm102, %v99, %v101
  %v104 = vsel %vm102, %v97, %v99
  %v105 = vsel %vm102, %v95, %v97
  %v106 = vsel %vm102, %v101, %v95
  %v107 = vlaneseq
  %v108 = vshrl.u32 %v107, 7
  %v109 = vsub.s32 1, %v108
  %v110 = vrot.slane %v51, %v109
  %v111 = vlaneseq
  %v112 = vshrl.u32 %v111, 7
  %v113 = vsub.s32 1, %v112
  %v114 = vrot.slane %v52, %v113
  %v115 = vlaneseq
  %v116 = vshrl.u32 %v115, 7
  %v117 = vsub.s32 1, %v116
  %v118 = vrot.slane %v53, %v117
  %v119 = vlaneseq
  %v120 = vshrl.u32 %v119, 7
  %v121 = vsub.s32 1, %v120
  %v122 = vrot.slane %v54, %v121
  %v123 = vmul.f32 %v106, %v110
  %v124 = vmul.f32 %v105, %v114
  %v125 = vmul.f32 %v104, %v118
  %v126 = vmul.f32 %v103, %v122
  %127 = vrot.lane.b32.xlu0 %v47, 30
  %v128 = vpop.permute.xlu0 %127
  %129 = vrot.lane.b32.xlu0 %v48, 30
  %v130 = vpop.permute.xlu0 %129
  %131 = vrot.lane.b32.xlu0 %v49, 30
  %v132 = vpop.permute.xlu0 %131
  %133 = vrot.lane.b32.xlu0 %v50, 30
  %v134 = vpop.permute.xlu0 %133
  %vm135 = vcmp.lt.s32.totalorder %v68, 30
  %v136 = vsel %vm135, %v132, %v134
  %v137 = vsel %vm135, %v130, %v132
  %v138 = vsel %vm135, %v128, %v130
  %v139 = vsel %vm135, %v134, %v128
  %v140 = vlaneseq
  %v141 = vshrl.u32 %v140, 7
  %v142 = vsub.s32 2, %v141
  %v143 = vrot.slane %v51, %v142
  %v144 = vlaneseq
  %v145 = vshrl.u32 %v144, 7
  %v146 = vsub.s32 2, %v145
  %v147 = vrot.slane %v52, %v146
  %v148 = vlaneseq
  %v149 = vshrl.u32 %v148, 7
  %v150 = vsub.s32 2, %v149
  %v151 = vrot.slane %v53, %v150
  %v152 = vlaneseq
  %v153 = vshrl.u32 %v152, 7
  %v154 = vsub.s32 2, %v153
  %v155 = vrot.slane %v54, %v154
  %v156 = vmul.f32 %v139, %v143
  %v157 = vmul.f32 %v138, %v147
  %v158 = vmul.f32 %v137, %v151
  %v159 = vmul.f32 %v136, %v155
  %160 = vrot.lane.b32.xlu0 %v47, 2
  %v161 = vpop.permute.xlu0 %160
  %162 = vrot.lane.b32.xlu0 %v48, 2
  %v163 = vpop.permute.xlu0 %162
  %164 = vrot.lane.b32.xlu0 %v49, 2
  %v165 = vpop.permute.xlu0 %164
  %166 = vrot.lane.b32.xlu0 %v50, 2
  %v167 = vpop.permute.xlu0 %166
  %vm168 = vcmp.lt.s32.totalorder %v68, 2
  %v169 = vsel %vm168, %v165, %v167
  %v170 = vsel %vm168, %v163, %v165
  %v171 = vsel %vm168, %v161, %v163
  %v172 = vsel %vm168, %v167, %v161
  %v173 = vlaneseq
  %v174 = vshrl.u32 %v173, 7
  %v175 = vsub.s32 3, %v174
  %v176 = vrot.slane %v51, %v175
  %v177 = vlaneseq
  %v178 = vshrl.u32 %v177, 7
  %v179 = vsub.s32 3, %v178
  %v180 = vrot.slane %v52, %v179
  %v181 = vlaneseq
  %v182 = vshrl.u32 %v181, 7
  %v183 = vsub.s32 3, %v182
  %v184 = vrot.slane %v53, %v183
  %v185 = vlaneseq
  %v186 = vshrl.u32 %v185, 7
  %v187 = vsub.s32 3, %v186
  %v188 = vrot.slane %v54, %v187
  %v189 = vmul.f32 %v172, %v176
  %v190 = vmul.f32 %v171, %v180
  %v191 = vmul.f32 %v170, %v184
  %v192 = vmul.f32 %v169, %v188
  %v193 = vlaneseq
  %v194 = vshrl.u32 %v193, 7
  %v195 = vsub.s32 4, %v194
  %v196 = vrot.slane %v51, %v195
  %v197 = vlaneseq
  %v198 = vshrl.u32 %v197, 7
  %v199 = vsub.s32 4, %v198
  %v200 = vrot.slane %v52, %v199
  %v201 = vlaneseq
  %v202 = vshrl.u32 %v201, 7
  %v203 = vsub.s32 4, %v202
  %v204 = vrot.slane %v53, %v203
  %v205 = vlaneseq
  %v206 = vshrl.u32 %v205, 7
  %v207 = vsub.s32 4, %v206
  %v208 = vrot.slane %v54, %v207
  %v209 = vmul.f32 %v47, %v196
  %v210 = vmul.f32 %v48, %v200
  %v211 = vmul.f32 %v49, %v204
  %v212 = vmul.f32 %v50, %v208
  %213 = vrot.lane.b32.xlu0 %v47, 126
  %v214 = vpop.permute.xlu0 %213
  %215 = vrot.lane.b32.xlu0 %v48, 126
  %v216 = vpop.permute.xlu0 %215
  %217 = vrot.lane.b32.xlu0 %v49, 126
  %v218 = vpop.permute.xlu0 %217
  %219 = vrot.lane.b32.xlu0 %v50, 126
  %v220 = vpop.permute.xlu0 %219
  %vm221 = vcmp.lt.s32.totalorder %v68, 126
  %v222 = vsel %vm221, %v218, %v220
  %v223 = vsel %vm221, %v216, %v218
  %v224 = vsel %vm221, %v214, %v216
  %v225 = vsel %vm221, %v220, %v214
  %v226 = vlaneseq
  %v227 = vshrl.u32 %v226, 7
  %v228 = vsub.s32 5, %v227
  %v229 = vrot.slane %v51, %v228
  %v230 = vlaneseq
  %v231 = vshrl.u32 %v230, 7
  %v232 = vsub.s32 5, %v231
  %v233 = vrot.slane %v52, %v232
  %v234 = vlaneseq
  %v235 = vshrl.u32 %v234, 7
  %v236 = vsub.s32 5, %v235
  %v237 = vrot.slane %v53, %v236
  %v238 = vlaneseq
  %v239 = vshrl.u32 %v238, 7
  %v240 = vsub.s32 5, %v239
  %v241 = vrot.slane %v54, %v240
  %v242 = vmul.f32 %v224, %v229
  %v243 = vmul.f32 %v223, %v233
  %v244 = vmul.f32 %v222, %v237
  %v245 = vmul.f32 %v225, %v241
  %246 = vrot.lane.b32.xlu0 %v47, 98
  %v247 = vpop.permute.xlu0 %246
  %248 = vrot.lane.b32.xlu0 %v48, 98
  %v249 = vpop.permute.xlu0 %248
  %250 = vrot.lane.b32.xlu0 %v49, 98
  %v251 = vpop.permute.xlu0 %250
  %252 = vrot.lane.b32.xlu0 %v50, 98
  %v253 = vpop.permute.xlu0 %252
  %vm254 = vcmp.lt.s32.totalorder %v68, 98
  %v255 = vsel %vm254, %v251, %v253
  %v256 = vsel %vm254, %v249, %v251
  %v257 = vsel %vm254, %v247, %v249
  %v258 = vsel %vm254, %v253, %v247
  %v259 = vlaneseq
  %v260 = vshrl.u32 %v259, 7
  %v261 = vsub.s32 6, %v260
  %v262 = vrot.slane %v51, %v261
  %v263 = vlaneseq
  %v264 = vshrl.u32 %v263, 7
  %v265 = vsub.s32 6, %v264
  %v266 = vrot.slane %v52, %v265
  %v267 = vlaneseq
  %v268 = vshrl.u32 %v267, 7
  %v269 = vsub.s32 6, %v268
  %v270 = vrot.slane %v53, %v269
  %v271 = vlaneseq
  %v272 = vshrl.u32 %v271, 7
  %v273 = vsub.s32 6, %v272
  %v274 = vrot.slane %v54, %v273
  %v275 = vmul.f32 %v257, %v262
  %v276 = vmul.f32 %v256, %v266
  %v277 = vmul.f32 %v255, %v270
  %v278 = vmul.f32 %v258, %v274
  %279 = vrot.lane.b32.xlu0 %v47, 96
  %v280 = vpop.permute.xlu0 %279
  %281 = vrot.lane.b32.xlu0 %v48, 96
  %v282 = vpop.permute.xlu0 %281
  %283 = vrot.lane.b32.xlu0 %v49, 96
  %v284 = vpop.permute.xlu0 %283
  %285 = vrot.lane.b32.xlu0 %v50, 96
  %v286 = vpop.permute.xlu0 %285
  %vm287 = vcmp.lt.s32.totalorder %v68, 96
  %v288 = vsel %vm287, %v284, %v286
  %v289 = vsel %vm287, %v282, %v284
  %v290 = vsel %vm287, %v280, %v282
  %v291 = vsel %vm287, %v286, %v280
  %v292 = vlaneseq
  %v293 = vshrl.u32 %v292, 7
  %v294 = vsub.s32 7, %v293
  %v295 = vrot.slane %v51, %v294
  %v296 = vlaneseq
  %v297 = vshrl.u32 %v296, 7
  %v298 = vsub.s32 7, %v297
  %v299 = vrot.slane %v52, %v298
  %v300 = vlaneseq
  %v301 = vshrl.u32 %v300, 7
  %v302 = vsub.s32 7, %v301
  %v303 = vrot.slane %v53, %v302
  %v304 = vlaneseq
  %v305 = vshrl.u32 %v304, 7
  %v306 = vsub.s32 7, %v305
  %v307 = vrot.slane %v54, %v306
  %v308 = vmul.f32 %v290, %v295
  %v309 = vmul.f32 %v289, %v299
  %v310 = vmul.f32 %v288, %v303
  %v311 = vmul.f32 %v291, %v307
  %312 = vrot.lane.b32.xlu0 %v47, 94
  %v313 = vpop.permute.xlu0 %312
  %314 = vrot.lane.b32.xlu0 %v48, 94
  %v315 = vpop.permute.xlu0 %314
  %316 = vrot.lane.b32.xlu0 %v49, 94
  %v317 = vpop.permute.xlu0 %316
  %318 = vrot.lane.b32.xlu0 %v50, 94
  %v319 = vpop.permute.xlu0 %318
  %vm320 = vcmp.lt.s32.totalorder %v68, 94
  %v321 = vsel %vm320, %v317, %v319
  %v322 = vsel %vm320, %v315, %v317
  %v323 = vsel %vm320, %v313, %v315
  %v324 = vsel %vm320, %v319, %v313
  %v325 = vlaneseq
  %v326 = vshrl.u32 %v325, 7
  %v327 = vsub.s32 0, %v326
  %v328 = vrot.slane %v55, %v327
  %v329 = vlaneseq
  %v330 = vshrl.u32 %v329, 7
  %v331 = vsub.s32 0, %v330
  %v332 = vrot.slane %v56, %v331
  %v333 = vlaneseq
  %v334 = vshrl.u32 %v333, 7
  %v335 = vsub.s32 0, %v334
  %v336 = vrot.slane %v57, %v335
  %v337 = vlaneseq
  %v338 = vshrl.u32 %v337, 7
  %v339 = vsub.s32 0, %v338
  %v340 = vrot.slane %v58, %v339
  %v341 = vmul.f32 %v323, %v328
  %v342 = vmul.f32 %v322, %v332
  %v343 = vmul.f32 %v321, %v336
  %v344 = vmul.f32 %v324, %v340
  %v345 = vpack.c.bf16 %v123, %v90
  %v346 = vpack.c.bf16 %v124, %v91
  %v347 = vpack.c.bf16 %v125, %v92
  %v348 = vpack.c.bf16 %v126, %v93
  %v349 = vpack.c.bf16 %v189, %v156
  %v350 = vpack.c.bf16 %v190, %v157
  %v351 = vpack.c.bf16 %v191, %v158
  %v352 = vpack.c.bf16 %v192, %v159
  %v353 = vpack.c.bf16 %v242, %v209
  %v354 = vpack.c.bf16 %v243, %v210
  %v355 = vpack.c.bf16 %v244, %v211
  %v356 = vpack.c.bf16 %v245, %v212
  %v357 = vpack.c.bf16 %v308, %v275
  %v358 = vpack.c.bf16 %v309, %v276
  %v359 = vpack.c.bf16 %v310, %v277
  %v360 = vpack.c.bf16 %v311, %v278
  %v361 = vpack.c.bf16 1.0, %v341
  %v362 = vpack.c.bf16 1.0, %v342
  %v363 = vpack.c.bf16 1.0, %v343
  %v364 = vpack.c.bf16 1.0, %v344
  %v365 = vld [vmem:[%s3] sm:$0xf]
  %v366 = vld [vmem:[%s3 + $0x4] sm:$0xf]
  %v369 = vunpack.c.l.b16 %v365
  %v370 = vunpack.c.l.b16 %v366
  %v371 = vpack.c.b16 %v370, %v369
  %vm372 = vcmask 596992
  %v374 = vsel %vm372, %v371, 0
  %vm376 = vcmask 1043456
  %vm377 = vcmask 1044480
  %v378 = vsel %vm376, 4294967295, 65535
  %v379 = vsel %vm377, %v378, 0
  %v381 = vand.u32 %v361, %v379
  %v384 = vand.u32 %v362, %v379
  %v387 = vand.u32 %v363, %v379
  %v390 = vand.u32 %v364, %v379
  %392 = vmatprep.subr.bf16.mxu0 %v346
  %393 = vmatpush1.bf16.msra.mxu0 %v345
  %394 = vmatprep.subr.bf16.mxu0 %v350
  %395 = vmatpush1.bf16.msra.mxu0 %v349
  %396 = vmatprep.subr.bf16.mxu0 %v354
  %397 = vmatpush1.bf16.msra.mxu0 %v353
  %398 = vmatprep.subr.bf16.mxu0 %v358
  %399 = vmatpush1.bf16.msra.mxu0 %v357
  %400 = vmatprep.subr.bf16.mxu0 %v384
  %401 = vmatpush1.bf16.msra.mxu0 %v381
  %402 = vmatprep.subr.bf16.mxu0 0
  %403 = vmatpush1.bf16.msra.mxu0 0
  %404 = vmatprep.subr.bf16.mxu0 0
  %405 = vmatpush1.bf16.msra.mxu0 0
  %406 = vmatprep.subr.bf16.mxu0 0
  %407 = vmatpush1.bf16.msra.mxu0 0
  %408 = vmatprep.subr.bf16.mxu0 0
  %409 = vmatpush1.bf16.msra.mxu0 0
  %410 = vmatprep.subr.bf16.mxu0 0
  %411 = vmatpush1.bf16.msra.mxu0 0
  %412 = vmatprep.subr.bf16.mxu0 0
  %413 = vmatpush1.bf16.msra.mxu0 0
  %414 = vmatprep.subr.bf16.mxu0 0
  %415 = vmatpush1.bf16.msra.mxu0 0
  %416 = vmatprep.subr.bf16.mxu0 0
  %417 = vmatpush1.bf16.msra.mxu0 0
  %418 = vmatprep.subr.bf16.mxu0 0
  %419 = vmatpush1.bf16.msra.mxu0 0
  %420 = vmatprep.subr.bf16.mxu0 0
  %421 = vmatpush1.bf16.msra.mxu0 0
  %422 = vmatprep.subr.bf16.mxu0 0
  %423 = vmatpush1.bf16.msra.mxu0 0
  %424 = vmatprep.mubr.bf16.mxu0 0
  %425 = vmatmul.mubr.bf16.gmra.mrb[0].mxu0 %v374
  %v426 = vpop.f32.mrb[0].mxu0
  %v427 = vadd.f32 0.0, %v426
  %v428 = vpop.f32.mrb[0].mxu0
  %v429 = vadd.f32 0.0, %v428
  %v430 = vpop.f32.mrb[0].mxu0
  %v431 = vadd.f32 0.0, %v430
  %v432 = vpop.f32.mrb[0].mxu0
  %v433 = vadd.f32 0.0, %v432
  %434 = vdwg.mxu0
  %435 = vmatprep.subr.bf16.mxu0 %v348
  %436 = vmatpush1.bf16.msra.mxu0 %v347
  %437 = vmatprep.subr.bf16.mxu0 %v352
  %438 = vmatpush1.bf16.msra.mxu0 %v351
  %439 = vmatprep.subr.bf16.mxu0 %v356
  %440 = vmatpush1.bf16.msra.mxu0 %v355
  %441 = vmatprep.subr.bf16.mxu0 %v360
  %442 = vmatpush1.bf16.msra.mxu0 %v359
  %443 = vmatprep.subr.bf16.mxu0 %v390
  %444 = vmatpush1.bf16.msra.mxu0 %v387
  %445 = vmatprep.subr.bf16.mxu0 0
  %446 = vmatpush1.bf16.msra.mxu0 0
  %447 = vmatprep.subr.bf16.mxu0 0
  %448 = vmatpush1.bf16.msra.mxu0 0
  %449 = vmatprep.subr.bf16.mxu0 0
  %450 = vmatpush1.bf16.msra.mxu0 0
  %451 = vmatprep.subr.bf16.mxu0 0
  %452 = vmatpush1.bf16.msra.mxu0 0
  %453 = vmatprep.subr.bf16.mxu0 0
  %454 = vmatpush1.bf16.msra.mxu0 0
  %455 = vmatprep.subr.bf16.mxu0 0
  %456 = vmatpush1.bf16.msra.mxu0 0
  %457 = vmatprep.subr.bf16.mxu0 0
  %458 = vmatpush1.bf16.msra.mxu0 0
  %459 = vmatprep.subr.bf16.mxu0 0
  %460 = vmatpush1.bf16.msra.mxu0 0
  %461 = vmatprep.subr.bf16.mxu0 0
  %462 = vmatpush1.bf16.msra.mxu0 0
  %463 = vmatprep.subr.bf16.mxu0 0
  %464 = vmatpush1.bf16.msra.mxu0 0
  %465 = vmatprep.subr.bf16.mxu0 0
  %466 = vmatpush1.bf16.msra.mxu0 0
  %467 = vmatprep.mubr.bf16.mxu0 0
  %468 = vmatmul.mubr.bf16.gmra.mrb[0].mxu0 %v374
  %v469 = vpop.f32.mrb[0].mxu0
  %v470 = vadd.f32 0.0, %v469
  %v471 = vpop.f32.mrb[0].mxu0
  %v472 = vadd.f32 0.0, %v471
  %v473 = vpop.f32.mrb[0].mxu0
  %v474 = vadd.f32 0.0, %v473
  %v475 = vpop.f32.mrb[0].mxu0
  %v476 = vadd.f32 0.0, %v475
  %477 = vdwg.mxu0
  %v478 = vld [vmem:[%s12] sm:$0xff]
  %v479 = vld [vmem:[%s12 + $0x8] sm:$0xff]
  %v482 = vlaneseq
  %v483 = vshrl.u32 %v482, 7
  %v484 = vsub.s32 0, %v483
  %v485 = vrot.slane %v478, %v484
  %v486 = vlaneseq
  %v487 = vshrl.u32 %v486, 7
  %v488 = vsub.s32 4, %v487
  %v489 = vrot.slane %v478, %v488
  %v490 = vlaneseq
  %v491 = vshrl.u32 %v490, 7
  %v492 = vsub.s32 0, %v491
  %v493 = vrot.slane %v479, %v492
  %v494 = vlaneseq
  %v495 = vshrl.u32 %v494, 7
  %v496 = vsub.s32 4, %v495
  %v497 = vrot.slane %v479, %v496
  %v502 = vlaneseq
  %v503 = vshrl.u32 %v502, 7
  %v504 = vsub.s32 0, %v503
  %v505 = vrot.slane %v485, %v504
  %v506 = vlaneseq
  %v507 = vshrl.u32 %v506, 7
  %v508 = vsub.s32 0, %v507
  %v509 = vrot.slane %v489, %v508
  %v510 = vlaneseq
  %v511 = vshrl.u32 %v510, 7
  %v512 = vsub.s32 0, %v511
  %v513 = vrot.slane %v493, %v512
  %v514 = vlaneseq
  %v515 = vshrl.u32 %v514, 7
  %v516 = vsub.s32 0, %v515
  %v517 = vrot.slane %v497, %v516
  %v518 = vmul.f32 %v505, %v427
  %v519 = vmul.f32 %v509, %v429
  %v520 = vmul.f32 %v513, %v470
  %v521 = vmul.f32 %v517, %v472
  %v522 = vlaneseq
  %v523 = vshrl.u32 %v522, 7
  %v524 = vsub.s32 1, %v523
  %v525 = vrot.slane %v478, %v524
  %v526 = vlaneseq
  %v527 = vshrl.u32 %v526, 7
  %v528 = vsub.s32 5, %v527
  %v529 = vrot.slane %v478, %v528
  %v530 = vlaneseq
  %v531 = vshrl.u32 %v530, 7
  %v532 = vsub.s32 1, %v531
  %v533 = vrot.slane %v479, %v532
  %v534 = vlaneseq
  %v535 = vshrl.u32 %v534, 7
  %v536 = vsub.s32 5, %v535
  %v537 = vrot.slane %v479, %v536
  %v542 = vlaneseq
  %v543 = vshrl.u32 %v542, 7
  %v544 = vsub.s32 1, %v543
  %v545 = vrot.slane %v525, %v544
  %v546 = vlaneseq
  %v547 = vshrl.u32 %v546, 7
  %v548 = vsub.s32 1, %v547
  %v549 = vrot.slane %v529, %v548
  %v550 = vlaneseq
  %v551 = vshrl.u32 %v550, 7
  %v552 = vsub.s32 1, %v551
  %v553 = vrot.slane %v533, %v552
  %v554 = vlaneseq
  %v555 = vshrl.u32 %v554, 7
  %v556 = vsub.s32 1, %v555
  %v557 = vrot.slane %v537, %v556
  %v558 = vmul.f32 %v545, %v427
  %v559 = vmul.f32 %v549, %v429
  %v560 = vmul.f32 %v553, %v470
  %v561 = vmul.f32 %v557, %v472
  %v566 = vrot.slane %v558, 4
  %v567 = vrot.slane %v559, 4
  %v568 = vrot.slane %v560, 4
  %v569 = vrot.slane %v561, 4
  %v574 = vadd.f32 %v518, %v566
  %v575 = vadd.f32 %v519, %v567
  %v576 = vadd.f32 %v520, %v568
  %v577 = vadd.f32 %v521, %v569
  %v578 = vlaneseq
  %v579 = vshrl.u32 %v578, 7
  %v580 = vsub.s32 2, %v579
  %v581 = vrot.slane %v478, %v580
  %v582 = vlaneseq
  %v583 = vshrl.u32 %v582, 7
  %v584 = vsub.s32 6, %v583
  %v585 = vrot.slane %v478, %v584
  %v586 = vlaneseq
  %v587 = vshrl.u32 %v586, 7
  %v588 = vsub.s32 2, %v587
  %v589 = vrot.slane %v479, %v588
  %v590 = vlaneseq
  %v591 = vshrl.u32 %v590, 7
  %v592 = vsub.s32 6, %v591
  %v593 = vrot.slane %v479, %v592
  %v598 = vlaneseq
  %v599 = vshrl.u32 %v598, 7
  %v600 = vsub.s32 2, %v599
  %v601 = vrot.slane %v581, %v600
  %v602 = vlaneseq
  %v603 = vshrl.u32 %v602, 7
  %v604 = vsub.s32 2, %v603
  %v605 = vrot.slane %v585, %v604
  %v606 = vlaneseq
  %v607 = vshrl.u32 %v606, 7
  %v608 = vsub.s32 2, %v607
  %v609 = vrot.slane %v589, %v608
  %v610 = vlaneseq
  %v611 = vshrl.u32 %v610, 7
  %v612 = vsub.s32 2, %v611
  %v613 = vrot.slane %v593, %v612
  %v614 = vmul.f32 %v601, %v431
  %v615 = vmul.f32 %v605, %v433
  %v616 = vmul.f32 %v609, %v474
  %v617 = vmul.f32 %v613, %v476
  %v618 = vadd.f32 %v574, %v614
  %v619 = vadd.f32 %v575, %v615
  %v620 = vadd.f32 %v576, %v616
  %v621 = vadd.f32 %v577, %v617
  %v622 = vlaneseq
  %v623 = vshrl.u32 %v622, 7
  %v624 = vsub.s32 3, %v623
  %v625 = vrot.slane %v478, %v624
  %v626 = vlaneseq
  %v627 = vshrl.u32 %v626, 7
  %v628 = vsub.s32 7, %v627
  %v629 = vrot.slane %v478, %v628
  %v630 = vlaneseq
  %v631 = vshrl.u32 %v630, 7
  %v632 = vsub.s32 3, %v631
  %v633 = vrot.slane %v479, %v632
  %v634 = vlaneseq
  %v635 = vshrl.u32 %v634, 7
  %v636 = vsub.s32 7, %v635
  %v637 = vrot.slane %v479, %v636
  %v642 = vlaneseq
  %v643 = vshrl.u32 %v642, 7
  %v644 = vsub.s32 3, %v643
  %v645 = vrot.slane %v625, %v644
  %v646 = vlaneseq
  %v647 = vshrl.u32 %v646, 7
  %v648 = vsub.s32 3, %v647
  %v649 = vrot.slane %v629, %v648
  %v650 = vlaneseq
  %v651 = vshrl.u32 %v650, 7
  %v652 = vsub.s32 3, %v651
  %v653 = vrot.slane %v633, %v652
  %v654 = vlaneseq
  %v655 = vshrl.u32 %v654, 7
  %v656 = vsub.s32 3, %v655
  %v657 = vrot.slane %v637, %v656
  %v658 = vmul.f32 %v645, %v431
  %v659 = vmul.f32 %v649, %v433
  %v660 = vmul.f32 %v653, %v474
  %v661 = vmul.f32 %v657, %v476
  %v666 = vrot.slane %v658, 4
  %v667 = vrot.slane %v659, 4
  %v668 = vrot.slane %v660, 4
  %v669 = vrot.slane %v661, 4
  %v674 = vadd.f32 %v618, %v666
  %v675 = vadd.f32 %v619, %v667
  %v676 = vadd.f32 %v620, %v668
  %v677 = vadd.f32 %v621, %v669
  %v678 = vmax.f32 %v674, 0.0
  %v679 = vmax.f32 %v675, 0.0
  %v680 = vmax.f32 %v676, 0.0
  %v681 = vmax.f32 %v677, 0.0
  %v682 = vld [vmem:[%s2] sm:$0xf]
  %v683 = vxor.u32 %v682, 2147483648
  %v684 = vmul.f32 %v683, 1.442695
  %v685 = vpow.pop %v684
  %v686 = vadd.f32 %v685, 1.0
  %v687 = vrcp.pop %v686
  %v688 = vmul.f32 1.0, %v687
  %v689 = vld [vmem:[%s10] sm:$0xff]
  %v690 = vld [vmem:[%s10 + $0x8] sm:$0xff]
  %v691 = vld [vmem:[%s10 + $0x10] sm:$0xff]
  %v692 = vld [vmem:[%s10 + $0x18] sm:$0xff]
  %v693 = vld [vmem:[%s10 + $0x20] sm:$0x1]
  %v694 = vld [vmem:[%s10 + $0x28] sm:$0x1]
  %v695 = vld [vmem:[%s10 + $0x30] sm:$0x1]
  %v696 = vld [vmem:[%s10 + $0x38] sm:$0x1]
  %v698 = vlaneseq
  %v699 = vshrl.u32 %v698, 7
  %v700 = vsub.s32 0, %v699
  %v701 = vrot.slane %v688, %v700
  %v702 = vlaneseq
  %v703 = vshrl.u32 %v702, 7
  %v704 = vsub.s32 1, %v703
  %v705 = vrot.slane %v688, %v704
  %v706 = vlaneseq
  %v707 = vshrl.u32 %v706, 7
  %v708 = vsub.s32 2, %v707
  %v709 = vrot.slane %v688, %v708
  %v710 = vlaneseq
  %v711 = vshrl.u32 %v710, 7
  %v712 = vsub.s32 3, %v711
  %v713 = vrot.slane %v688, %v712
  %718 = vrot.lane.b32.xlu0 %v701, 17
  %v719 = vpop.permute.xlu0 %718
  %720 = vrot.lane.b32.xlu0 %v705, 17
  %v721 = vpop.permute.xlu0 %720
  %722 = vrot.lane.b32.xlu0 %v709, 17
  %v723 = vpop.permute.xlu0 %722
  %724 = vrot.lane.b32.xlu0 %v713, 17
  %v725 = vpop.permute.xlu0 %724
  %vm726 = vcmp.lt.s32.totalorder %v68, 17
  %v727 = vsel %vm726, %v723, %v725
  %v728 = vsel %vm726, %v721, %v723
  %v729 = vsel %vm726, %v719, %v721
  %v730 = vsel %vm726, %v725, %v719
  %v731 = vmul.f32 %v730, %v689
  %v732 = vmul.f32 %v729, %v690
  %v733 = vmul.f32 %v728, %v691
  %v734 = vmul.f32 %v727, %v692
  %v739 = vcombine.low %v731, %v732
  %v740 = vcombine.low %v733, %v734
  %v742 = vunpack.c.l.s4 1966171168
  %v743 = vunpack.c.0.s8 %v742
  %v744 = vlaneseq
  %v745 = vshrl.u32 %v744, 7
  %v746 = vsub.s32 %v743, %v745
  %v747 = vrot.slane %v739, %v746
  %v749 = vunpack.c.l.s4 1966171168
  %v750 = vunpack.c.0.s8 %v749
  %v751 = vlaneseq
  %v752 = vshrl.u32 %v751, 7
  %v753 = vsub.s32 %v750, %v752
  %v754 = vrot.slane %v740, %v753
  %v755 = vcombine.low %v747, %v754
  %v757 = vunpack.c.l.s4 1966171168
  %v758 = vunpack.c.0.s8 %v757
  %v759 = vlaneseq
  %v760 = vshrl.u32 %v759, 7
  %v761 = vsub.s32 %v758, %v760
  %v762 = vrot.slane %v755, %v761
  %v764 = vmax.f32 %v688, %v762
  %765 = vrot.lane.b32.xlu0 %v701, 16
  %v766 = vpop.permute.xlu0 %765
  %767 = vrot.lane.b32.xlu0 %v705, 16
  %v768 = vpop.permute.xlu0 %767
  %769 = vrot.lane.b32.xlu0 %v709, 16
  %v770 = vpop.permute.xlu0 %769
  %771 = vrot.lane.b32.xlu0 %v713, 16
  %v772 = vpop.permute.xlu0 %771
  %vm773 = vcmp.lt.s32.totalorder %v68, 16
  %v774 = vsel %vm773, %v770, %v772
  %v775 = vsel %vm773, %v768, %v770
  %v776 = vsel %vm773, %v766, %v768
  %v777 = vsel %vm773, %v772, %v766
  %v782 = vrot.slane %v689, 1
  %v783 = vrot.slane %v690, 1
  %v784 = vrot.slane %v691, 1
  %v785 = vrot.slane %v692, 1
  %v790 = vmul.f32 %v777, %v782
  %v791 = vmul.f32 %v776, %v783
  %v792 = vmul.f32 %v775, %v784
  %v793 = vmul.f32 %v774, %v785
  %v798 = vcombine.low %v790, %v791
  %v799 = vcombine.low %v792, %v793
  %v801 = vunpack.c.l.s4 1966171168
  %v802 = vunpack.c.0.s8 %v801
  %v803 = vlaneseq
  %v804 = vshrl.u32 %v803, 7
  %v805 = vsub.s32 %v802, %v804
  %v806 = vrot.slane %v798, %v805
  %v808 = vunpack.c.l.s4 1966171168
  %v809 = vunpack.c.0.s8 %v808
  %v810 = vlaneseq
  %v811 = vshrl.u32 %v810, 7
  %v812 = vsub.s32 %v809, %v811
  %v813 = vrot.slane %v799, %v812
  %v814 = vcombine.low %v806, %v813
  %v816 = vunpack.c.l.s4 1966171168
  %v817 = vunpack.c.0.s8 %v816
  %v818 = vlaneseq
  %v819 = vshrl.u32 %v818, 7
  %v820 = vsub.s32 %v817, %v819
  %v821 = vrot.slane %v814, %v820
  %v823 = vmax.f32 %v764, %v821
  %824 = vrot.lane.b32.xlu0 %v701, 15
  %v825 = vpop.permute.xlu0 %824
  %826 = vrot.lane.b32.xlu0 %v705, 15
  %v827 = vpop.permute.xlu0 %826
  %828 = vrot.lane.b32.xlu0 %v709, 15
  %v829 = vpop.permute.xlu0 %828
  %830 = vrot.lane.b32.xlu0 %v713, 15
  %v831 = vpop.permute.xlu0 %830
  %vm832 = vcmp.lt.s32.totalorder %v68, 15
  %v833 = vsel %vm832, %v829, %v831
  %v834 = vsel %vm832, %v827, %v829
  %v835 = vsel %vm832, %v825, %v827
  %v836 = vsel %vm832, %v831, %v825
  %v837 = vrot.slane %v689, 2
  %v838 = vrot.slane %v690, 2
  %v839 = vrot.slane %v691, 2
  %v840 = vrot.slane %v692, 2
  %v845 = vmul.f32 %v836, %v837
  %v846 = vmul.f32 %v835, %v838
  %v847 = vmul.f32 %v834, %v839
  %v848 = vmul.f32 %v833, %v840
  %v853 = vcombine.low %v845, %v846
  %v854 = vcombine.low %v847, %v848
  %v856 = vunpack.c.l.s4 1966171168
  %v857 = vunpack.c.0.s8 %v856
  %v858 = vlaneseq
  %v859 = vshrl.u32 %v858, 7
  %v860 = vsub.s32 %v857, %v859
  %v861 = vrot.slane %v853, %v860
  %v863 = vunpack.c.l.s4 1966171168
  %v864 = vunpack.c.0.s8 %v863
  %v865 = vlaneseq
  %v866 = vshrl.u32 %v865, 7
  %v867 = vsub.s32 %v864, %v866
  %v868 = vrot.slane %v854, %v867
  %v869 = vcombine.low %v861, %v868
  %v871 = vunpack.c.l.s4 1966171168
  %v872 = vunpack.c.0.s8 %v871
  %v873 = vlaneseq
  %v874 = vshrl.u32 %v873, 7
  %v875 = vsub.s32 %v872, %v874
  %v876 = vrot.slane %v869, %v875
  %v878 = vmax.f32 %v823, %v876
  %879 = vrot.lane.b32.xlu0 %v701, 1
  %v880 = vpop.permute.xlu0 %879
  %881 = vrot.lane.b32.xlu0 %v705, 1
  %v882 = vpop.permute.xlu0 %881
  %883 = vrot.lane.b32.xlu0 %v709, 1
  %v884 = vpop.permute.xlu0 %883
  %885 = vrot.lane.b32.xlu0 %v713, 1
  %v886 = vpop.permute.xlu0 %885
  %vm887 = vcmp.lt.s32.totalorder %v68, 1
  %v888 = vsel %vm887, %v884, %v886
  %v889 = vsel %vm887, %v882, %v884
  %v890 = vsel %vm887, %v880, %v882
  %v891 = vsel %vm887, %v886, %v880
  %v892 = vrot.slane %v689, 3
  %v893 = vrot.slane %v690, 3
  %v894 = vrot.slane %v691, 3
  %v895 = vrot.slane %v692, 3
  %v900 = vmul.f32 %v891, %v892
  %v901 = vmul.f32 %v890, %v893
  %v902 = vmul.f32 %v889, %v894
  %v903 = vmul.f32 %v888, %v895
  %v908 = vcombine.low %v900, %v901
  %v909 = vcombine.low %v902, %v903
  %v911 = vunpack.c.l.s4 1966171168
  %v912 = vunpack.c.0.s8 %v911
  %v913 = vlaneseq
  %v914 = vshrl.u32 %v913, 7
  %v915 = vsub.s32 %v912, %v914
  %v916 = vrot.slane %v908, %v915
  %v918 = vunpack.c.l.s4 1966171168
  %v919 = vunpack.c.0.s8 %v918
  %v920 = vlaneseq
  %v921 = vshrl.u32 %v920, 7
  %v922 = vsub.s32 %v919, %v921
  %v923 = vrot.slane %v909, %v922
  %v924 = vcombine.low %v916, %v923
  %v926 = vunpack.c.l.s4 1966171168
  %v927 = vunpack.c.0.s8 %v926
  %v928 = vlaneseq
  %v929 = vshrl.u32 %v928, 7
  %v930 = vsub.s32 %v927, %v929
  %v931 = vrot.slane %v924, %v930
  %v933 = vmax.f32 %v878, %v931
  %934 = vrot.lane.b32.xlu0 %v701, 127
  %v935 = vpop.permute.xlu0 %934
  %936 = vrot.lane.b32.xlu0 %v705, 127
  %v937 = vpop.permute.xlu0 %936
  %938 = vrot.lane.b32.xlu0 %v709, 127
  %v939 = vpop.permute.xlu0 %938
  %940 = vrot.lane.b32.xlu0 %v713, 127
  %v941 = vpop.permute.xlu0 %940
  %vm942 = vcmp.lt.s32.totalorder %v68, 127
  %v943 = vsel %vm942, %v939, %v941
  %v944 = vsel %vm942, %v937, %v939
  %v945 = vsel %vm942, %v935, %v937
  %v946 = vsel %vm942, %v941, %v935
  %v947 = vrot.slane %v689, 5
  %v948 = vrot.slane %v690, 5
  %v949 = vrot.slane %v691, 5
  %v950 = vrot.slane %v692, 5
  %v955 = vmul.f32 %v945, %v947
  %v956 = vmul.f32 %v944, %v948
  %v957 = vmul.f32 %v943, %v949
  %v958 = vmul.f32 %v946, %v950
  %v963 = vcombine.low %v955, %v956
  %v964 = vcombine.low %v957, %v958
  %v966 = vunpack.c.l.s4 1966171168
  %v967 = vunpack.c.0.s8 %v966
  %v968 = vlaneseq
  %v969 = vshrl.u32 %v968, 7
  %v970 = vsub.s32 %v967, %v969
  %v971 = vrot.slane %v963, %v970
  %v973 = vunpack.c.l.s4 1966171168
  %v974 = vunpack.c.0.s8 %v973
  %v975 = vlaneseq
  %v976 = vshrl.u32 %v975, 7
  %v977 = vsub.s32 %v974, %v976
  %v978 = vrot.slane %v964, %v977
  %v979 = vcombine.low %v971, %v978
  %v981 = vunpack.c.l.s4 1966171168
  %v982 = vunpack.c.0.s8 %v981
  %v983 = vlaneseq
  %v984 = vshrl.u32 %v983, 7
  %v985 = vsub.s32 %v982, %v984
  %v986 = vrot.slane %v979, %v985
  %v988 = vmax.f32 %v933, %v986
  %989 = vrot.lane.b32.xlu0 %v701, 113
  %v990 = vpop.permute.xlu0 %989
  %991 = vrot.lane.b32.xlu0 %v705, 113
  %v992 = vpop.permute.xlu0 %991
  %993 = vrot.lane.b32.xlu0 %v709, 113
  %v994 = vpop.permute.xlu0 %993
  %995 = vrot.lane.b32.xlu0 %v713, 113
  %v996 = vpop.permute.xlu0 %995
  %vm997 = vcmp.lt.s32.totalorder %v68, 113
  %v998 = vsel %vm997, %v994, %v996
  %v999 = vsel %vm997, %v992, %v994
  %v1000 = vsel %vm997, %v990, %v992
  %v1001 = vsel %vm997, %v996, %v990
  %v1002 = vrot.slane %v689, 6
  %v1003 = vrot.slane %v690, 6
  %v1004 = vrot.slane %v691, 6
  %v1005 = vrot.slane %v692, 6
  %v1010 = vmul.f32 %v1000, %v1002
  %v1011 = vmul.f32 %v999, %v1003
  %v1012 = vmul.f32 %v998, %v1004
  %v1013 = vmul.f32 %v1001, %v1005
  %v1018 = vcombine.low %v1010, %v1011
  %v1019 = vcombine.low %v1012, %v1013
  %v1021 = vunpack.c.l.s4 1966171168
  %v1022 = vunpack.c.0.s8 %v1021
  %v1023 = vlaneseq
  %v1024 = vshrl.u32 %v1023, 7
  %v1025 = vsub.s32 %v1022, %v1024
  %v1026 = vrot.slane %v1018, %v1025
  %v1028 = vunpack.c.l.s4 1966171168
  %v1029 = vunpack.c.0.s8 %v1028
  %v1030 = vlaneseq
  %v1031 = vshrl.u32 %v1030, 7
  %v1032 = vsub.s32 %v1029, %v1031
  %v1033 = vrot.slane %v1019, %v1032
  %v1034 = vcombine.low %v1026, %v1033
  %v1036 = vunpack.c.l.s4 1966171168
  %v1037 = vunpack.c.0.s8 %v1036
  %v1038 = vlaneseq
  %v1039 = vshrl.u32 %v1038, 7
  %v1040 = vsub.s32 %v1037, %v1039
  %v1041 = vrot.slane %v1034, %v1040
  %v1043 = vmax.f32 %v988, %v1041
  %1044 = vrot.lane.b32.xlu0 %v701, 112
  %v1045 = vpop.permute.xlu0 %1044
  %1046 = vrot.lane.b32.xlu0 %v705, 112
  %v1047 = vpop.permute.xlu0 %1046
  %1048 = vrot.lane.b32.xlu0 %v709, 112
  %v1049 = vpop.permute.xlu0 %1048
  %1050 = vrot.lane.b32.xlu0 %v713, 112
  %v1051 = vpop.permute.xlu0 %1050
  %vm1052 = vcmp.lt.s32.totalorder %v68, 112
  %v1053 = vsel %vm1052, %v1049, %v1051
  %v1054 = vsel %vm1052, %v1047, %v1049
  %v1055 = vsel %vm1052, %v1045, %v1047
  %v1056 = vsel %vm1052, %v1051, %v1045
  %v1057 = vrot.slane %v689, 7
  %v1058 = vrot.slane %v690, 7
  %v1059 = vrot.slane %v691, 7
  %v1060 = vrot.slane %v692, 7
  %v1065 = vmul.f32 %v1055, %v1057
  %v1066 = vmul.f32 %v1054, %v1058
  %v1067 = vmul.f32 %v1053, %v1059
  %v1068 = vmul.f32 %v1056, %v1060
  %v1073 = vcombine.low %v1065, %v1066
  %v1074 = vcombine.low %v1067, %v1068
  %v1076 = vunpack.c.l.s4 1966171168
  %v1077 = vunpack.c.0.s8 %v1076
  %v1078 = vlaneseq
  %v1079 = vshrl.u32 %v1078, 7
  %v1080 = vsub.s32 %v1077, %v1079
  %v1081 = vrot.slane %v1073, %v1080
  %v1083 = vunpack.c.l.s4 1966171168
  %v1084 = vunpack.c.0.s8 %v1083
  %v1085 = vlaneseq
  %v1086 = vshrl.u32 %v1085, 7
  %v1087 = vsub.s32 %v1084, %v1086
  %v1088 = vrot.slane %v1074, %v1087
  %v1089 = vcombine.low %v1081, %v1088
  %v1091 = vunpack.c.l.s4 1966171168
  %v1092 = vunpack.c.0.s8 %v1091
  %v1093 = vlaneseq
  %v1094 = vshrl.u32 %v1093, 7
  %v1095 = vsub.s32 %v1092, %v1094
  %v1096 = vrot.slane %v1089, %v1095
  %v1098 = vmax.f32 %v1043, %v1096
  %1099 = vrot.lane.b32.xlu0 %v701, 111
  %v1100 = vpop.permute.xlu0 %1099
  %1101 = vrot.lane.b32.xlu0 %v705, 111
  %v1102 = vpop.permute.xlu0 %1101
  %1103 = vrot.lane.b32.xlu0 %v709, 111
  %v1104 = vpop.permute.xlu0 %1103
  %1105 = vrot.lane.b32.xlu0 %v713, 111
  %v1106 = vpop.permute.xlu0 %1105
  %vm1107 = vcmp.lt.s32.totalorder %v68, 111
  %v1108 = vsel %vm1107, %v1104, %v1106
  %v1109 = vsel %vm1107, %v1102, %v1104
  %v1110 = vsel %vm1107, %v1100, %v1102
  %v1111 = vsel %vm1107, %v1106, %v1100
  %v1112 = vmul.f32 %v1110, %v693
  %v1113 = vmul.f32 %v1109, %v694
  %v1114 = vmul.f32 %v1108, %v695
  %v1115 = vmul.f32 %v1111, %v696
  %v1120 = vcombine.low %v1112, %v1113
  %v1121 = vcombine.low %v1114, %v1115
  %v1123 = vunpack.c.l.s4 1966171168
  %v1124 = vunpack.c.0.s8 %v1123
  %v1125 = vlaneseq
  %v1126 = vshrl.u32 %v1125, 7
  %v1127 = vsub.s32 %v1124, %v1126
  %v1128 = vrot.slane %v1120, %v1127
  %v1130 = vunpack.c.l.s4 1966171168
  %v1131 = vunpack.c.0.s8 %v1130
  %v1132 = vlaneseq
  %v1133 = vshrl.u32 %v1132, 7
  %v1134 = vsub.s32 %v1131, %v1133
  %v1135 = vrot.slane %v1121, %v1134
  %v1136 = vcombine.low %v1128, %v1135
  %v1138 = vunpack.c.l.s4 1966171168
  %v1139 = vunpack.c.0.s8 %v1138
  %v1140 = vlaneseq
  %v1141 = vshrl.u32 %v1140, 7
  %v1142 = vsub.s32 %v1139, %v1141
  %v1143 = vrot.slane %v1136, %v1142
  %v1145 = vmax.f32 %v1098, %v1143
  %v1146 = vld [vmem:[%s1] sm:$0xff]
  %v1147 = vld [vmem:[%s1 + $0x8] sm:$0xff]
  %v1148 = vsub.f32 %v1145, %v688
  %v1150 = vlaneseq
  %v1151 = vshrl.u32 %v1150, 7
  %v1152 = vsub.s32 0, %v1151
  %v1153 = vrot.slane %v1148, %v1152
  %v1154 = vlaneseq
  %v1155 = vshrl.u32 %v1154, 7
  %v1156 = vsub.s32 1, %v1155
  %v1157 = vrot.slane %v1148, %v1156
  %v1158 = vlaneseq
  %v1159 = vshrl.u32 %v1158, 7
  %v1160 = vsub.s32 2, %v1159
  %v1161 = vrot.slane %v1148, %v1160
  %v1162 = vlaneseq
  %v1163 = vshrl.u32 %v1162, 7
  %v1164 = vsub.s32 3, %v1163
  %v1165 = vrot.slane %v1148, %v1164
  %v1166 = vcombine.low %v1153, %v1157
  %v1167 = vcombine.low %v1161, %v1165
  %v1170 = vmul.f32 %v1146, %v1166
  %v1171 = vmul.f32 %v1147, %v1167
  %v1174 = vcombine.high %v1170, %v1170
  %v1175 = vcombine.high %v1171, %v1171
  %1178 = vrot.lane.b32.xlu0 %v1170, 17
  %v1179 = vpop.permute.xlu0 %1178
  %1180 = vrot.lane.b32.xlu0 %v1174, 17
  %v1181 = vpop.permute.xlu0 %1180
  %1182 = vrot.lane.b32.xlu0 %v1171, 17
  %v1183 = vpop.permute.xlu0 %1182
  %1184 = vrot.lane.b32.xlu0 %v1175, 17
  %v1185 = vpop.permute.xlu0 %1184
  %v1186 = vsel %vm726, %v1183, %v1185
  %v1187 = vsel %vm726, %v1181, %v1183
  %v1188 = vsel %vm726, %v1179, %v1181
  %v1189 = vsel %vm726, %v1185, %v1179
  %v1190 = vlaneseq
  %v1191 = vshrl.u32 %v1190, 7
  %v1192 = vsub.s32 0, %v1191
  %v1193 = vrot.slane %v689, %v1192
  %v1194 = vlaneseq
  %v1195 = vshrl.u32 %v1194, 7
  %v1196 = vsub.s32 0, %v1195
  %v1197 = vrot.slane %v690, %v1196
  %v1198 = vlaneseq
  %v1199 = vshrl.u32 %v1198, 7
  %v1200 = vsub.s32 0, %v1199
  %v1201 = vrot.slane %v691, %v1200
  %v1202 = vlaneseq
  %v1203 = vshrl.u32 %v1202, 7
  %v1204 = vsub.s32 0, %v1203
  %v1205 = vrot.slane %v692, %v1204
  %v1206 = vmul.f32 %v1189, %v1193
  %v1207 = vmul.f32 %v1188, %v1197
  %v1208 = vmul.f32 %v1187, %v1201
  %v1209 = vmul.f32 %v1186, %v1205
  %1210 = vrot.lane.b32.xlu0 %v1170, 16
  %v1211 = vpop.permute.xlu0 %1210
  %1212 = vrot.lane.b32.xlu0 %v1174, 16
  %v1213 = vpop.permute.xlu0 %1212
  %1214 = vrot.lane.b32.xlu0 %v1171, 16
  %v1215 = vpop.permute.xlu0 %1214
  %1216 = vrot.lane.b32.xlu0 %v1175, 16
  %v1217 = vpop.permute.xlu0 %1216
  %v1218 = vsel %vm773, %v1215, %v1217
  %v1219 = vsel %vm773, %v1213, %v1215
  %v1220 = vsel %vm773, %v1211, %v1213
  %v1221 = vsel %vm773, %v1217, %v1211
  %v1222 = vlaneseq
  %v1223 = vshrl.u32 %v1222, 7
  %v1224 = vsub.s32 1, %v1223
  %v1225 = vrot.slane %v689, %v1224
  %v1226 = vlaneseq
  %v1227 = vshrl.u32 %v1226, 7
  %v1228 = vsub.s32 1, %v1227
  %v1229 = vrot.slane %v690, %v1228
  %v1230 = vlaneseq
  %v1231 = vshrl.u32 %v1230, 7
  %v1232 = vsub.s32 1, %v1231
  %v1233 = vrot.slane %v691, %v1232
  %v1234 = vlaneseq
  %v1235 = vshrl.u32 %v1234, 7
  %v1236 = vsub.s32 1, %v1235
  %v1237 = vrot.slane %v692, %v1236
  %v1238 = vmul.f32 %v1221, %v1225
  %v1239 = vmul.f32 %v1220, %v1229
  %v1240 = vmul.f32 %v1219, %v1233
  %v1241 = vmul.f32 %v1218, %v1237
  %1242 = vrot.lane.b32.xlu0 %v1170, 15
  %v1243 = vpop.permute.xlu0 %1242
  %1244 = vrot.lane.b32.xlu0 %v1174, 15
  %v1245 = vpop.permute.xlu0 %1244
  %1246 = vrot.lane.b32.xlu0 %v1171, 15
  %v1247 = vpop.permute.xlu0 %1246
  %1248 = vrot.lane.b32.xlu0 %v1175, 15
  %v1249 = vpop.permute.xlu0 %1248
  %v1250 = vsel %vm832, %v1247, %v1249
  %v1251 = vsel %vm832, %v1245, %v1247
  %v1252 = vsel %vm832, %v1243, %v1245
  %v1253 = vsel %vm832, %v1249, %v1243
  %v1254 = vlaneseq
  %v1255 = vshrl.u32 %v1254, 7
  %v1256 = vsub.s32 2, %v1255
  %v1257 = vrot.slane %v689, %v1256
  %v1258 = vlaneseq
  %v1259 = vshrl.u32 %v1258, 7
  %v1260 = vsub.s32 2, %v1259
  %v1261 = vrot.slane %v690, %v1260
  %v1262 = vlaneseq
  %v1263 = vshrl.u32 %v1262, 7
  %v1264 = vsub.s32 2, %v1263
  %v1265 = vrot.slane %v691, %v1264
  %v1266 = vlaneseq
  %v1267 = vshrl.u32 %v1266, 7
  %v1268 = vsub.s32 2, %v1267
  %v1269 = vrot.slane %v692, %v1268
  %v1270 = vmul.f32 %v1253, %v1257
  %v1271 = vmul.f32 %v1252, %v1261
  %v1272 = vmul.f32 %v1251, %v1265
  %v1273 = vmul.f32 %v1250, %v1269
  %1274 = vrot.lane.b32.xlu0 %v1170, 1
  %v1275 = vpop.permute.xlu0 %1274
  %1276 = vrot.lane.b32.xlu0 %v1174, 1
  %v1277 = vpop.permute.xlu0 %1276
  %1278 = vrot.lane.b32.xlu0 %v1171, 1
  %v1279 = vpop.permute.xlu0 %1278
  %1280 = vrot.lane.b32.xlu0 %v1175, 1
  %v1281 = vpop.permute.xlu0 %1280
  %v1282 = vsel %vm887, %v1279, %v1281
  %v1283 = vsel %vm887, %v1277, %v1279
  %v1284 = vsel %vm887, %v1275, %v1277
  %v1285 = vsel %vm887, %v1281, %v1275
  %v1286 = vlaneseq
  %v1287 = vshrl.u32 %v1286, 7
  %v1288 = vsub.s32 3, %v1287
  %v1289 = vrot.slane %v689, %v1288
  %v1290 = vlaneseq
  %v1291 = vshrl.u32 %v1290, 7
  %v1292 = vsub.s32 3, %v1291
  %v1293 = vrot.slane %v690, %v1292
  %v1294 = vlaneseq
  %v1295 = vshrl.u32 %v1294, 7
  %v1296 = vsub.s32 3, %v1295
  %v1297 = vrot.slane %v691, %v1296
  %v1298 = vlaneseq
  %v1299 = vshrl.u32 %v1298, 7
  %v1300 = vsub.s32 3, %v1299
  %v1301 = vrot.slane %v692, %v1300
  %v1302 = vmul.f32 %v1285, %v1289
  %v1303 = vmul.f32 %v1284, %v1293
  %v1304 = vmul.f32 %v1283, %v1297
  %v1305 = vmul.f32 %v1282, %v1301
  %v1306 = vlaneseq
  %v1307 = vshrl.u32 %v1306, 7
  %v1308 = vsub.s32 4, %v1307
  %v1309 = vrot.slane %v689, %v1308
  %v1310 = vlaneseq
  %v1311 = vshrl.u32 %v1310, 7
  %v1312 = vsub.s32 4, %v1311
  %v1313 = vrot.slane %v690, %v1312
  %v1314 = vlaneseq
  %v1315 = vshrl.u32 %v1314, 7
  %v1316 = vsub.s32 4, %v1315
  %v1317 = vrot.slane %v691, %v1316
  %v1318 = vlaneseq
  %v1319 = vshrl.u32 %v1318, 7
  %v1320 = vsub.s32 4, %v1319
  %v1321 = vrot.slane %v692, %v1320
  %v1326 = vcombine.low %v1309, %v1313
  %v1327 = vcombine.low %v1317, %v1321
  %v1330 = vmul.f32 %v1170, %v1326
  %v1331 = vmul.f32 %v1171, %v1327
  %1332 = vrot.lane.b32.xlu0 %v1170, 127
  %v1333 = vpop.permute.xlu0 %1332
  %1334 = vrot.lane.b32.xlu0 %v1174, 127
  %v1335 = vpop.permute.xlu0 %1334
  %1336 = vrot.lane.b32.xlu0 %v1171, 127
  %v1337 = vpop.permute.xlu0 %1336
  %1338 = vrot.lane.b32.xlu0 %v1175, 127
  %v1339 = vpop.permute.xlu0 %1338
  %v1340 = vsel %vm942, %v1337, %v1339
  %v1341 = vsel %vm942, %v1335, %v1337
  %v1342 = vsel %vm942, %v1333, %v1335
  %v1343 = vsel %vm942, %v1339, %v1333
  %v1344 = vlaneseq
  %v1345 = vshrl.u32 %v1344, 7
  %v1346 = vsub.s32 5, %v1345
  %v1347 = vrot.slane %v689, %v1346
  %v1348 = vlaneseq
  %v1349 = vshrl.u32 %v1348, 7
  %v1350 = vsub.s32 5, %v1349
  %v1351 = vrot.slane %v690, %v1350
  %v1352 = vlaneseq
  %v1353 = vshrl.u32 %v1352, 7
  %v1354 = vsub.s32 5, %v1353
  %v1355 = vrot.slane %v691, %v1354
  %v1356 = vlaneseq
  %v1357 = vshrl.u32 %v1356, 7
  %v1358 = vsub.s32 5, %v1357
  %v1359 = vrot.slane %v692, %v1358
  %v1360 = vmul.f32 %v1342, %v1347
  %v1361 = vmul.f32 %v1341, %v1351
  %v1362 = vmul.f32 %v1340, %v1355
  %v1363 = vmul.f32 %v1343, %v1359
  %1364 = vrot.lane.b32.xlu0 %v1170, 113
  %v1365 = vpop.permute.xlu0 %1364
  %1366 = vrot.lane.b32.xlu0 %v1174, 113
  %v1367 = vpop.permute.xlu0 %1366
  %1368 = vrot.lane.b32.xlu0 %v1171, 113
  %v1369 = vpop.permute.xlu0 %1368
  %1370 = vrot.lane.b32.xlu0 %v1175, 113
  %v1371 = vpop.permute.xlu0 %1370
  %v1372 = vsel %vm997, %v1369, %v1371
  %v1373 = vsel %vm997, %v1367, %v1369
  %v1374 = vsel %vm997, %v1365, %v1367
  %v1375 = vsel %vm997, %v1371, %v1365
  %v1376 = vlaneseq
  %v1377 = vshrl.u32 %v1376, 7
  %v1378 = vsub.s32 6, %v1377
  %v1379 = vrot.slane %v689, %v1378
  %v1380 = vlaneseq
  %v1381 = vshrl.u32 %v1380, 7
  %v1382 = vsub.s32 6, %v1381
  %v1383 = vrot.slane %v690, %v1382
  %v1384 = vlaneseq
  %v1385 = vshrl.u32 %v1384, 7
  %v1386 = vsub.s32 6, %v1385
  %v1387 = vrot.slane %v691, %v1386
  %v1388 = vlaneseq
  %v1389 = vshrl.u32 %v1388, 7
  %v1390 = vsub.s32 6, %v1389
  %v1391 = vrot.slane %v692, %v1390
  %v1392 = vmul.f32 %v1374, %v1379
  %v1393 = vmul.f32 %v1373, %v1383
  %v1394 = vmul.f32 %v1372, %v1387
  %v1395 = vmul.f32 %v1375, %v1391
  %1396 = vrot.lane.b32.xlu0 %v1170, 112
  %v1397 = vpop.permute.xlu0 %1396
  %1398 = vrot.lane.b32.xlu0 %v1174, 112
  %v1399 = vpop.permute.xlu0 %1398
  %1400 = vrot.lane.b32.xlu0 %v1171, 112
  %v1401 = vpop.permute.xlu0 %1400
  %1402 = vrot.lane.b32.xlu0 %v1175, 112
  %v1403 = vpop.permute.xlu0 %1402
  %v1404 = vsel %vm1052, %v1401, %v1403
  %v1405 = vsel %vm1052, %v1399, %v1401
  %v1406 = vsel %vm1052, %v1397, %v1399
  %v1407 = vsel %vm1052, %v1403, %v1397
  %v1408 = vlaneseq
  %v1409 = vshrl.u32 %v1408, 7
  %v1410 = vsub.s32 7, %v1409
  %v1411 = vrot.slane %v689, %v1410
  %v1412 = vlaneseq
  %v1413 = vshrl.u32 %v1412, 7
  %v1414 = vsub.s32 7, %v1413
  %v1415 = vrot.slane %v690, %v1414
  %v1416 = vlaneseq
  %v1417 = vshrl.u32 %v1416, 7
  %v1418 = vsub.s32 7, %v1417
  %v1419 = vrot.slane %v691, %v1418
  %v1420 = vlaneseq
  %v1421 = vshrl.u32 %v1420, 7
  %v1422 = vsub.s32 7, %v1421
  %v1423 = vrot.slane %v692, %v1422
  %v1424 = vmul.f32 %v1406, %v1411
  %v1425 = vmul.f32 %v1405, %v1415
  %v1426 = vmul.f32 %v1404, %v1419
  %v1427 = vmul.f32 %v1407, %v1423
  %1428 = vrot.lane.b32.xlu0 %v1170, 111
  %v1429 = vpop.permute.xlu0 %1428
  %1430 = vrot.lane.b32.xlu0 %v1174, 111
  %v1431 = vpop.permute.xlu0 %1430
  %1432 = vrot.lane.b32.xlu0 %v1171, 111
  %v1433 = vpop.permute.xlu0 %1432
  %1434 = vrot.lane.b32.xlu0 %v1175, 111
  %v1435 = vpop.permute.xlu0 %1434
  %v1436 = vsel %vm1107, %v1433, %v1435
  %v1437 = vsel %vm1107, %v1431, %v1433
  %v1438 = vsel %vm1107, %v1429, %v1431
  %v1439 = vsel %vm1107, %v1435, %v1429
  %v1440 = vlaneseq
  %v1441 = vshrl.u32 %v1440, 7
  %v1442 = vsub.s32 0, %v1441
  %v1443 = vrot.slane %v693, %v1442
  %v1444 = vlaneseq
  %v1445 = vshrl.u32 %v1444, 7
  %v1446 = vsub.s32 0, %v1445
  %v1447 = vrot.slane %v694, %v1446
  %v1448 = vlaneseq
  %v1449 = vshrl.u32 %v1448, 7
  %v1450 = vsub.s32 0, %v1449
  %v1451 = vrot.slane %v695, %v1450
  %v1452 = vlaneseq
  %v1453 = vshrl.u32 %v1452, 7
  %v1454 = vsub.s32 0, %v1453
  %v1455 = vrot.slane %v696, %v1454
  %v1456 = vmul.f32 %v1438, %v1443
  %v1457 = vmul.f32 %v1437, %v1447
  %v1458 = vmul.f32 %v1436, %v1451
  %v1459 = vmul.f32 %v1439, %v1455
  %v1464 = vrot.slane %v1238, 4
  %v1465 = vrot.slane %v1239, 4
  %v1466 = vrot.slane %v1240, 4
  %v1467 = vrot.slane %v1241, 4
  %v1476 = vrot.slane %v1302, 4
  %v1477 = vrot.slane %v1303, 4
  %v1478 = vrot.slane %v1304, 4
  %v1479 = vrot.slane %v1305, 4
  %v1486 = vcombine.high %v1330, %v1330
  %v1487 = vcombine.high %v1331, %v1331
  %v1494 = vrot.slane %v1360, 4
  %v1495 = vrot.slane %v1361, 4
  %v1496 = vrot.slane %v1362, 4
  %v1497 = vrot.slane %v1363, 4
  %v1506 = vrot.slane %v1424, 4
  %v1507 = vrot.slane %v1425, 4
  %v1508 = vrot.slane %v1426, 4
  %v1509 = vrot.slane %v1427, 4
  %v1514 = vsel %vm376, %v1206, %v1464
  %v1515 = vsel %vm376, %v1207, %v1465
  %v1516 = vsel %vm376, %v1208, %v1466
  %v1517 = vsel %vm376, %v1209, %v1467
  %v1518 = vsel %vm376, %v1270, %v1476
  %v1519 = vsel %vm376, %v1271, %v1477
  %v1520 = vsel %vm376, %v1272, %v1478
  %v1521 = vsel %vm376, %v1273, %v1479
  %v1522 = vsel %vm376, %v1330, %v1494
  %v1523 = vsel %vm376, %v1486, %v1495
  %v1524 = vsel %vm376, %v1331, %v1496
  %v1525 = vsel %vm376, %v1487, %v1497
  %v1526 = vsel %vm376, %v1392, %v1506
  %v1527 = vsel %vm376, %v1393, %v1507
  %v1528 = vsel %vm376, %v1394, %v1508
  %v1529 = vsel %vm376, %v1395, %v1509
  %v1530 = vsel %vm376, %v1456, 1.0
  %v1531 = vsel %vm376, %v1457, 1.0
  %v1532 = vsel %vm376, %v1458, 1.0
  %v1533 = vsel %vm376, %v1459, 1.0
  %v1534 = vpack.c.bf16 %v1518, %v1514
  %v1535 = vpack.c.bf16 %v1519, %v1515
  %v1536 = vpack.c.bf16 %v1520, %v1516
  %v1537 = vpack.c.bf16 %v1521, %v1517
  %v1538 = vpack.c.bf16 %v1526, %v1522
  %v1539 = vpack.c.bf16 %v1527, %v1523
  %v1540 = vpack.c.bf16 %v1528, %v1524
  %v1541 = vpack.c.bf16 %v1529, %v1525
  %v1542 = vpack.c.bf16 %v1530, %v1530
  %v1543 = vpack.c.bf16 %v1531, %v1531
  %v1544 = vpack.c.bf16 %v1532, %v1532
  %v1545 = vpack.c.bf16 %v1533, %v1533
  %v1546 = vld [vmem:[%s4] sm:$0x3]
  %vm1547 = vcmask 302080
  %v1549 = vsel %vm1547, %v1546, 0
  %vm1551 = vcmask 1041408
  %vm1552 = vcmask 1042432
  %v1553 = vsel %vm1551, 4294967295, 65535
  %v1554 = vsel %vm1552, %v1553, 0
  %v1556 = vand.u32 %v1542, %v1554
  %v1559 = vand.u32 %v1543, %v1554
  %v1562 = vand.u32 %v1544, %v1554
  %v1565 = vand.u32 %v1545, %v1554
  %1567 = vmatprep.subr.bf16.mxu0 %v1535
  %1568 = vmatpush1.bf16.msra.mxu0 %v1534
  %1569 = vmatprep.subr.bf16.mxu0 %v1539
  %1570 = vmatpush1.bf16.msra.mxu0 %v1538
  %1571 = vmatprep.subr.bf16.mxu0 %v1559
  %1572 = vmatpush1.bf16.msra.mxu0 %v1556
  %1573 = vmatprep.subr.bf16.mxu0 0
  %1574 = vmatpush1.bf16.msra.mxu0 0
  %1575 = vmatprep.subr.bf16.mxu0 0
  %1576 = vmatpush1.bf16.msra.mxu0 0
  %1577 = vmatprep.subr.bf16.mxu0 0
  %1578 = vmatpush1.bf16.msra.mxu0 0
  %1579 = vmatprep.subr.bf16.mxu0 0
  %1580 = vmatpush1.bf16.msra.mxu0 0
  %1581 = vmatprep.subr.bf16.mxu0 0
  %1582 = vmatpush1.bf16.msra.mxu0 0
  %1583 = vmatprep.subr.bf16.mxu0 0
  %1584 = vmatpush1.bf16.msra.mxu0 0
  %1585 = vmatprep.subr.bf16.mxu0 0
  %1586 = vmatpush1.bf16.msra.mxu0 0
  %1587 = vmatprep.subr.bf16.mxu0 0
  %1588 = vmatpush1.bf16.msra.mxu0 0
  %1589 = vmatprep.subr.bf16.mxu0 0
  %1590 = vmatpush1.bf16.msra.mxu0 0
  %1591 = vmatprep.subr.bf16.mxu0 0
  %1592 = vmatpush1.bf16.msra.mxu0 0
  %1593 = vmatprep.subr.bf16.mxu0 0
  %1594 = vmatpush1.bf16.msra.mxu0 0
  %1595 = vmatprep.subr.bf16.mxu0 0
  %1596 = vmatpush1.bf16.msra.mxu0 0
  %1597 = vmatprep.subr.bf16.mxu0 0
  %1598 = vmatpush1.bf16.msra.mxu0 0
  %1599 = vmatprep.mubr.bf16.mxu0 0
  %1600 = vmatmul.mubr.bf16.gmra.mrb[0].mxu0 %v1549
  %v1601 = vpop.f32.mrb[0].mxu0
  %v1602 = vadd.f32 0.0, %v1601
  %v1603 = vpop.f32.mrb[0].mxu0
  %v1604 = vadd.f32 0.0, %v1603
  %v1605 = vpop.f32.mrb[0].mxu0
  %v1606 = vpop.f32.mrb[0].mxu0
  %1607 = vdwg.mxu0
  %1608 = vmatprep.subr.bf16.mxu0 %v1537
  %1609 = vmatpush1.bf16.msra.mxu0 %v1536
  %1610 = vmatprep.subr.bf16.mxu0 %v1541
  %1611 = vmatpush1.bf16.msra.mxu0 %v1540
  %1612 = vmatprep.subr.bf16.mxu0 %v1565
  %1613 = vmatpush1.bf16.msra.mxu0 %v1562
  %1614 = vmatprep.subr.bf16.mxu0 0
  %1615 = vmatpush1.bf16.msra.mxu0 0
  %1616 = vmatprep.subr.bf16.mxu0 0
  %1617 = vmatpush1.bf16.msra.mxu0 0
  %1618 = vmatprep.subr.bf16.mxu0 0
  %1619 = vmatpush1.bf16.msra.mxu0 0
  %1620 = vmatprep.subr.bf16.mxu0 0
  %1621 = vmatpush1.bf16.msra.mxu0 0
  %1622 = vmatprep.subr.bf16.mxu0 0
  %1623 = vmatpush1.bf16.msra.mxu0 0
  %1624 = vmatprep.subr.bf16.mxu0 0
  %1625 = vmatpush1.bf16.msra.mxu0 0
  %1626 = vmatprep.subr.bf16.mxu0 0
  %1627 = vmatpush1.bf16.msra.mxu0 0
  %1628 = vmatprep.subr.bf16.mxu0 0
  %1629 = vmatpush1.bf16.msra.mxu0 0
  %1630 = vmatprep.subr.bf16.mxu0 0
  %1631 = vmatpush1.bf16.msra.mxu0 0
  %1632 = vmatprep.subr.bf16.mxu0 0
  %1633 = vmatpush1.bf16.msra.mxu0 0
  %1634 = vmatprep.subr.bf16.mxu0 0
  %1635 = vmatpush1.bf16.msra.mxu0 0
  %1636 = vmatprep.subr.bf16.mxu0 0
  %1637 = vmatpush1.bf16.msra.mxu0 0
  %1638 = vmatprep.subr.bf16.mxu0 0
  %1639 = vmatpush1.bf16.msra.mxu0 0
  %1640 = vmatprep.mubr.bf16.mxu0 0
  %1641 = vmatmul.mubr.bf16.gmra.mrb[0].mxu0 %v1549
  %v1642 = vpop.f32.mrb[0].mxu0
  %v1643 = vadd.f32 0.0, %v1642
  %v1644 = vpop.f32.mrb[0].mxu0
  %v1645 = vadd.f32 0.0, %v1644
  %v1646 = vpop.f32.mrb[0].mxu0
  %v1647 = vpop.f32.mrb[0].mxu0
  %1648 = vdwg.mxu0
  %v1649 = vadd.f32 %v678, %v1602
  %v1650 = vadd.f32 %v679, %v1604
  %v1651 = vadd.f32 %v680, %v1643
  %v1652 = vadd.f32 %v681, %v1645
  %1653 = vrot.lane.b32.xlu0 %v1649, 17
  %v1654 = vpop.permute.xlu0 %1653
  %1655 = vrot.lane.b32.xlu0 %v1650, 17
  %v1656 = vpop.permute.xlu0 %1655
  %1657 = vrot.lane.b32.xlu0 %v1651, 17
  %v1658 = vpop.permute.xlu0 %1657
  %1659 = vrot.lane.b32.xlu0 %v1652, 17
  %v1660 = vpop.permute.xlu0 %1659
  %v1661 = vsel %vm726, %v1658, %v1660
  %v1662 = vsel %vm726, %v1656, %v1658
  %v1663 = vsel %vm726, %v1654, %v1656
  %v1664 = vsel %vm726, %v1660, %v1654
  %v1665 = vmul.f32 %v1664, %v1193
  %v1666 = vmul.f32 %v1663, %v1197
  %v1667 = vmul.f32 %v1662, %v1201
  %v1668 = vmul.f32 %v1661, %v1205
  %1669 = vrot.lane.b32.xlu0 %v1649, 16
  %v1670 = vpop.permute.xlu0 %1669
  %1671 = vrot.lane.b32.xlu0 %v1650, 16
  %v1672 = vpop.permute.xlu0 %1671
  %1673 = vrot.lane.b32.xlu0 %v1651, 16
  %v1674 = vpop.permute.xlu0 %1673
  %1675 = vrot.lane.b32.xlu0 %v1652, 16
  %v1676 = vpop.permute.xlu0 %1675
  %v1677 = vsel %vm773, %v1674, %v1676
  %v1678 = vsel %vm773, %v1672, %v1674
  %v1679 = vsel %vm773, %v1670, %v1672
  %v1680 = vsel %vm773, %v1676, %v1670
  %v1681 = vmul.f32 %v1680, %v1225
  %v1682 = vmul.f32 %v1679, %v1229
  %v1683 = vmul.f32 %v1678, %v1233
  %v1684 = vmul.f32 %v1677, %v1237
  %1685 = vrot.lane.b32.xlu0 %v1649, 15
  %v1686 = vpop.permute.xlu0 %1685
  %1687 = vrot.lane.b32.xlu0 %v1650, 15
  %v1688 = vpop.permute.xlu0 %1687
  %1689 = vrot.lane.b32.xlu0 %v1651, 15
  %v1690 = vpop.permute.xlu0 %1689
  %1691 = vrot.lane.b32.xlu0 %v1652, 15
  %v1692 = vpop.permute.xlu0 %1691
  %v1693 = vsel %vm832, %v1690, %v1692
  %v1694 = vsel %vm832, %v1688, %v1690
  %v1695 = vsel %vm832, %v1686, %v1688
  %v1696 = vsel %vm832, %v1692, %v1686
  %v1697 = vmul.f32 %v1696, %v1257
  %v1698 = vmul.f32 %v1695, %v1261
  %v1699 = vmul.f32 %v1694, %v1265
  %v1700 = vmul.f32 %v1693, %v1269
  %1701 = vrot.lane.b32.xlu0 %v1649, 1
  %v1702 = vpop.permute.xlu0 %1701
  %1703 = vrot.lane.b32.xlu0 %v1650, 1
  %v1704 = vpop.permute.xlu0 %1703
  %1705 = vrot.lane.b32.xlu0 %v1651, 1
  %v1706 = vpop.permute.xlu0 %1705
  %1707 = vrot.lane.b32.xlu0 %v1652, 1
  %v1708 = vpop.permute.xlu0 %1707
  %v1709 = vsel %vm887, %v1706, %v1708
  %v1710 = vsel %vm887, %v1704, %v1706
  %v1711 = vsel %vm887, %v1702, %v1704
  %v1712 = vsel %vm887, %v1708, %v1702
  %v1713 = vmul.f32 %v1712, %v1289
  %v1714 = vmul.f32 %v1711, %v1293
  %v1715 = vmul.f32 %v1710, %v1297
  %v1716 = vmul.f32 %v1709, %v1301
  %v1717 = vmul.f32 %v1649, %v1309
  %v1718 = vmul.f32 %v1650, %v1313
  %v1719 = vmul.f32 %v1651, %v1317
  %v1720 = vmul.f32 %v1652, %v1321
  %1721 = vrot.lane.b32.xlu0 %v1649, 127
  %v1722 = vpop.permute.xlu0 %1721
  %1723 = vrot.lane.b32.xlu0 %v1650, 127
  %v1724 = vpop.permute.xlu0 %1723
  %1725 = vrot.lane.b32.xlu0 %v1651, 127
  %v1726 = vpop.permute.xlu0 %1725
  %1727 = vrot.lane.b32.xlu0 %v1652, 127
  %v1728 = vpop.permute.xlu0 %1727
  %v1729 = vsel %vm942, %v1726, %v1728
  %v1730 = vsel %vm942, %v1724, %v1726
  %v1731 = vsel %vm942, %v1722, %v1724
  %v1732 = vsel %vm942, %v1728, %v1722
  %v1733 = vmul.f32 %v1731, %v1347
  %v1734 = vmul.f32 %v1730, %v1351
  %v1735 = vmul.f32 %v1729, %v1355
  %v1736 = vmul.f32 %v1732, %v1359
  %1737 = vrot.lane.b32.xlu0 %v1649, 113
  %v1738 = vpop.permute.xlu0 %1737
  %1739 = vrot.lane.b32.xlu0 %v1650, 113
  %v1740 = vpop.permute.xlu0 %1739
  %1741 = vrot.lane.b32.xlu0 %v1651, 113
  %v1742 = vpop.permute.xlu0 %1741
  %1743 = vrot.lane.b32.xlu0 %v1652, 113
  %v1744 = vpop.permute.xlu0 %1743
  %v1745 = vsel %vm997, %v1742, %v1744
  %v1746 = vsel %vm997, %v1740, %v1742
  %v1747 = vsel %vm997, %v1738, %v1740
  %v1748 = vsel %vm997, %v1744, %v1738
  %v1749 = vmul.f32 %v1747, %v1379
  %v1750 = vmul.f32 %v1746, %v1383
  %v1751 = vmul.f32 %v1745, %v1387
  %v1752 = vmul.f32 %v1748, %v1391
  %1753 = vrot.lane.b32.xlu0 %v1649, 112
  %v1754 = vpop.permute.xlu0 %1753
  %1755 = vrot.lane.b32.xlu0 %v1650, 112
  %v1756 = vpop.permute.xlu0 %1755
  %1757 = vrot.lane.b32.xlu0 %v1651, 112
  %v1758 = vpop.permute.xlu0 %1757
  %1759 = vrot.lane.b32.xlu0 %v1652, 112
  %v1760 = vpop.permute.xlu0 %1759
  %v1761 = vsel %vm1052, %v1758, %v1760
  %v1762 = vsel %vm1052, %v1756, %v1758
  %v1763 = vsel %vm1052, %v1754, %v1756
  %v1764 = vsel %vm1052, %v1760, %v1754
  %v1765 = vmul.f32 %v1763, %v1411
  %v1766 = vmul.f32 %v1762, %v1415
  %v1767 = vmul.f32 %v1761, %v1419
  %v1768 = vmul.f32 %v1764, %v1423
  %1769 = vrot.lane.b32.xlu0 %v1649, 111
  %v1770 = vpop.permute.xlu0 %1769
  %1771 = vrot.lane.b32.xlu0 %v1650, 111
  %v1772 = vpop.permute.xlu0 %1771
  %1773 = vrot.lane.b32.xlu0 %v1651, 111
  %v1774 = vpop.permute.xlu0 %1773
  %1775 = vrot.lane.b32.xlu0 %v1652, 111
  %v1776 = vpop.permute.xlu0 %1775
  %v1777 = vsel %vm1107, %v1774, %v1776
  %v1778 = vsel %vm1107, %v1772, %v1774
  %v1779 = vsel %vm1107, %v1770, %v1772
  %v1780 = vsel %vm1107, %v1776, %v1770
  %v1781 = vmul.f32 %v1779, %v1443
  %v1782 = vmul.f32 %v1778, %v1447
  %v1783 = vmul.f32 %v1777, %v1451
  %v1784 = vmul.f32 %v1780, %v1455
  %v1789 = vrot.slane %v1681, 4
  %v1790 = vrot.slane %v1682, 4
  %v1791 = vrot.slane %v1683, 4
  %v1792 = vrot.slane %v1684, 4
  %v1801 = vrot.slane %v1713, 4
  %v1802 = vrot.slane %v1714, 4
  %v1803 = vrot.slane %v1715, 4
  %v1804 = vrot.slane %v1716, 4
  %v1813 = vrot.slane %v1733, 4
  %v1814 = vrot.slane %v1734, 4
  %v1815 = vrot.slane %v1735, 4
  %v1816 = vrot.slane %v1736, 4
  %v1825 = vrot.slane %v1765, 4
  %v1826 = vrot.slane %v1766, 4
  %v1827 = vrot.slane %v1767, 4
  %v1828 = vrot.slane %v1768, 4
  %v1833 = vsel %vm376, %v1665, %v1789
  %v1834 = vsel %vm376, %v1666, %v1790
  %v1835 = vsel %vm376, %v1667, %v1791
  %v1836 = vsel %vm376, %v1668, %v1792
  %v1837 = vsel %vm376, %v1697, %v1801
  %v1838 = vsel %vm376, %v1698, %v1802
  %v1839 = vsel %vm376, %v1699, %v1803
  %v1840 = vsel %vm376, %v1700, %v1804
  %v1841 = vsel %vm376, %v1717, %v1813
  %v1842 = vsel %vm376, %v1718, %v1814
  %v1843 = vsel %vm376, %v1719, %v1815
  %v1844 = vsel %vm376, %v1720, %v1816
  %v1845 = vsel %vm376, %v1749, %v1825
  %v1846 = vsel %vm376, %v1750, %v1826
  %v1847 = vsel %vm376, %v1751, %v1827
  %v1848 = vsel %vm376, %v1752, %v1828
  %v1849 = vsel %vm376, %v1781, 1.0
  %v1850 = vsel %vm376, %v1782, 1.0
  %v1851 = vsel %vm376, %v1783, 1.0
  %v1852 = vsel %vm376, %v1784, 1.0
  %v1853 = vpack.c.bf16 %v1837, %v1833
  %v1854 = vpack.c.bf16 %v1838, %v1834
  %v1855 = vpack.c.bf16 %v1839, %v1835
  %v1856 = vpack.c.bf16 %v1840, %v1836
  %v1857 = vpack.c.bf16 %v1845, %v1841
  %v1858 = vpack.c.bf16 %v1846, %v1842
  %v1859 = vpack.c.bf16 %v1847, %v1843
  %v1860 = vpack.c.bf16 %v1848, %v1844
  %v1861 = vpack.c.bf16 %v1849, %v1849
  %v1862 = vpack.c.bf16 %v1850, %v1850
  %v1863 = vpack.c.bf16 %v1851, %v1851
  %v1864 = vpack.c.bf16 %v1852, %v1852
  %v1865 = vld [vmem:[%s5] sm:$0x3]
  %v1867 = vsel %vm1547, %v1865, 0
  %v1870 = vand.u32 %v1861, %v1554
  %v1873 = vand.u32 %v1862, %v1554
  %v1876 = vand.u32 %v1863, %v1554
  %v1879 = vand.u32 %v1864, %v1554
  %1881 = vmatprep.subr.bf16.mxu0 %v1854
  %1882 = vmatpush1.bf16.msra.mxu0 %v1853
  %1883 = vmatprep.subr.bf16.mxu0 %v1858
  %1884 = vmatpush1.bf16.msra.mxu0 %v1857
  %1885 = vmatprep.subr.bf16.mxu0 %v1873
  %1886 = vmatpush1.bf16.msra.mxu0 %v1870
  %1887 = vmatprep.subr.bf16.mxu0 0
  %1888 = vmatpush1.bf16.msra.mxu0 0
  %1889 = vmatprep.subr.bf16.mxu0 0
  %1890 = vmatpush1.bf16.msra.mxu0 0
  %1891 = vmatprep.subr.bf16.mxu0 0
  %1892 = vmatpush1.bf16.msra.mxu0 0
  %1893 = vmatprep.subr.bf16.mxu0 0
  %1894 = vmatpush1.bf16.msra.mxu0 0
  %1895 = vmatprep.subr.bf16.mxu0 0
  %1896 = vmatpush1.bf16.msra.mxu0 0
  %1897 = vmatprep.subr.bf16.mxu0 0
  %1898 = vmatpush1.bf16.msra.mxu0 0
  %1899 = vmatprep.subr.bf16.mxu0 0
  %1900 = vmatpush1.bf16.msra.mxu0 0
  %1901 = vmatprep.subr.bf16.mxu0 0
  %1902 = vmatpush1.bf16.msra.mxu0 0
  %1903 = vmatprep.subr.bf16.mxu0 0
  %1904 = vmatpush1.bf16.msra.mxu0 0
  %1905 = vmatprep.subr.bf16.mxu0 0
  %1906 = vmatpush1.bf16.msra.mxu0 0
  %1907 = vmatprep.subr.bf16.mxu0 0
  %1908 = vmatpush1.bf16.msra.mxu0 0
  %1909 = vmatprep.subr.bf16.mxu0 0
  %1910 = vmatpush1.bf16.msra.mxu0 0
  %1911 = vmatprep.subr.bf16.mxu0 0
  %1912 = vmatpush1.bf16.msra.mxu0 0
  %1913 = vmatprep.mubr.bf16.mxu0 0
  %1914 = vmatmul.mubr.bf16.gmra.mrb[0].mxu0 %v1867
  %v1915 = vpop.f32.mrb[0].mxu0
  %v1916 = vadd.f32 0.0, %v1915
  %v1917 = vpop.f32.mrb[0].mxu0
  %v1918 = vadd.f32 0.0, %v1917
  %v1919 = vpop.f32.mrb[0].mxu0
  %v1920 = vpop.f32.mrb[0].mxu0
  %1921 = vdwg.mxu0
  %1922 = vmatprep.subr.bf16.mxu0 %v1856
  %1923 = vmatpush1.bf16.msra.mxu0 %v1855
  %1924 = vmatprep.subr.bf16.mxu0 %v1860
  %1925 = vmatpush1.bf16.msra.mxu0 %v1859
  %1926 = vmatprep.subr.bf16.mxu0 %v1879
  %1927 = vmatpush1.bf16.msra.mxu0 %v1876
  %1928 = vmatprep.subr.bf16.mxu0 0
  %1929 = vmatpush1.bf16.msra.mxu0 0
  %1930 = vmatprep.subr.bf16.mxu0 0
  %1931 = vmatpush1.bf16.msra.mxu0 0
  %1932 = vmatprep.subr.bf16.mxu0 0
  %1933 = vmatpush1.bf16.msra.mxu0 0
  %1934 = vmatprep.subr.bf16.mxu0 0
  %1935 = vmatpush1.bf16.msra.mxu0 0
  %1936 = vmatprep.subr.bf16.mxu0 0
  %1937 = vmatpush1.bf16.msra.mxu0 0
  %1938 = vmatprep.subr.bf16.mxu0 0
  %1939 = vmatpush1.bf16.msra.mxu0 0
  %1940 = vmatprep.subr.bf16.mxu0 0
  %1941 = vmatpush1.bf16.msra.mxu0 0
  %1942 = vmatprep.subr.bf16.mxu0 0
  %1943 = vmatpush1.bf16.msra.mxu0 0
  %1944 = vmatprep.subr.bf16.mxu0 0
  %1945 = vmatpush1.bf16.msra.mxu0 0
  %1946 = vmatprep.subr.bf16.mxu0 0
  %1947 = vmatpush1.bf16.msra.mxu0 0
  %1948 = vmatprep.subr.bf16.mxu0 0
  %1949 = vmatpush1.bf16.msra.mxu0 0
  %1950 = vmatprep.subr.bf16.mxu0 0
  %1951 = vmatpush1.bf16.msra.mxu0 0
  %1952 = vmatprep.subr.bf16.mxu0 0
  %1953 = vmatpush1.bf16.msra.mxu0 0
  %1954 = vmatprep.mubr.bf16.mxu0 0
  %1955 = vmatmul.mubr.bf16.gmra.mrb[0].mxu0 %v1867
  %v1956 = vpop.f32.mrb[0].mxu0
  %v1957 = vadd.f32 0.0, %v1956
  %v1958 = vpop.f32.mrb[0].mxu0
  %v1959 = vadd.f32 0.0, %v1958
  %v1960 = vpop.f32.mrb[0].mxu0
  %v1961 = vpop.f32.mrb[0].mxu0
  %1962 = vdwg.mxu0
  %v1963 = vmax.f32 %v1916, 0.0
  %v1964 = vmax.f32 %v1918, 0.0
  %v1965 = vmax.f32 %v1957, 0.0
  %v1966 = vmax.f32 %v1959, 0.0
  %1967 = vrot.lane.b32.xlu0 %v1963, 17
  %v1968 = vpop.permute.xlu0 %1967
  %1969 = vrot.lane.b32.xlu0 %v1964, 17
  %v1970 = vpop.permute.xlu0 %1969
  %1971 = vrot.lane.b32.xlu0 %v1965, 17
  %v1972 = vpop.permute.xlu0 %1971
  %1973 = vrot.lane.b32.xlu0 %v1966, 17
  %v1974 = vpop.permute.xlu0 %1973
  %v1975 = vsel %vm726, %v1972, %v1974
  %v1976 = vsel %vm726, %v1970, %v1972
  %v1977 = vsel %vm726, %v1968, %v1970
  %v1978 = vsel %vm726, %v1974, %v1968
  %v1979 = vmul.f32 %v1978, %v1193
  %v1980 = vmul.f32 %v1977, %v1197
  %v1981 = vmul.f32 %v1976, %v1201
  %v1982 = vmul.f32 %v1975, %v1205
  %1983 = vrot.lane.b32.xlu0 %v1963, 16
  %v1984 = vpop.permute.xlu0 %1983
  %1985 = vrot.lane.b32.xlu0 %v1964, 16
  %v1986 = vpop.permute.xlu0 %1985
  %1987 = vrot.lane.b32.xlu0 %v1965, 16
  %v1988 = vpop.permute.xlu0 %1987
  %1989 = vrot.lane.b32.xlu0 %v1966, 16
  %v1990 = vpop.permute.xlu0 %1989
  %v1991 = vsel %vm773, %v1988, %v1990
  %v1992 = vsel %vm773, %v1986, %v1988
  %v1993 = vsel %vm773, %v1984, %v1986
  %v1994 = vsel %vm773, %v1990, %v1984
  %v1995 = vmul.f32 %v1994, %v1225
  %v1996 = vmul.f32 %v1993, %v1229
  %v1997 = vmul.f32 %v1992, %v1233
  %v1998 = vmul.f32 %v1991, %v1237
  %1999 = vrot.lane.b32.xlu0 %v1963, 15
  %v2000 = vpop.permute.xlu0 %1999
  %2001 = vrot.lane.b32.xlu0 %v1964, 15
  %v2002 = vpop.permute.xlu0 %2001
  %2003 = vrot.lane.b32.xlu0 %v1965, 15
  %v2004 = vpop.permute.xlu0 %2003
  %2005 = vrot.lane.b32.xlu0 %v1966, 15
  %v2006 = vpop.permute.xlu0 %2005
  %v2007 = vsel %vm832, %v2004, %v2006
  %v2008 = vsel %vm832, %v2002, %v2004
  %v2009 = vsel %vm832, %v2000, %v2002
  %v2010 = vsel %vm832, %v2006, %v2000
  %v2011 = vmul.f32 %v2010, %v1257
  %v2012 = vmul.f32 %v2009, %v1261
  %v2013 = vmul.f32 %v2008, %v1265
  %v2014 = vmul.f32 %v2007, %v1269
  %2015 = vrot.lane.b32.xlu0 %v1963, 1
  %v2016 = vpop.permute.xlu0 %2015
  %2017 = vrot.lane.b32.xlu0 %v1964, 1
  %v2018 = vpop.permute.xlu0 %2017
  %2019 = vrot.lane.b32.xlu0 %v1965, 1
  %v2020 = vpop.permute.xlu0 %2019
  %2021 = vrot.lane.b32.xlu0 %v1966, 1
  %v2022 = vpop.permute.xlu0 %2021
  %v2023 = vsel %vm887, %v2020, %v2022
  %v2024 = vsel %vm887, %v2018, %v2020
  %v2025 = vsel %vm887, %v2016, %v2018
  %v2026 = vsel %vm887, %v2022, %v2016
  %v2027 = vmul.f32 %v2026, %v1289
  %v2028 = vmul.f32 %v2025, %v1293
  %v2029 = vmul.f32 %v2024, %v1297
  %v2030 = vmul.f32 %v2023, %v1301
  %v2031 = vmul.f32 %v1963, %v1309
  %v2032 = vmul.f32 %v1964, %v1313
  %v2033 = vmul.f32 %v1965, %v1317
  %v2034 = vmul.f32 %v1966, %v1321
  %2035 = vrot.lane.b32.xlu0 %v1963, 127
  %v2036 = vpop.permute.xlu0 %2035
  %2037 = vrot.lane.b32.xlu0 %v1964, 127
  %v2038 = vpop.permute.xlu0 %2037
  %2039 = vrot.lane.b32.xlu0 %v1965, 127
  %v2040 = vpop.permute.xlu0 %2039
  %2041 = vrot.lane.b32.xlu0 %v1966, 127
  %v2042 = vpop.permute.xlu0 %2041
  %v2043 = vsel %vm942, %v2040, %v2042
  %v2044 = vsel %vm942, %v2038, %v2040
  %v2045 = vsel %vm942, %v2036, %v2038
  %v2046 = vsel %vm942, %v2042, %v2036
  %v2047 = vmul.f32 %v2045, %v1347
  %v2048 = vmul.f32 %v2044, %v1351
  %v2049 = vmul.f32 %v2043, %v1355
  %v2050 = vmul.f32 %v2046, %v1359
  %2051 = vrot.lane.b32.xlu0 %v1963, 113
  %v2052 = vpop.permute.xlu0 %2051
  %2053 = vrot.lane.b32.xlu0 %v1964, 113
  %v2054 = vpop.permute.xlu0 %2053
  %2055 = vrot.lane.b32.xlu0 %v1965, 113
  %v2056 = vpop.permute.xlu0 %2055
  %2057 = vrot.lane.b32.xlu0 %v1966, 113
  %v2058 = vpop.permute.xlu0 %2057
  %v2059 = vsel %vm997, %v2056, %v2058
  %v2060 = vsel %vm997, %v2054, %v2056
  %v2061 = vsel %vm997, %v2052, %v2054
  %v2062 = vsel %vm997, %v2058, %v2052
  %v2063 = vmul.f32 %v2061, %v1379
  %v2064 = vmul.f32 %v2060, %v1383
  %v2065 = vmul.f32 %v2059, %v1387
  %v2066 = vmul.f32 %v2062, %v1391
  %2067 = vrot.lane.b32.xlu0 %v1963, 112
  %v2068 = vpop.permute.xlu0 %2067
  %2069 = vrot.lane.b32.xlu0 %v1964, 112
  %v2070 = vpop.permute.xlu0 %2069
  %2071 = vrot.lane.b32.xlu0 %v1965, 112
  %v2072 = vpop.permute.xlu0 %2071
  %2073 = vrot.lane.b32.xlu0 %v1966, 112
  %v2074 = vpop.permute.xlu0 %2073
  %v2075 = vsel %vm1052, %v2072, %v2074
  %v2076 = vsel %vm1052, %v2070, %v2072
  %v2077 = vsel %vm1052, %v2068, %v2070
  %v2078 = vsel %vm1052, %v2074, %v2068
  %v2079 = vmul.f32 %v2077, %v1411
  %v2080 = vmul.f32 %v2076, %v1415
  %v2081 = vmul.f32 %v2075, %v1419
  %v2082 = vmul.f32 %v2078, %v1423
  %2083 = vrot.lane.b32.xlu0 %v1963, 111
  %v2084 = vpop.permute.xlu0 %2083
  %2085 = vrot.lane.b32.xlu0 %v1964, 111
  %v2086 = vpop.permute.xlu0 %2085
  %2087 = vrot.lane.b32.xlu0 %v1965, 111
  %v2088 = vpop.permute.xlu0 %2087
  %2089 = vrot.lane.b32.xlu0 %v1966, 111
  %v2090 = vpop.permute.xlu0 %2089
  %v2091 = vsel %vm1107, %v2088, %v2090
  %v2092 = vsel %vm1107, %v2086, %v2088
  %v2093 = vsel %vm1107, %v2084, %v2086
  %v2094 = vsel %vm1107, %v2090, %v2084
  %v2095 = vmul.f32 %v2093, %v1443
  %v2096 = vmul.f32 %v2092, %v1447
  %v2097 = vmul.f32 %v2091, %v1451
  %v2098 = vmul.f32 %v2094, %v1455
  %v2103 = vrot.slane %v1995, 4
  %v2104 = vrot.slane %v1996, 4
  %v2105 = vrot.slane %v1997, 4
  %v2106 = vrot.slane %v1998, 4
  %v2115 = vrot.slane %v2027, 4
  %v2116 = vrot.slane %v2028, 4
  %v2117 = vrot.slane %v2029, 4
  %v2118 = vrot.slane %v2030, 4
  %v2127 = vrot.slane %v2047, 4
  %v2128 = vrot.slane %v2048, 4
  %v2129 = vrot.slane %v2049, 4
  %v2130 = vrot.slane %v2050, 4
  %v2139 = vrot.slane %v2079, 4
  %v2140 = vrot.slane %v2080, 4
  %v2141 = vrot.slane %v2081, 4
  %v2142 = vrot.slane %v2082, 4
  %v2147 = vsel %vm376, %v1979, %v2103
  %v2148 = vsel %vm376, %v1980, %v2104
  %v2149 = vsel %vm376, %v1981, %v2105
  %v2150 = vsel %vm376, %v1982, %v2106
  %v2151 = vsel %vm376, %v2011, %v2115
  %v2152 = vsel %vm376, %v2012, %v2116
  %v2153 = vsel %vm376, %v2013, %v2117
  %v2154 = vsel %vm376, %v2014, %v2118
  %v2155 = vsel %vm376, %v2031, %v2127
  %v2156 = vsel %vm376, %v2032, %v2128
  %v2157 = vsel %vm376, %v2033, %v2129
  %v2158 = vsel %vm376, %v2034, %v2130
  %v2159 = vsel %vm376, %v2063, %v2139
  %v2160 = vsel %vm376, %v2064, %v2140
  %v2161 = vsel %vm376, %v2065, %v2141
  %v2162 = vsel %vm376, %v2066, %v2142
  %v2163 = vsel %vm376, %v2095, 1.0
  %v2164 = vsel %vm376, %v2096, 1.0
  %v2165 = vsel %vm376, %v2097, 1.0
  %v2166 = vsel %vm376, %v2098, 1.0
  %v2167 = vpack.c.bf16 %v2151, %v2147
  %v2168 = vpack.c.bf16 %v2152, %v2148
  %v2169 = vpack.c.bf16 %v2153, %v2149
  %v2170 = vpack.c.bf16 %v2154, %v2150
  %v2171 = vpack.c.bf16 %v2159, %v2155
  %v2172 = vpack.c.bf16 %v2160, %v2156
  %v2173 = vpack.c.bf16 %v2161, %v2157
  %v2174 = vpack.c.bf16 %v2162, %v2158
  %v2175 = vpack.c.bf16 %v2163, %v2163
  %v2176 = vpack.c.bf16 %v2164, %v2164
  %v2177 = vpack.c.bf16 %v2165, %v2165
  %v2178 = vpack.c.bf16 %v2166, %v2166
  %v2179 = vld [vmem:[%s6] sm:$0x3]
  %v2181 = vsel %vm1547, %v2179, 0
  %v2184 = vand.u32 %v2175, %v1554
  %v2187 = vand.u32 %v2176, %v1554
  %v2190 = vand.u32 %v2177, %v1554
  %v2193 = vand.u32 %v2178, %v1554
  %2195 = vmatprep.subr.bf16.mxu0 %v2168
  %2196 = vmatpush1.bf16.msra.mxu0 %v2167
  %2197 = vmatprep.subr.bf16.mxu0 %v2172
  %2198 = vmatpush1.bf16.msra.mxu0 %v2171
  %2199 = vmatprep.subr.bf16.mxu0 %v2187
  %2200 = vmatpush1.bf16.msra.mxu0 %v2184
  %2201 = vmatprep.subr.bf16.mxu0 0
  %2202 = vmatpush1.bf16.msra.mxu0 0
  %2203 = vmatprep.subr.bf16.mxu0 0
  %2204 = vmatpush1.bf16.msra.mxu0 0
  %2205 = vmatprep.subr.bf16.mxu0 0
  %2206 = vmatpush1.bf16.msra.mxu0 0
  %2207 = vmatprep.subr.bf16.mxu0 0
  %2208 = vmatpush1.bf16.msra.mxu0 0
  %2209 = vmatprep.subr.bf16.mxu0 0
  %2210 = vmatpush1.bf16.msra.mxu0 0
  %2211 = vmatprep.subr.bf16.mxu0 0
  %2212 = vmatpush1.bf16.msra.mxu0 0
  %2213 = vmatprep.subr.bf16.mxu0 0
  %2214 = vmatpush1.bf16.msra.mxu0 0
  %2215 = vmatprep.subr.bf16.mxu0 0
  %2216 = vmatpush1.bf16.msra.mxu0 0
  %2217 = vmatprep.subr.bf16.mxu0 0
  %2218 = vmatpush1.bf16.msra.mxu0 0
  %2219 = vmatprep.subr.bf16.mxu0 0
  %2220 = vmatpush1.bf16.msra.mxu0 0
  %2221 = vmatprep.subr.bf16.mxu0 0
  %2222 = vmatpush1.bf16.msra.mxu0 0
  %2223 = vmatprep.subr.bf16.mxu0 0
  %2224 = vmatpush1.bf16.msra.mxu0 0
  %2225 = vmatprep.subr.bf16.mxu0 0
  %2226 = vmatpush1.bf16.msra.mxu0 0
  %2227 = vmatprep.mubr.bf16.mxu0 0
  %2228 = vmatmul.mubr.bf16.gmra.mrb[0].mxu0 %v2181
  %v2229 = vpop.f32.mrb[0].mxu0
  %v2230 = vadd.f32 0.0, %v2229
  %v2231 = vpop.f32.mrb[0].mxu0
  %v2232 = vadd.f32 0.0, %v2231
  %v2233 = vpop.f32.mrb[0].mxu0
  %v2234 = vpop.f32.mrb[0].mxu0
  %2235 = vdwg.mxu0
  %2236 = vmatprep.subr.bf16.mxu0 %v2170
  %2237 = vmatpush1.bf16.msra.mxu0 %v2169
  %2238 = vmatprep.subr.bf16.mxu0 %v2174
  %2239 = vmatpush1.bf16.msra.mxu0 %v2173
  %2240 = vmatprep.subr.bf16.mxu0 %v2193
  %2241 = vmatpush1.bf16.msra.mxu0 %v2190
  %2242 = vmatprep.subr.bf16.mxu0 0
  %2243 = vmatpush1.bf16.msra.mxu0 0
  %2244 = vmatprep.subr.bf16.mxu0 0
  %2245 = vmatpush1.bf16.msra.mxu0 0
  %2246 = vmatprep.subr.bf16.mxu0 0
  %2247 = vmatpush1.bf16.msra.mxu0 0
  %2248 = vmatprep.subr.bf16.mxu0 0
  %2249 = vmatpush1.bf16.msra.mxu0 0
  %2250 = vmatprep.subr.bf16.mxu0 0
  %2251 = vmatpush1.bf16.msra.mxu0 0
  %2252 = vmatprep.subr.bf16.mxu0 0
  %2253 = vmatpush1.bf16.msra.mxu0 0
  %2254 = vmatprep.subr.bf16.mxu0 0
  %2255 = vmatpush1.bf16.msra.mxu0 0
  %2256 = vmatprep.subr.bf16.mxu0 0
  %2257 = vmatpush1.bf16.msra.mxu0 0
  %2258 = vmatprep.subr.bf16.mxu0 0
  %2259 = vmatpush1.bf16.msra.mxu0 0
  %2260 = vmatprep.subr.bf16.mxu0 0
  %2261 = vmatpush1.bf16.msra.mxu0 0
  %2262 = vmatprep.subr.bf16.mxu0 0
  %2263 = vmatpush1.bf16.msra.mxu0 0
  %2264 = vmatprep.subr.bf16.mxu0 0
  %2265 = vmatpush1.bf16.msra.mxu0 0
  %2266 = vmatprep.subr.bf16.mxu0 0
  %2267 = vmatpush1.bf16.msra.mxu0 0
  %2268 = vmatprep.mubr.bf16.mxu0 0
  %2269 = vmatmul.mubr.bf16.gmra.mrb[0].mxu0 %v2181
  %v2270 = vpop.f32.mrb[0].mxu0
  %v2271 = vadd.f32 0.0, %v2270
  %v2272 = vpop.f32.mrb[0].mxu0
  %v2273 = vadd.f32 0.0, %v2272
  %v2274 = vpop.f32.mrb[0].mxu0
  %v2275 = vpop.f32.mrb[0].mxu0
  %2276 = vdwg.mxu0
  %v2277 = vmax.f32 %v2230, 0.0
  %v2278 = vmax.f32 %v2232, 0.0
  %v2279 = vmax.f32 %v2271, 0.0
  %v2280 = vmax.f32 %v2273, 0.0
  %2281 = vrot.lane.b32.xlu0 %v2277, 17
  %v2282 = vpop.permute.xlu0 %2281
  %2283 = vrot.lane.b32.xlu0 %v2278, 17
  %v2284 = vpop.permute.xlu0 %2283
  %2285 = vrot.lane.b32.xlu0 %v2279, 17
  %v2286 = vpop.permute.xlu0 %2285
  %2287 = vrot.lane.b32.xlu0 %v2280, 17
  %v2288 = vpop.permute.xlu0 %2287
  %v2289 = vsel %vm726, %v2286, %v2288
  %v2290 = vsel %vm726, %v2284, %v2286
  %v2291 = vsel %vm726, %v2282, %v2284
  %v2292 = vsel %vm726, %v2288, %v2282
  %v2293 = vmul.f32 %v2292, %v1193
  %v2294 = vmul.f32 %v2291, %v1197
  %v2295 = vmul.f32 %v2290, %v1201
  %v2296 = vmul.f32 %v2289, %v1205
  %2297 = vrot.lane.b32.xlu0 %v2277, 16
  %v2298 = vpop.permute.xlu0 %2297
  %2299 = vrot.lane.b32.xlu0 %v2278, 16
  %v2300 = vpop.permute.xlu0 %2299
  %2301 = vrot.lane.b32.xlu0 %v2279, 16
  %v2302 = vpop.permute.xlu0 %2301
  %2303 = vrot.lane.b32.xlu0 %v2280, 16
  %v2304 = vpop.permute.xlu0 %2303
  %v2305 = vsel %vm773, %v2302, %v2304
  %v2306 = vsel %vm773, %v2300, %v2302
  %v2307 = vsel %vm773, %v2298, %v2300
  %v2308 = vsel %vm773, %v2304, %v2298
  %v2309 = vmul.f32 %v2308, %v1225
  %v2310 = vmul.f32 %v2307, %v1229
  %v2311 = vmul.f32 %v2306, %v1233
  %v2312 = vmul.f32 %v2305, %v1237
  %2313 = vrot.lane.b32.xlu0 %v2277, 15
  %v2314 = vpop.permute.xlu0 %2313
  %2315 = vrot.lane.b32.xlu0 %v2278, 15
  %v2316 = vpop.permute.xlu0 %2315
  %2317 = vrot.lane.b32.xlu0 %v2279, 15
  %v2318 = vpop.permute.xlu0 %2317
  %2319 = vrot.lane.b32.xlu0 %v2280, 15
  %v2320 = vpop.permute.xlu0 %2319
  %v2321 = vsel %vm832, %v2318, %v2320
  %v2322 = vsel %vm832, %v2316, %v2318
  %v2323 = vsel %vm832, %v2314, %v2316
  %v2324 = vsel %vm832, %v2320, %v2314
  %v2325 = vmul.f32 %v2324, %v1257
  %v2326 = vmul.f32 %v2323, %v1261
  %v2327 = vmul.f32 %v2322, %v1265
  %v2328 = vmul.f32 %v2321, %v1269
  %2329 = vrot.lane.b32.xlu0 %v2277, 1
  %v2330 = vpop.permute.xlu0 %2329
  %2331 = vrot.lane.b32.xlu0 %v2278, 1
  %v2332 = vpop.permute.xlu0 %2331
  %2333 = vrot.lane.b32.xlu0 %v2279, 1
  %v2334 = vpop.permute.xlu0 %2333
  %2335 = vrot.lane.b32.xlu0 %v2280, 1
  %v2336 = vpop.permute.xlu0 %2335
  %v2337 = vsel %vm887, %v2334, %v2336
  %v2338 = vsel %vm887, %v2332, %v2334
  %v2339 = vsel %vm887, %v2330, %v2332
  %v2340 = vsel %vm887, %v2336, %v2330
  %v2341 = vmul.f32 %v2340, %v1289
  %v2342 = vmul.f32 %v2339, %v1293
  %v2343 = vmul.f32 %v2338, %v1297
  %v2344 = vmul.f32 %v2337, %v1301
  %v2345 = vmul.f32 %v2277, %v1309
  %v2346 = vmul.f32 %v2278, %v1313
  %v2347 = vmul.f32 %v2279, %v1317
  %v2348 = vmul.f32 %v2280, %v1321
  %2349 = vrot.lane.b32.xlu0 %v2277, 127
  %v2350 = vpop.permute.xlu0 %2349
  %2351 = vrot.lane.b32.xlu0 %v2278, 127
  %v2352 = vpop.permute.xlu0 %2351
  %2353 = vrot.lane.b32.xlu0 %v2279, 127
  %v2354 = vpop.permute.xlu0 %2353
  %2355 = vrot.lane.b32.xlu0 %v2280, 127
  %v2356 = vpop.permute.xlu0 %2355
  %v2357 = vsel %vm942, %v2354, %v2356
  %v2358 = vsel %vm942, %v2352, %v2354
  %v2359 = vsel %vm942, %v2350, %v2352
  %v2360 = vsel %vm942, %v2356, %v2350
  %v2361 = vmul.f32 %v2359, %v1347
  %v2362 = vmul.f32 %v2358, %v1351
  %v2363 = vmul.f32 %v2357, %v1355
  %v2364 = vmul.f32 %v2360, %v1359
  %2365 = vrot.lane.b32.xlu0 %v2277, 113
  %v2366 = vpop.permute.xlu0 %2365
  %2367 = vrot.lane.b32.xlu0 %v2278, 113
  %v2368 = vpop.permute.xlu0 %2367
  %2369 = vrot.lane.b32.xlu0 %v2279, 113
  %v2370 = vpop.permute.xlu0 %2369
  %2371 = vrot.lane.b32.xlu0 %v2280, 113
  %v2372 = vpop.permute.xlu0 %2371
  %v2373 = vsel %vm997, %v2370, %v2372
  %v2374 = vsel %vm997, %v2368, %v2370
  %v2375 = vsel %vm997, %v2366, %v2368
  %v2376 = vsel %vm997, %v2372, %v2366
  %v2377 = vmul.f32 %v2375, %v1379
  %v2378 = vmul.f32 %v2374, %v1383
  %v2379 = vmul.f32 %v2373, %v1387
  %v2380 = vmul.f32 %v2376, %v1391
  %2381 = vrot.lane.b32.xlu0 %v2277, 112
  %v2382 = vpop.permute.xlu0 %2381
  %2383 = vrot.lane.b32.xlu0 %v2278, 112
  %v2384 = vpop.permute.xlu0 %2383
  %2385 = vrot.lane.b32.xlu0 %v2279, 112
  %v2386 = vpop.permute.xlu0 %2385
  %2387 = vrot.lane.b32.xlu0 %v2280, 112
  %v2388 = vpop.permute.xlu0 %2387
  %v2389 = vsel %vm1052, %v2386, %v2388
  %v2390 = vsel %vm1052, %v2384, %v2386
  %v2391 = vsel %vm1052, %v2382, %v2384
  %v2392 = vsel %vm1052, %v2388, %v2382
  %v2393 = vmul.f32 %v2391, %v1411
  %v2394 = vmul.f32 %v2390, %v1415
  %v2395 = vmul.f32 %v2389, %v1419
  %v2396 = vmul.f32 %v2392, %v1423
  %2397 = vrot.lane.b32.xlu0 %v2277, 111
  %v2398 = vpop.permute.xlu0 %2397
  %2399 = vrot.lane.b32.xlu0 %v2278, 111
  %v2400 = vpop.permute.xlu0 %2399
  %2401 = vrot.lane.b32.xlu0 %v2279, 111
  %v2402 = vpop.permute.xlu0 %2401
  %2403 = vrot.lane.b32.xlu0 %v2280, 111
  %v2404 = vpop.permute.xlu0 %2403
  %v2405 = vsel %vm1107, %v2402, %v2404
  %v2406 = vsel %vm1107, %v2400, %v2402
  %v2407 = vsel %vm1107, %v2398, %v2400
  %v2408 = vsel %vm1107, %v2404, %v2398
  %v2409 = vmul.f32 %v2407, %v1443
  %v2410 = vmul.f32 %v2406, %v1447
  %v2411 = vmul.f32 %v2405, %v1451
  %v2412 = vmul.f32 %v2408, %v1455
  %v2417 = vrot.slane %v2309, 4
  %v2418 = vrot.slane %v2310, 4
  %v2419 = vrot.slane %v2311, 4
  %v2420 = vrot.slane %v2312, 4
  %v2429 = vrot.slane %v2341, 4
  %v2430 = vrot.slane %v2342, 4
  %v2431 = vrot.slane %v2343, 4
  %v2432 = vrot.slane %v2344, 4
  %v2441 = vrot.slane %v2361, 4
  %v2442 = vrot.slane %v2362, 4
  %v2443 = vrot.slane %v2363, 4
  %v2444 = vrot.slane %v2364, 4
  %v2453 = vrot.slane %v2393, 4
  %v2454 = vrot.slane %v2394, 4
  %v2455 = vrot.slane %v2395, 4
  %v2456 = vrot.slane %v2396, 4
  %v2461 = vsel %vm376, %v2293, %v2417
  %v2462 = vsel %vm376, %v2294, %v2418
  %v2463 = vsel %vm376, %v2295, %v2419
  %v2464 = vsel %vm376, %v2296, %v2420
  %v2465 = vsel %vm376, %v2325, %v2429
  %v2466 = vsel %vm376, %v2326, %v2430
  %v2467 = vsel %vm376, %v2327, %v2431
  %v2468 = vsel %vm376, %v2328, %v2432
  %v2469 = vsel %vm376, %v2345, %v2441
  %v2470 = vsel %vm376, %v2346, %v2442
  %v2471 = vsel %vm376, %v2347, %v2443
  %v2472 = vsel %vm376, %v2348, %v2444
  %v2473 = vsel %vm376, %v2377, %v2453
  %v2474 = vsel %vm376, %v2378, %v2454
  %v2475 = vsel %vm376, %v2379, %v2455
  %v2476 = vsel %vm376, %v2380, %v2456
  %v2477 = vsel %vm376, %v2409, 1.0
  %v2478 = vsel %vm376, %v2410, 1.0
  %v2479 = vsel %vm376, %v2411, 1.0
  %v2480 = vsel %vm376, %v2412, 1.0
  %v2481 = vpack.c.bf16 %v2465, %v2461
  %v2482 = vpack.c.bf16 %v2466, %v2462
  %v2483 = vpack.c.bf16 %v2467, %v2463
  %v2484 = vpack.c.bf16 %v2468, %v2464
  %v2485 = vpack.c.bf16 %v2473, %v2469
  %v2486 = vpack.c.bf16 %v2474, %v2470
  %v2487 = vpack.c.bf16 %v2475, %v2471
  %v2488 = vpack.c.bf16 %v2476, %v2472
  %v2489 = vpack.c.bf16 %v2477, %v2477
  %v2490 = vpack.c.bf16 %v2478, %v2478
  %v2491 = vpack.c.bf16 %v2479, %v2479
  %v2492 = vpack.c.bf16 %v2480, %v2480
  %v2493 = vld [vmem:[%s7] sm:$0x3]
  %v2495 = vsel %vm1547, %v2493, 0
  %v2498 = vand.u32 %v2489, %v1554
  %v2501 = vand.u32 %v2490, %v1554
  %v2504 = vand.u32 %v2491, %v1554
  %v2507 = vand.u32 %v2492, %v1554
  %2509 = vmatprep.subr.bf16.mxu0 %v2482
  %2510 = vmatpush1.bf16.msra.mxu0 %v2481
  %2511 = vmatprep.subr.bf16.mxu0 %v2486
  %2512 = vmatpush1.bf16.msra.mxu0 %v2485
  %2513 = vmatprep.subr.bf16.mxu0 %v2501
  %2514 = vmatpush1.bf16.msra.mxu0 %v2498
  %2515 = vmatprep.subr.bf16.mxu0 0
  %2516 = vmatpush1.bf16.msra.mxu0 0
  %2517 = vmatprep.subr.bf16.mxu0 0
  %2518 = vmatpush1.bf16.msra.mxu0 0
  %2519 = vmatprep.subr.bf16.mxu0 0
  %2520 = vmatpush1.bf16.msra.mxu0 0
  %2521 = vmatprep.subr.bf16.mxu0 0
  %2522 = vmatpush1.bf16.msra.mxu0 0
  %2523 = vmatprep.subr.bf16.mxu0 0
  %2524 = vmatpush1.bf16.msra.mxu0 0
  %2525 = vmatprep.subr.bf16.mxu0 0
  %2526 = vmatpush1.bf16.msra.mxu0 0
  %2527 = vmatprep.subr.bf16.mxu0 0
  %2528 = vmatpush1.bf16.msra.mxu0 0
  %2529 = vmatprep.subr.bf16.mxu0 0
  %2530 = vmatpush1.bf16.msra.mxu0 0
  %2531 = vmatprep.subr.bf16.mxu0 0
  %2532 = vmatpush1.bf16.msra.mxu0 0
  %2533 = vmatprep.subr.bf16.mxu0 0
  %2534 = vmatpush1.bf16.msra.mxu0 0
  %2535 = vmatprep.subr.bf16.mxu0 0
  %2536 = vmatpush1.bf16.msra.mxu0 0
  %2537 = vmatprep.subr.bf16.mxu0 0
  %2538 = vmatpush1.bf16.msra.mxu0 0
  %2539 = vmatprep.subr.bf16.mxu0 0
  %2540 = vmatpush1.bf16.msra.mxu0 0
  %2541 = vmatprep.mubr.bf16.mxu0 0
  %2542 = vmatmul.mubr.bf16.gmra.mrb[0].mxu0 %v2495
  %v2543 = vpop.f32.mrb[0].mxu0
  %v2544 = vadd.f32 0.0, %v2543
  %v2545 = vpop.f32.mrb[0].mxu0
  %v2546 = vadd.f32 0.0, %v2545
  %v2547 = vpop.f32.mrb[0].mxu0
  %v2548 = vpop.f32.mrb[0].mxu0
  %2549 = vdwg.mxu0
  %2550 = vmatprep.subr.bf16.mxu0 %v2484
  %2551 = vmatpush1.bf16.msra.mxu0 %v2483
  %2552 = vmatprep.subr.bf16.mxu0 %v2488
  %2553 = vmatpush1.bf16.msra.mxu0 %v2487
  %2554 = vmatprep.subr.bf16.mxu0 %v2507
  %2555 = vmatpush1.bf16.msra.mxu0 %v2504
  %2556 = vmatprep.subr.bf16.mxu0 0
  %2557 = vmatpush1.bf16.msra.mxu0 0
  %2558 = vmatprep.subr.bf16.mxu0 0
  %2559 = vmatpush1.bf16.msra.mxu0 0
  %2560 = vmatprep.subr.bf16.mxu0 0
  %2561 = vmatpush1.bf16.msra.mxu0 0
  %2562 = vmatprep.subr.bf16.mxu0 0
  %2563 = vmatpush1.bf16.msra.mxu0 0
  %2564 = vmatprep.subr.bf16.mxu0 0
  %2565 = vmatpush1.bf16.msra.mxu0 0
  %2566 = vmatprep.subr.bf16.mxu0 0
  %2567 = vmatpush1.bf16.msra.mxu0 0
  %2568 = vmatprep.subr.bf16.mxu0 0
  %2569 = vmatpush1.bf16.msra.mxu0 0
  %2570 = vmatprep.subr.bf16.mxu0 0
  %2571 = vmatpush1.bf16.msra.mxu0 0
  %2572 = vmatprep.subr.bf16.mxu0 0
  %2573 = vmatpush1.bf16.msra.mxu0 0
  %2574 = vmatprep.subr.bf16.mxu0 0
  %2575 = vmatpush1.bf16.msra.mxu0 0
  %2576 = vmatprep.subr.bf16.mxu0 0
  %2577 = vmatpush1.bf16.msra.mxu0 0
  %2578 = vmatprep.subr.bf16.mxu0 0
  %2579 = vmatpush1.bf16.msra.mxu0 0
  %2580 = vmatprep.subr.bf16.mxu0 0
  %2581 = vmatpush1.bf16.msra.mxu0 0
  %2582 = vmatprep.mubr.bf16.mxu0 0
  %2583 = vmatmul.mubr.bf16.gmra.mrb[0].mxu0 %v2495
  %v2584 = vpop.f32.mrb[0].mxu0
  %v2585 = vadd.f32 0.0, %v2584
  %v2586 = vpop.f32.mrb[0].mxu0
  %v2587 = vadd.f32 0.0, %v2586
  %v2588 = vpop.f32.mrb[0].mxu0
  %v2589 = vpop.f32.mrb[0].mxu0
  %2590 = vdwg.mxu0
  %v2591 = vmax.f32 %v2544, 0.0
  %v2592 = vmax.f32 %v2546, 0.0
  %v2593 = vmax.f32 %v2585, 0.0
  %v2594 = vmax.f32 %v2587, 0.0
  %v2599 = vcombine.low %v2591, %v2592
  %v2600 = vcombine.low %v2593, %v2594
  %2603 = vst [vmem:[%s13] sm:$0xff] %v2599
  %2604 = vst [vmem:[%s13 + $0x8] sm:$0xff] %v2600
  %v2605 = vld [vmem:[%s11] sm:$0xff]
  %v2606 = vld [vmem:[%s11 + $0x8] sm:$0xff]
  %v2607 = vld [vmem:[%s11 + $0x10] sm:$0xff]
  %v2608 = vld [vmem:[%s11 + $0x18] sm:$0xff]
  %v2609 = vld [vmem:[%s11 + $0x20] sm:$0xff]
  %v2610 = vld [vmem:[%s11 + $0x28] sm:$0xff]
  %v2611 = vld [vmem:[%s11 + $0x30] sm:$0xff]
  %v2612 = vld [vmem:[%s11 + $0x38] sm:$0xff]
  %v2613 = vld [vmem:[%s11 + $0x40] sm:$0xff]
  %v2614 = vld [vmem:[%s11 + $0x48] sm:$0xff]
  %v2615 = vld [vmem:[%s11 + $0x50] sm:$0xff]
  %v2616 = vld [vmem:[%s11 + $0x58] sm:$0xff]
  %v2617 = vld [vmem:[%s11 + $0x60] sm:$0xff]
  %v2618 = vld [vmem:[%s11 + $0x68] sm:$0xff]
  %v2619 = vld [vmem:[%s11 + $0x70] sm:$0xff]
  %v2620 = vld [vmem:[%s11 + $0x78] sm:$0xff]
  %v2621 = vld [vmem:[%s11 + $0x80] sm:$0xff]
  %v2622 = vld [vmem:[%s11 + $0x88] sm:$0xff]
  %v2623 = vld [vmem:[%s11 + $0x90] sm:$0xff]
  %v2624 = vld [vmem:[%s11 + $0x98] sm:$0xff]
  %v2625 = vld [vmem:[%s11 + $0xa0] sm:$0xff]
  %v2626 = vld [vmem:[%s11 + $0xa8] sm:$0xff]
  %v2627 = vld [vmem:[%s11 + $0xb0] sm:$0xff]
  %v2628 = vld [vmem:[%s11 + $0xb8] sm:$0xff]
  %v2629 = vld [vmem:[%s11 + $0xc0] sm:$0x1]
  %v2630 = vld [vmem:[%s11 + $0xc8] sm:$0x1]
  %v2631 = vld [vmem:[%s11 + $0xd0] sm:$0x1]
  %v2632 = vld [vmem:[%s11 + $0xd8] sm:$0x1]
  %2633 = vrot.lane.b32.xlu0 %v2591, 51
  %v2634 = vpop.permute.xlu0 %2633
  %2635 = vrot.lane.b32.xlu0 %v2592, 51
  %v2636 = vpop.permute.xlu0 %2635
  %2637 = vrot.lane.b32.xlu0 %v2593, 51
  %v2638 = vpop.permute.xlu0 %2637
  %2639 = vrot.lane.b32.xlu0 %v2594, 51
  %v2640 = vpop.permute.xlu0 %2639
  %vm2641 = vcmp.lt.s32.totalorder %v68, 51
  %v2642 = vsel %vm2641, %v2638, %v2640
  %v2643 = vsel %vm2641, %v2636, %v2638
  %v2644 = vsel %vm2641, %v2634, %v2636
  %v2645 = vsel %vm2641, %v2640, %v2634
  %v2646 = vlaneseq
  %v2647 = vshrl.u32 %v2646, 7
  %v2648 = vsub.s32 0, %v2647
  %v2649 = vrot.slane %v2605, %v2648
  %v2650 = vlaneseq
  %v2651 = vshrl.u32 %v2650, 7
  %v2652 = vsub.s32 0, %v2651
  %v2653 = vrot.slane %v2606, %v2652
  %v2654 = vlaneseq
  %v2655 = vshrl.u32 %v2654, 7
  %v2656 = vsub.s32 0, %v2655
  %v2657 = vrot.slane %v2607, %v2656
  %v2658 = vlaneseq
  %v2659 = vshrl.u32 %v2658, 7
  %v2660 = vsub.s32 0, %v2659
  %v2661 = vrot.slane %v2608, %v2660
  %v2662 = vmul.f32 %v2645, %v2649
  %v2663 = vmul.f32 %v2644, %v2653
  %v2664 = vmul.f32 %v2643, %v2657
  %v2665 = vmul.f32 %v2642, %v2661
  %2666 = vrot.lane.b32.xlu0 %v2591, 50
  %v2667 = vpop.permute.xlu0 %2666
  %2668 = vrot.lane.b32.xlu0 %v2592, 50
  %v2669 = vpop.permute.xlu0 %2668
  %2670 = vrot.lane.b32.xlu0 %v2593, 50
  %v2671 = vpop.permute.xlu0 %2670
  %2672 = vrot.lane.b32.xlu0 %v2594, 50
  %v2673 = vpop.permute.xlu0 %2672
  %vm2674 = vcmp.lt.s32.totalorder %v68, 50
  %v2675 = vsel %vm2674, %v2671, %v2673
  %v2676 = vsel %vm2674, %v2669, %v2671
  %v2677 = vsel %vm2674, %v2667, %v2669
  %v2678 = vsel %vm2674, %v2673, %v2667
  %v2679 = vlaneseq
  %v2680 = vshrl.u32 %v2679, 7
  %v2681 = vsub.s32 1, %v2680
  %v2682 = vrot.slane %v2605, %v2681
  %v2683 = vlaneseq
  %v2684 = vshrl.u32 %v2683, 7
  %v2685 = vsub.s32 1, %v2684
  %v2686 = vrot.slane %v2606, %v2685
  %v2687 = vlaneseq
  %v2688 = vshrl.u32 %v2687, 7
  %v2689 = vsub.s32 1, %v2688
  %v2690 = vrot.slane %v2607, %v2689
  %v2691 = vlaneseq
  %v2692 = vshrl.u32 %v2691, 7
  %v2693 = vsub.s32 1, %v2692
  %v2694 = vrot.slane %v2608, %v2693
  %v2695 = vmul.f32 %v2678, %v2682
  %v2696 = vmul.f32 %v2677, %v2686
  %v2697 = vmul.f32 %v2676, %v2690
  %v2698 = vmul.f32 %v2675, %v2694
  %2699 = vrot.lane.b32.xlu0 %v2591, 49
  %v2700 = vpop.permute.xlu0 %2699
  %2701 = vrot.lane.b32.xlu0 %v2592, 49
  %v2702 = vpop.permute.xlu0 %2701
  %2703 = vrot.lane.b32.xlu0 %v2593, 49
  %v2704 = vpop.permute.xlu0 %2703
  %2705 = vrot.lane.b32.xlu0 %v2594, 49
  %v2706 = vpop.permute.xlu0 %2705
  %vm2707 = vcmp.lt.s32.totalorder %v68, 49
  %v2708 = vsel %vm2707, %v2704, %v2706
  %v2709 = vsel %vm2707, %v2702, %v2704
  %v2710 = vsel %vm2707, %v2700, %v2702
  %v2711 = vsel %vm2707, %v2706, %v2700
  %v2712 = vlaneseq
  %v2713 = vshrl.u32 %v2712, 7
  %v2714 = vsub.s32 2, %v2713
  %v2715 = vrot.slane %v2605, %v2714
  %v2716 = vlaneseq
  %v2717 = vshrl.u32 %v2716, 7
  %v2718 = vsub.s32 2, %v2717
  %v2719 = vrot.slane %v2606, %v2718
  %v2720 = vlaneseq
  %v2721 = vshrl.u32 %v2720, 7
  %v2722 = vsub.s32 2, %v2721
  %v2723 = vrot.slane %v2607, %v2722
  %v2724 = vlaneseq
  %v2725 = vshrl.u32 %v2724, 7
  %v2726 = vsub.s32 2, %v2725
  %v2727 = vrot.slane %v2608, %v2726
  %v2728 = vmul.f32 %v2711, %v2715
  %v2729 = vmul.f32 %v2710, %v2719
  %v2730 = vmul.f32 %v2709, %v2723
  %v2731 = vmul.f32 %v2708, %v2727
  %2732 = vrot.lane.b32.xlu0 %v2591, 48
  %v2733 = vpop.permute.xlu0 %2732
  %2734 = vrot.lane.b32.xlu0 %v2592, 48
  %v2735 = vpop.permute.xlu0 %2734
  %2736 = vrot.lane.b32.xlu0 %v2593, 48
  %v2737 = vpop.permute.xlu0 %2736
  %2738 = vrot.lane.b32.xlu0 %v2594, 48
  %v2739 = vpop.permute.xlu0 %2738
  %vm2740 = vcmp.lt.s32.totalorder %v68, 48
  %v2741 = vsel %vm2740, %v2737, %v2739
  %v2742 = vsel %vm2740, %v2735, %v2737
  %v2743 = vsel %vm2740, %v2733, %v2735
  %v2744 = vsel %vm2740, %v2739, %v2733
  %v2745 = vlaneseq
  %v2746 = vshrl.u32 %v2745, 7
  %v2747 = vsub.s32 3, %v2746
  %v2748 = vrot.slane %v2605, %v2747
  %v2749 = vlaneseq
  %v2750 = vshrl.u32 %v2749, 7
  %v2751 = vsub.s32 3, %v2750
  %v2752 = vrot.slane %v2606, %v2751
  %v2753 = vlaneseq
  %v2754 = vshrl.u32 %v2753, 7
  %v2755 = vsub.s32 3, %v2754
  %v2756 = vrot.slane %v2607, %v2755
  %v2757 = vlaneseq
  %v2758 = vshrl.u32 %v2757, 7
  %v2759 = vsub.s32 3, %v2758
  %v2760 = vrot.slane %v2608, %v2759
  %v2761 = vmul.f32 %v2744, %v2748
  %v2762 = vmul.f32 %v2743, %v2752
  %v2763 = vmul.f32 %v2742, %v2756
  %v2764 = vmul.f32 %v2741, %v2760
  %2765 = vrot.lane.b32.xlu0 %v2591, 47
  %v2766 = vpop.permute.xlu0 %2765
  %2767 = vrot.lane.b32.xlu0 %v2592, 47
  %v2768 = vpop.permute.xlu0 %2767
  %2769 = vrot.lane.b32.xlu0 %v2593, 47
  %v2770 = vpop.permute.xlu0 %2769
  %2771 = vrot.lane.b32.xlu0 %v2594, 47
  %v2772 = vpop.permute.xlu0 %2771
  %vm2773 = vcmp.lt.s32.totalorder %v68, 47
  %v2774 = vsel %vm2773, %v2770, %v2772
  %v2775 = vsel %vm2773, %v2768, %v2770
  %v2776 = vsel %vm2773, %v2766, %v2768
  %v2777 = vsel %vm2773, %v2772, %v2766
  %v2778 = vlaneseq
  %v2779 = vshrl.u32 %v2778, 7
  %v2780 = vsub.s32 4, %v2779
  %v2781 = vrot.slane %v2605, %v2780
  %v2782 = vlaneseq
  %v2783 = vshrl.u32 %v2782, 7
  %v2784 = vsub.s32 4, %v2783
  %v2785 = vrot.slane %v2606, %v2784
  %v2786 = vlaneseq
  %v2787 = vshrl.u32 %v2786, 7
  %v2788 = vsub.s32 4, %v2787
  %v2789 = vrot.slane %v2607, %v2788
  %v2790 = vlaneseq
  %v2791 = vshrl.u32 %v2790, 7
  %v2792 = vsub.s32 4, %v2791
  %v2793 = vrot.slane %v2608, %v2792
  %v2794 = vmul.f32 %v2777, %v2781
  %v2795 = vmul.f32 %v2776, %v2785
  %v2796 = vmul.f32 %v2775, %v2789
  %v2797 = vmul.f32 %v2774, %v2793
  %2798 = vrot.lane.b32.xlu0 %v2591, 46
  %v2799 = vpop.permute.xlu0 %2798
  %2800 = vrot.lane.b32.xlu0 %v2592, 46
  %v2801 = vpop.permute.xlu0 %2800
  %2802 = vrot.lane.b32.xlu0 %v2593, 46
  %v2803 = vpop.permute.xlu0 %2802
  %2804 = vrot.lane.b32.xlu0 %v2594, 46
  %v2805 = vpop.permute.xlu0 %2804
  %vm2806 = vcmp.lt.s32.totalorder %v68, 46
  %v2807 = vsel %vm2806, %v2803, %v2805
  %v2808 = vsel %vm2806, %v2801, %v2803
  %v2809 = vsel %vm2806, %v2799, %v2801
  %v2810 = vsel %vm2806, %v2805, %v2799
  %v2811 = vlaneseq
  %v2812 = vshrl.u32 %v2811, 7
  %v2813 = vsub.s32 5, %v2812
  %v2814 = vrot.slane %v2605, %v2813
  %v2815 = vlaneseq
  %v2816 = vshrl.u32 %v2815, 7
  %v2817 = vsub.s32 5, %v2816
  %v2818 = vrot.slane %v2606, %v2817
  %v2819 = vlaneseq
  %v2820 = vshrl.u32 %v2819, 7
  %v2821 = vsub.s32 5, %v2820
  %v2822 = vrot.slane %v2607, %v2821
  %v2823 = vlaneseq
  %v2824 = vshrl.u32 %v2823, 7
  %v2825 = vsub.s32 5, %v2824
  %v2826 = vrot.slane %v2608, %v2825
  %v2827 = vmul.f32 %v2810, %v2814
  %v2828 = vmul.f32 %v2809, %v2818
  %v2829 = vmul.f32 %v2808, %v2822
  %v2830 = vmul.f32 %v2807, %v2826
  %2831 = vrot.lane.b32.xlu0 %v2591, 45
  %v2832 = vpop.permute.xlu0 %2831
  %2833 = vrot.lane.b32.xlu0 %v2592, 45
  %v2834 = vpop.permute.xlu0 %2833
  %2835 = vrot.lane.b32.xlu0 %v2593, 45
  %v2836 = vpop.permute.xlu0 %2835
  %2837 = vrot.lane.b32.xlu0 %v2594, 45
  %v2838 = vpop.permute.xlu0 %2837
  %vm2839 = vcmp.lt.s32.totalorder %v68, 45
  %v2840 = vsel %vm2839, %v2836, %v2838
  %v2841 = vsel %vm2839, %v2834, %v2836
  %v2842 = vsel %vm2839, %v2832, %v2834
  %v2843 = vsel %vm2839, %v2838, %v2832
  %v2844 = vlaneseq
  %v2845 = vshrl.u32 %v2844, 7
  %v2846 = vsub.s32 6, %v2845
  %v2847 = vrot.slane %v2605, %v2846
  %v2848 = vlaneseq
  %v2849 = vshrl.u32 %v2848, 7
  %v2850 = vsub.s32 6, %v2849
  %v2851 = vrot.slane %v2606, %v2850
  %v2852 = vlaneseq
  %v2853 = vshrl.u32 %v2852, 7
  %v2854 = vsub.s32 6, %v2853
  %v2855 = vrot.slane %v2607, %v2854
  %v2856 = vlaneseq
  %v2857 = vshrl.u32 %v2856, 7
  %v2858 = vsub.s32 6, %v2857
  %v2859 = vrot.slane %v2608, %v2858
  %v2860 = vmul.f32 %v2843, %v2847
  %v2861 = vmul.f32 %v2842, %v2851
  %v2862 = vmul.f32 %v2841, %v2855
  %v2863 = vmul.f32 %v2840, %v2859
  %2864 = vrot.lane.b32.xlu0 %v2591, 35
  %v2865 = vpop.permute.xlu0 %2864
  %2866 = vrot.lane.b32.xlu0 %v2592, 35
  %v2867 = vpop.permute.xlu0 %2866
  %2868 = vrot.lane.b32.xlu0 %v2593, 35
  %v2869 = vpop.permute.xlu0 %2868
  %2870 = vrot.lane.b32.xlu0 %v2594, 35
  %v2871 = vpop.permute.xlu0 %2870
  %vm2872 = vcmp.lt.s32.totalorder %v68, 35
  %v2873 = vsel %vm2872, %v2869, %v2871
  %v2874 = vsel %vm2872, %v2867, %v2869
  %v2875 = vsel %vm2872, %v2865, %v2867
  %v2876 = vsel %vm2872, %v2871, %v2865
  %v2877 = vlaneseq
  %v2878 = vshrl.u32 %v2877, 7
  %v2879 = vsub.s32 7, %v2878
  %v2880 = vrot.slane %v2605, %v2879
  %v2881 = vlaneseq
  %v2882 = vshrl.u32 %v2881, 7
  %v2883 = vsub.s32 7, %v2882
  %v2884 = vrot.slane %v2606, %v2883
  %v2885 = vlaneseq
  %v2886 = vshrl.u32 %v2885, 7
  %v2887 = vsub.s32 7, %v2886
  %v2888 = vrot.slane %v2607, %v2887
  %v2889 = vlaneseq
  %v2890 = vshrl.u32 %v2889, 7
  %v2891 = vsub.s32 7, %v2890
  %v2892 = vrot.slane %v2608, %v2891
  %v2893 = vmul.f32 %v2876, %v2880
  %v2894 = vmul.f32 %v2875, %v2884
  %v2895 = vmul.f32 %v2874, %v2888
  %v2896 = vmul.f32 %v2873, %v2892
  %2897 = vrot.lane.b32.xlu0 %v2591, 34
  %v2898 = vpop.permute.xlu0 %2897
  %2899 = vrot.lane.b32.xlu0 %v2592, 34
  %v2900 = vpop.permute.xlu0 %2899
  %2901 = vrot.lane.b32.xlu0 %v2593, 34
  %v2902 = vpop.permute.xlu0 %2901
  %2903 = vrot.lane.b32.xlu0 %v2594, 34
  %v2904 = vpop.permute.xlu0 %2903
  %v2905 = vsel %vm69, %v2902, %v2904
  %v2906 = vsel %vm69, %v2900, %v2902
  %v2907 = vsel %vm69, %v2898, %v2900
  %v2908 = vsel %vm69, %v2904, %v2898
  %v2909 = vlaneseq
  %v2910 = vshrl.u32 %v2909, 7
  %v2911 = vsub.s32 0, %v2910
  %v2912 = vrot.slane %v2609, %v2911
  %v2913 = vlaneseq
  %v2914 = vshrl.u32 %v2913, 7
  %v2915 = vsub.s32 0, %v2914
  %v2916 = vrot.slane %v2610, %v2915
  %v2917 = vlaneseq
  %v2918 = vshrl.u32 %v2917, 7
  %v2919 = vsub.s32 0, %v2918
  %v2920 = vrot.slane %v2611, %v2919
  %v2921 = vlaneseq
  %v2922 = vshrl.u32 %v2921, 7
  %v2923 = vsub.s32 0, %v2922
  %v2924 = vrot.slane %v2612, %v2923
  %v2925 = vmul.f32 %v2908, %v2912
  %v2926 = vmul.f32 %v2907, %v2916
  %v2927 = vmul.f32 %v2906, %v2920
  %v2928 = vmul.f32 %v2905, %v2924
  %2929 = vrot.lane.b32.xlu0 %v2591, 33
  %v2930 = vpop.permute.xlu0 %2929
  %2931 = vrot.lane.b32.xlu0 %v2592, 33
  %v2932 = vpop.permute.xlu0 %2931
  %2933 = vrot.lane.b32.xlu0 %v2593, 33
  %v2934 = vpop.permute.xlu0 %2933
  %2935 = vrot.lane.b32.xlu0 %v2594, 33
  %v2936 = vpop.permute.xlu0 %2935
  %vm2937 = vcmp.lt.s32.totalorder %v68, 33
  %v2938 = vsel %vm2937, %v2934, %v2936
  %v2939 = vsel %vm2937, %v2932, %v2934
  %v2940 = vsel %vm2937, %v2930, %v2932
  %v2941 = vsel %vm2937, %v2936, %v2930
  %v2942 = vlaneseq
  %v2943 = vshrl.u32 %v2942, 7
  %v2944 = vsub.s32 1, %v2943
  %v2945 = vrot.slane %v2609, %v2944
  %v2946 = vlaneseq
  %v2947 = vshrl.u32 %v2946, 7
  %v2948 = vsub.s32 1, %v2947
  %v2949 = vrot.slane %v2610, %v2948
  %v2950 = vlaneseq
  %v2951 = vshrl.u32 %v2950, 7
  %v2952 = vsub.s32 1, %v2951
  %v2953 = vrot.slane %v2611, %v2952
  %v2954 = vlaneseq
  %v2955 = vshrl.u32 %v2954, 7
  %v2956 = vsub.s32 1, %v2955
  %v2957 = vrot.slane %v2612, %v2956
  %v2958 = vmul.f32 %v2941, %v2945
  %v2959 = vmul.f32 %v2940, %v2949
  %v2960 = vmul.f32 %v2939, %v2953
  %v2961 = vmul.f32 %v2938, %v2957
  %2962 = vrot.lane.b32.xlu0 %v2591, 32
  %v2963 = vpop.permute.xlu0 %2962
  %2964 = vrot.lane.b32.xlu0 %v2592, 32
  %v2965 = vpop.permute.xlu0 %2964
  %2966 = vrot.lane.b32.xlu0 %v2593, 32
  %v2967 = vpop.permute.xlu0 %2966
  %2968 = vrot.lane.b32.xlu0 %v2594, 32
  %v2969 = vpop.permute.xlu0 %2968
  %v2970 = vsel %vm102, %v2967, %v2969
  %v2971 = vsel %vm102, %v2965, %v2967
  %v2972 = vsel %vm102, %v2963, %v2965
  %v2973 = vsel %vm102, %v2969, %v2963
  %v2974 = vlaneseq
  %v2975 = vshrl.u32 %v2974, 7
  %v2976 = vsub.s32 2, %v2975
  %v2977 = vrot.slane %v2609, %v2976
  %v2978 = vlaneseq
  %v2979 = vshrl.u32 %v2978, 7
  %v2980 = vsub.s32 2, %v2979
  %v2981 = vrot.slane %v2610, %v2980
  %v2982 = vlaneseq
  %v2983 = vshrl.u32 %v2982, 7
  %v2984 = vsub.s32 2, %v2983
  %v2985 = vrot.slane %v2611, %v2984
  %v2986 = vlaneseq
  %v2987 = vshrl.u32 %v2986, 7
  %v2988 = vsub.s32 2, %v2987
  %v2989 = vrot.slane %v2612, %v2988
  %v2990 = vmul.f32 %v2973, %v2977
  %v2991 = vmul.f32 %v2972, %v2981
  %v2992 = vmul.f32 %v2971, %v2985
  %v2993 = vmul.f32 %v2970, %v2989
  %2994 = vrot.lane.b32.xlu0 %v2591, 31
  %v2995 = vpop.permute.xlu0 %2994
  %2996 = vrot.lane.b32.xlu0 %v2592, 31
  %v2997 = vpop.permute.xlu0 %2996
  %2998 = vrot.lane.b32.xlu0 %v2593, 31
  %v2999 = vpop.permute.xlu0 %2998
  %3000 = vrot.lane.b32.xlu0 %v2594, 31
  %v3001 = vpop.permute.xlu0 %3000
  %vm3002 = vcmp.lt.s32.totalorder %v68, 31
  %v3003 = vsel %vm3002, %v2999, %v3001
  %v3004 = vsel %vm3002, %v2997, %v2999
  %v3005 = vsel %vm3002, %v2995, %v2997
  %v3006 = vsel %vm3002, %v3001, %v2995
  %v3007 = vlaneseq
  %v3008 = vshrl.u32 %v3007, 7
  %v3009 = vsub.s32 3, %v3008
  %v3010 = vrot.slane %v2609, %v3009
  %v3011 = vlaneseq
  %v3012 = vshrl.u32 %v3011, 7
  %v3013 = vsub.s32 3, %v3012
  %v3014 = vrot.slane %v2610, %v3013
  %v3015 = vlaneseq
  %v3016 = vshrl.u32 %v3015, 7
  %v3017 = vsub.s32 3, %v3016
  %v3018 = vrot.slane %v2611, %v3017
  %v3019 = vlaneseq
  %v3020 = vshrl.u32 %v3019, 7
  %v3021 = vsub.s32 3, %v3020
  %v3022 = vrot.slane %v2612, %v3021
  %v3023 = vmul.f32 %v3006, %v3010
  %v3024 = vmul.f32 %v3005, %v3014
  %v3025 = vmul.f32 %v3004, %v3018
  %v3026 = vmul.f32 %v3003, %v3022
  %3027 = vrot.lane.b32.xlu0 %v2591, 30
  %v3028 = vpop.permute.xlu0 %3027
  %3029 = vrot.lane.b32.xlu0 %v2592, 30
  %v3030 = vpop.permute.xlu0 %3029
  %3031 = vrot.lane.b32.xlu0 %v2593, 30
  %v3032 = vpop.permute.xlu0 %3031
  %3033 = vrot.lane.b32.xlu0 %v2594, 30
  %v3034 = vpop.permute.xlu0 %3033
  %v3035 = vsel %vm135, %v3032, %v3034
  %v3036 = vsel %vm135, %v3030, %v3032
  %v3037 = vsel %vm135, %v3028, %v3030
  %v3038 = vsel %vm135, %v3034, %v3028
  %v3039 = vlaneseq
  %v3040 = vshrl.u32 %v3039, 7
  %v3041 = vsub.s32 4, %v3040
  %v3042 = vrot.slane %v2609, %v3041
  %v3043 = vlaneseq
  %v3044 = vshrl.u32 %v3043, 7
  %v3045 = vsub.s32 4, %v3044
  %v3046 = vrot.slane %v2610, %v3045
  %v3047 = vlaneseq
  %v3048 = vshrl.u32 %v3047, 7
  %v3049 = vsub.s32 4, %v3048
  %v3050 = vrot.slane %v2611, %v3049
  %v3051 = vlaneseq
  %v3052 = vshrl.u32 %v3051, 7
  %v3053 = vsub.s32 4, %v3052
  %v3054 = vrot.slane %v2612, %v3053
  %v3055 = vmul.f32 %v3038, %v3042
  %v3056 = vmul.f32 %v3037, %v3046
  %v3057 = vmul.f32 %v3036, %v3050
  %v3058 = vmul.f32 %v3035, %v3054
  %3059 = vrot.lane.b32.xlu0 %v2591, 29
  %v3060 = vpop.permute.xlu0 %3059
  %3061 = vrot.lane.b32.xlu0 %v2592, 29
  %v3062 = vpop.permute.xlu0 %3061
  %3063 = vrot.lane.b32.xlu0 %v2593, 29
  %v3064 = vpop.permute.xlu0 %3063
  %3065 = vrot.lane.b32.xlu0 %v2594, 29
  %v3066 = vpop.permute.xlu0 %3065
  %vm3067 = vcmp.lt.s32.totalorder %v68, 29
  %v3068 = vsel %vm3067, %v3064, %v3066
  %v3069 = vsel %vm3067, %v3062, %v3064
  %v3070 = vsel %vm3067, %v3060, %v3062
  %v3071 = vsel %vm3067, %v3066, %v3060
  %v3072 = vlaneseq
  %v3073 = vshrl.u32 %v3072, 7
  %v3074 = vsub.s32 5, %v3073
  %v3075 = vrot.slane %v2609, %v3074
  %v3076 = vlaneseq
  %v3077 = vshrl.u32 %v3076, 7
  %v3078 = vsub.s32 5, %v3077
  %v3079 = vrot.slane %v2610, %v3078
  %v3080 = vlaneseq
  %v3081 = vshrl.u32 %v3080, 7
  %v3082 = vsub.s32 5, %v3081
  %v3083 = vrot.slane %v2611, %v3082
  %v3084 = vlaneseq
  %v3085 = vshrl.u32 %v3084, 7
  %v3086 = vsub.s32 5, %v3085
  %v3087 = vrot.slane %v2612, %v3086
  %v3088 = vmul.f32 %v3071, %v3075
  %v3089 = vmul.f32 %v3070, %v3079
  %v3090 = vmul.f32 %v3069, %v3083
  %v3091 = vmul.f32 %v3068, %v3087
  %3092 = vrot.lane.b32.xlu0 %v2591, 19
  %v3093 = vpop.permute.xlu0 %3092
  %3094 = vrot.lane.b32.xlu0 %v2592, 19
  %v3095 = vpop.permute.xlu0 %3094
  %3096 = vrot.lane.b32.xlu0 %v2593, 19
  %v3097 = vpop.permute.xlu0 %3096
  %3098 = vrot.lane.b32.xlu0 %v2594, 19
  %v3099 = vpop.permute.xlu0 %3098
  %vm3100 = vcmp.lt.s32.totalorder %v68, 19
  %v3101 = vsel %vm3100, %v3097, %v3099
  %v3102 = vsel %vm3100, %v3095, %v3097
  %v3103 = vsel %vm3100, %v3093, %v3095
  %v3104 = vsel %vm3100, %v3099, %v3093
  %v3105 = vlaneseq
  %v3106 = vshrl.u32 %v3105, 7
  %v3107 = vsub.s32 6, %v3106
  %v3108 = vrot.slane %v2609, %v3107
  %v3109 = vlaneseq
  %v3110 = vshrl.u32 %v3109, 7
  %v3111 = vsub.s32 6, %v3110
  %v3112 = vrot.slane %v2610, %v3111
  %v3113 = vlaneseq
  %v3114 = vshrl.u32 %v3113, 7
  %v3115 = vsub.s32 6, %v3114
  %v3116 = vrot.slane %v2611, %v3115
  %v3117 = vlaneseq
  %v3118 = vshrl.u32 %v3117, 7
  %v3119 = vsub.s32 6, %v3118
  %v3120 = vrot.slane %v2612, %v3119
  %v3121 = vmul.f32 %v3104, %v3108
  %v3122 = vmul.f32 %v3103, %v3112
  %v3123 = vmul.f32 %v3102, %v3116
  %v3124 = vmul.f32 %v3101, %v3120
  %3125 = vrot.lane.b32.xlu0 %v2591, 18
  %v3126 = vpop.permute.xlu0 %3125
  %3127 = vrot.lane.b32.xlu0 %v2592, 18
  %v3128 = vpop.permute.xlu0 %3127
  %3129 = vrot.lane.b32.xlu0 %v2593, 18
  %v3130 = vpop.permute.xlu0 %3129
  %3131 = vrot.lane.b32.xlu0 %v2594, 18
  %v3132 = vpop.permute.xlu0 %3131
  %vm3133 = vcmp.lt.s32.totalorder %v68, 18
  %v3134 = vsel %vm3133, %v3130, %v3132
  %v3135 = vsel %vm3133, %v3128, %v3130
  %v3136 = vsel %vm3133, %v3126, %v3128
  %v3137 = vsel %vm3133, %v3132, %v3126
  %v3138 = vlaneseq
  %v3139 = vshrl.u32 %v3138, 7
  %v3140 = vsub.s32 7, %v3139
  %v3141 = vrot.slane %v2609, %v3140
  %v3142 = vlaneseq
  %v3143 = vshrl.u32 %v3142, 7
  %v3144 = vsub.s32 7, %v3143
  %v3145 = vrot.slane %v2610, %v3144
  %v3146 = vlaneseq
  %v3147 = vshrl.u32 %v3146, 7
  %v3148 = vsub.s32 7, %v3147
  %v3149 = vrot.slane %v2611, %v3148
  %v3150 = vlaneseq
  %v3151 = vshrl.u32 %v3150, 7
  %v3152 = vsub.s32 7, %v3151
  %v3153 = vrot.slane %v2612, %v3152
  %v3154 = vmul.f32 %v3137, %v3141
  %v3155 = vmul.f32 %v3136, %v3145
  %v3156 = vmul.f32 %v3135, %v3149
  %v3157 = vmul.f32 %v3134, %v3153
  %3158 = vrot.lane.b32.xlu0 %v2591, 17
  %v3159 = vpop.permute.xlu0 %3158
  %3160 = vrot.lane.b32.xlu0 %v2592, 17
  %v3161 = vpop.permute.xlu0 %3160
  %3162 = vrot.lane.b32.xlu0 %v2593, 17
  %v3163 = vpop.permute.xlu0 %3162
  %3164 = vrot.lane.b32.xlu0 %v2594, 17
  %v3165 = vpop.permute.xlu0 %3164
  %v3166 = vsel %vm726, %v3163, %v3165
  %v3167 = vsel %vm726, %v3161, %v3163
  %v3168 = vsel %vm726, %v3159, %v3161
  %v3169 = vsel %vm726, %v3165, %v3159
  %v3170 = vlaneseq
  %v3171 = vshrl.u32 %v3170, 7
  %v3172 = vsub.s32 0, %v3171
  %v3173 = vrot.slane %v2613, %v3172
  %v3174 = vlaneseq
  %v3175 = vshrl.u32 %v3174, 7
  %v3176 = vsub.s32 0, %v3175
  %v3177 = vrot.slane %v2614, %v3176
  %v3178 = vlaneseq
  %v3179 = vshrl.u32 %v3178, 7
  %v3180 = vsub.s32 0, %v3179
  %v3181 = vrot.slane %v2615, %v3180
  %v3182 = vlaneseq
  %v3183 = vshrl.u32 %v3182, 7
  %v3184 = vsub.s32 0, %v3183
  %v3185 = vrot.slane %v2616, %v3184
  %v3186 = vmul.f32 %v3169, %v3173
  %v3187 = vmul.f32 %v3168, %v3177
  %v3188 = vmul.f32 %v3167, %v3181
  %v3189 = vmul.f32 %v3166, %v3185
  %3190 = vrot.lane.b32.xlu0 %v2591, 16
  %v3191 = vpop.permute.xlu0 %3190
  %3192 = vrot.lane.b32.xlu0 %v2592, 16
  %v3193 = vpop.permute.xlu0 %3192
  %3194 = vrot.lane.b32.xlu0 %v2593, 16
  %v3195 = vpop.permute.xlu0 %3194
  %3196 = vrot.lane.b32.xlu0 %v2594, 16
  %v3197 = vpop.permute.xlu0 %3196
  %v3198 = vsel %vm773, %v3195, %v3197
  %v3199 = vsel %vm773, %v3193, %v3195
  %v3200 = vsel %vm773, %v3191, %v3193
  %v3201 = vsel %vm773, %v3197, %v3191
  %v3202 = vlaneseq
  %v3203 = vshrl.u32 %v3202, 7
  %v3204 = vsub.s32 1, %v3203
  %v3205 = vrot.slane %v2613, %v3204
  %v3206 = vlaneseq
  %v3207 = vshrl.u32 %v3206, 7
  %v3208 = vsub.s32 1, %v3207
  %v3209 = vrot.slane %v2614, %v3208
  %v3210 = vlaneseq
  %v3211 = vshrl.u32 %v3210, 7
  %v3212 = vsub.s32 1, %v3211
  %v3213 = vrot.slane %v2615, %v3212
  %v3214 = vlaneseq
  %v3215 = vshrl.u32 %v3214, 7
  %v3216 = vsub.s32 1, %v3215
  %v3217 = vrot.slane %v2616, %v3216
  %v3218 = vmul.f32 %v3201, %v3205
  %v3219 = vmul.f32 %v3200, %v3209
  %v3220 = vmul.f32 %v3199, %v3213
  %v3221 = vmul.f32 %v3198, %v3217
  %3222 = vrot.lane.b32.xlu0 %v2591, 15
  %v3223 = vpop.permute.xlu0 %3222
  %3224 = vrot.lane.b32.xlu0 %v2592, 15
  %v3225 = vpop.permute.xlu0 %3224
  %3226 = vrot.lane.b32.xlu0 %v2593, 15
  %v3227 = vpop.permute.xlu0 %3226
  %3228 = vrot.lane.b32.xlu0 %v2594, 15
  %v3229 = vpop.permute.xlu0 %3228
  %v3230 = vsel %vm832, %v3227, %v3229
  %v3231 = vsel %vm832, %v3225, %v3227
  %v3232 = vsel %vm832, %v3223, %v3225
  %v3233 = vsel %vm832, %v3229, %v3223
  %v3234 = vlaneseq
  %v3235 = vshrl.u32 %v3234, 7
  %v3236 = vsub.s32 2, %v3235
  %v3237 = vrot.slane %v2613, %v3236
  %v3238 = vlaneseq
  %v3239 = vshrl.u32 %v3238, 7
  %v3240 = vsub.s32 2, %v3239
  %v3241 = vrot.slane %v2614, %v3240
  %v3242 = vlaneseq
  %v3243 = vshrl.u32 %v3242, 7
  %v3244 = vsub.s32 2, %v3243
  %v3245 = vrot.slane %v2615, %v3244
  %v3246 = vlaneseq
  %v3247 = vshrl.u32 %v3246, 7
  %v3248 = vsub.s32 2, %v3247
  %v3249 = vrot.slane %v2616, %v3248
  %v3250 = vmul.f32 %v3233, %v3237
  %v3251 = vmul.f32 %v3232, %v3241
  %v3252 = vmul.f32 %v3231, %v3245
  %v3253 = vmul.f32 %v3230, %v3249
  %3254 = vrot.lane.b32.xlu0 %v2591, 14
  %v3255 = vpop.permute.xlu0 %3254
  %3256 = vrot.lane.b32.xlu0 %v2592, 14
  %v3257 = vpop.permute.xlu0 %3256
  %3258 = vrot.lane.b32.xlu0 %v2593, 14
  %v3259 = vpop.permute.xlu0 %3258
  %3260 = vrot.lane.b32.xlu0 %v2594, 14
  %v3261 = vpop.permute.xlu0 %3260
  %vm3262 = vcmp.lt.s32.totalorder %v68, 14
  %v3263 = vsel %vm3262, %v3259, %v3261
  %v3264 = vsel %vm3262, %v3257, %v3259
  %v3265 = vsel %vm3262, %v3255, %v3257
  %v3266 = vsel %vm3262, %v3261, %v3255
  %v3267 = vlaneseq
  %v3268 = vshrl.u32 %v3267, 7
  %v3269 = vsub.s32 3, %v3268
  %v3270 = vrot.slane %v2613, %v3269
  %v3271 = vlaneseq
  %v3272 = vshrl.u32 %v3271, 7
  %v3273 = vsub.s32 3, %v3272
  %v3274 = vrot.slane %v2614, %v3273
  %v3275 = vlaneseq
  %v3276 = vshrl.u32 %v3275, 7
  %v3277 = vsub.s32 3, %v3276
  %v3278 = vrot.slane %v2615, %v3277
  %v3279 = vlaneseq
  %v3280 = vshrl.u32 %v3279, 7
  %v3281 = vsub.s32 3, %v3280
  %v3282 = vrot.slane %v2616, %v3281
  %v3283 = vmul.f32 %v3266, %v3270
  %v3284 = vmul.f32 %v3265, %v3274
  %v3285 = vmul.f32 %v3264, %v3278
  %v3286 = vmul.f32 %v3263, %v3282
  %3287 = vrot.lane.b32.xlu0 %v2591, 13
  %v3288 = vpop.permute.xlu0 %3287
  %3289 = vrot.lane.b32.xlu0 %v2592, 13
  %v3290 = vpop.permute.xlu0 %3289
  %3291 = vrot.lane.b32.xlu0 %v2593, 13
  %v3292 = vpop.permute.xlu0 %3291
  %3293 = vrot.lane.b32.xlu0 %v2594, 13
  %v3294 = vpop.permute.xlu0 %3293
  %vm3295 = vcmp.lt.s32.totalorder %v68, 13
  %v3296 = vsel %vm3295, %v3292, %v3294
  %v3297 = vsel %vm3295, %v3290, %v3292
  %v3298 = vsel %vm3295, %v3288, %v3290
  %v3299 = vsel %vm3295, %v3294, %v3288
  %v3300 = vlaneseq
  %v3301 = vshrl.u32 %v3300, 7
  %v3302 = vsub.s32 4, %v3301
  %v3303 = vrot.slane %v2613, %v3302
  %v3304 = vlaneseq
  %v3305 = vshrl.u32 %v3304, 7
  %v3306 = vsub.s32 4, %v3305
  %v3307 = vrot.slane %v2614, %v3306
  %v3308 = vlaneseq
  %v3309 = vshrl.u32 %v3308, 7
  %v3310 = vsub.s32 4, %v3309
  %v3311 = vrot.slane %v2615, %v3310
  %v3312 = vlaneseq
  %v3313 = vshrl.u32 %v3312, 7
  %v3314 = vsub.s32 4, %v3313
  %v3315 = vrot.slane %v2616, %v3314
  %v3316 = vmul.f32 %v3299, %v3303
  %v3317 = vmul.f32 %v3298, %v3307
  %v3318 = vmul.f32 %v3297, %v3311
  %v3319 = vmul.f32 %v3296, %v3315
  %3320 = vrot.lane.b32.xlu0 %v2591, 3
  %v3321 = vpop.permute.xlu0 %3320
  %3322 = vrot.lane.b32.xlu0 %v2592, 3
  %v3323 = vpop.permute.xlu0 %3322
  %3324 = vrot.lane.b32.xlu0 %v2593, 3
  %v3325 = vpop.permute.xlu0 %3324
  %3326 = vrot.lane.b32.xlu0 %v2594, 3
  %v3327 = vpop.permute.xlu0 %3326
  %vm3328 = vcmp.lt.s32.totalorder %v68, 3
  %v3329 = vsel %vm3328, %v3325, %v3327
  %v3330 = vsel %vm3328, %v3323, %v3325
  %v3331 = vsel %vm3328, %v3321, %v3323
  %v3332 = vsel %vm3328, %v3327, %v3321
  %v3333 = vlaneseq
  %v3334 = vshrl.u32 %v3333, 7
  %v3335 = vsub.s32 5, %v3334
  %v3336 = vrot.slane %v2613, %v3335
  %v3337 = vlaneseq
  %v3338 = vshrl.u32 %v3337, 7
  %v3339 = vsub.s32 5, %v3338
  %v3340 = vrot.slane %v2614, %v3339
  %v3341 = vlaneseq
  %v3342 = vshrl.u32 %v3341, 7
  %v3343 = vsub.s32 5, %v3342
  %v3344 = vrot.slane %v2615, %v3343
  %v3345 = vlaneseq
  %v3346 = vshrl.u32 %v3345, 7
  %v3347 = vsub.s32 5, %v3346
  %v3348 = vrot.slane %v2616, %v3347
  %v3349 = vmul.f32 %v3332, %v3336
  %v3350 = vmul.f32 %v3331, %v3340
  %v3351 = vmul.f32 %v3330, %v3344
  %v3352 = vmul.f32 %v3329, %v3348
  %3353 = vrot.lane.b32.xlu0 %v2591, 2
  %v3354 = vpop.permute.xlu0 %3353
  %3355 = vrot.lane.b32.xlu0 %v2592, 2
  %v3356 = vpop.permute.xlu0 %3355
  %3357 = vrot.lane.b32.xlu0 %v2593, 2
  %v3358 = vpop.permute.xlu0 %3357
  %3359 = vrot.lane.b32.xlu0 %v2594, 2
  %v3360 = vpop.permute.xlu0 %3359
  %v3361 = vsel %vm168, %v3358, %v3360
  %v3362 = vsel %vm168, %v3356, %v3358
  %v3363 = vsel %vm168, %v3354, %v3356
  %v3364 = vsel %vm168, %v3360, %v3354
  %v3365 = vlaneseq
  %v3366 = vshrl.u32 %v3365, 7
  %v3367 = vsub.s32 6, %v3366
  %v3368 = vrot.slane %v2613, %v3367
  %v3369 = vlaneseq
  %v3370 = vshrl.u32 %v3369, 7
  %v3371 = vsub.s32 6, %v3370
  %v3372 = vrot.slane %v2614, %v3371
  %v3373 = vlaneseq
  %v3374 = vshrl.u32 %v3373, 7
  %v3375 = vsub.s32 6, %v3374
  %v3376 = vrot.slane %v2615, %v3375
  %v3377 = vlaneseq
  %v3378 = vshrl.u32 %v3377, 7
  %v3379 = vsub.s32 6, %v3378
  %v3380 = vrot.slane %v2616, %v3379
  %v3381 = vmul.f32 %v3364, %v3368
  %v3382 = vmul.f32 %v3363, %v3372
  %v3383 = vmul.f32 %v3362, %v3376
  %v3384 = vmul.f32 %v3361, %v3380
  %3385 = vrot.lane.b32.xlu0 %v2591, 1
  %v3386 = vpop.permute.xlu0 %3385
  %3387 = vrot.lane.b32.xlu0 %v2592, 1
  %v3388 = vpop.permute.xlu0 %3387
  %3389 = vrot.lane.b32.xlu0 %v2593, 1
  %v3390 = vpop.permute.xlu0 %3389
  %3391 = vrot.lane.b32.xlu0 %v2594, 1
  %v3392 = vpop.permute.xlu0 %3391
  %v3393 = vsel %vm887, %v3390, %v3392
  %v3394 = vsel %vm887, %v3388, %v3390
  %v3395 = vsel %vm887, %v3386, %v3388
  %v3396 = vsel %vm887, %v3392, %v3386
  %v3397 = vlaneseq
  %v3398 = vshrl.u32 %v3397, 7
  %v3399 = vsub.s32 7, %v3398
  %v3400 = vrot.slane %v2613, %v3399
  %v3401 = vlaneseq
  %v3402 = vshrl.u32 %v3401, 7
  %v3403 = vsub.s32 7, %v3402
  %v3404 = vrot.slane %v2614, %v3403
  %v3405 = vlaneseq
  %v3406 = vshrl.u32 %v3405, 7
  %v3407 = vsub.s32 7, %v3406
  %v3408 = vrot.slane %v2615, %v3407
  %v3409 = vlaneseq
  %v3410 = vshrl.u32 %v3409, 7
  %v3411 = vsub.s32 7, %v3410
  %v3412 = vrot.slane %v2616, %v3411
  %v3413 = vmul.f32 %v3396, %v3400
  %v3414 = vmul.f32 %v3395, %v3404
  %v3415 = vmul.f32 %v3394, %v3408
  %v3416 = vmul.f32 %v3393, %v3412
  %v3417 = vlaneseq
  %v3418 = vshrl.u32 %v3417, 7
  %v3419 = vsub.s32 0, %v3418
  %v3420 = vrot.slane %v2617, %v3419
  %v3421 = vlaneseq
  %v3422 = vshrl.u32 %v3421, 7
  %v3423 = vsub.s32 0, %v3422
  %v3424 = vrot.slane %v2618, %v3423
  %v3425 = vlaneseq
  %v3426 = vshrl.u32 %v3425, 7
  %v3427 = vsub.s32 0, %v3426
  %v3428 = vrot.slane %v2619, %v3427
  %v3429 = vlaneseq
  %v3430 = vshrl.u32 %v3429, 7
  %v3431 = vsub.s32 0, %v3430
  %v3432 = vrot.slane %v2620, %v3431
  %v3433 = vmul.f32 %v2591, %v3420
  %v3434 = vmul.f32 %v2592, %v3424
  %v3435 = vmul.f32 %v2593, %v3428
  %v3436 = vmul.f32 %v2594, %v3432
  %3437 = vrot.lane.b32.xlu0 %v2591, 127
  %v3438 = vpop.permute.xlu0 %3437
  %3439 = vrot.lane.b32.xlu0 %v2592, 127
  %v3440 = vpop.permute.xlu0 %3439
  %3441 = vrot.lane.b32.xlu0 %v2593, 127
  %v3442 = vpop.permute.xlu0 %3441
  %3443 = vrot.lane.b32.xlu0 %v2594, 127
  %v3444 = vpop.permute.xlu0 %3443
  %v3445 = vsel %vm942, %v3442, %v3444
  %v3446 = vsel %vm942, %v3440, %v3442
  %v3447 = vsel %vm942, %v3438, %v3440
  %v3448 = vsel %vm942, %v3444, %v3438
  %v3449 = vlaneseq
  %v3450 = vshrl.u32 %v3449, 7
  %v3451 = vsub.s32 1, %v3450
  %v3452 = vrot.slane %v2617, %v3451
  %v3453 = vlaneseq
  %v3454 = vshrl.u32 %v3453, 7
  %v3455 = vsub.s32 1, %v3454
  %v3456 = vrot.slane %v2618, %v3455
  %v3457 = vlaneseq
  %v3458 = vshrl.u32 %v3457, 7
  %v3459 = vsub.s32 1, %v3458
  %v3460 = vrot.slane %v2619, %v3459
  %v3461 = vlaneseq
  %v3462 = vshrl.u32 %v3461, 7
  %v3463 = vsub.s32 1, %v3462
  %v3464 = vrot.slane %v2620, %v3463
  %v3465 = vmul.f32 %v3447, %v3452
  %v3466 = vmul.f32 %v3446, %v3456
  %v3467 = vmul.f32 %v3445, %v3460
  %v3468 = vmul.f32 %v3448, %v3464
  %3469 = vrot.lane.b32.xlu0 %v2591, 126
  %v3470 = vpop.permute.xlu0 %3469
  %3471 = vrot.lane.b32.xlu0 %v2592, 126
  %v3472 = vpop.permute.xlu0 %3471
  %3473 = vrot.lane.b32.xlu0 %v2593, 126
  %v3474 = vpop.permute.xlu0 %3473
  %3475 = vrot.lane.b32.xlu0 %v2594, 126
  %v3476 = vpop.permute.xlu0 %3475
  %v3477 = vsel %vm221, %v3474, %v3476
  %v3478 = vsel %vm221, %v3472, %v3474
  %v3479 = vsel %vm221, %v3470, %v3472
  %v3480 = vsel %vm221, %v3476, %v3470
  %v3481 = vlaneseq
  %v3482 = vshrl.u32 %v3481, 7
  %v3483 = vsub.s32 2, %v3482
  %v3484 = vrot.slane %v2617, %v3483
  %v3485 = vlaneseq
  %v3486 = vshrl.u32 %v3485, 7
  %v3487 = vsub.s32 2, %v3486
  %v3488 = vrot.slane %v2618, %v3487
  %v3489 = vlaneseq
  %v3490 = vshrl.u32 %v3489, 7
  %v3491 = vsub.s32 2, %v3490
  %v3492 = vrot.slane %v2619, %v3491
  %v3493 = vlaneseq
  %v3494 = vshrl.u32 %v3493, 7
  %v3495 = vsub.s32 2, %v3494
  %v3496 = vrot.slane %v2620, %v3495
  %v3497 = vmul.f32 %v3479, %v3484
  %v3498 = vmul.f32 %v3478, %v3488
  %v3499 = vmul.f32 %v3477, %v3492
  %v3500 = vmul.f32 %v3480, %v3496
  %3501 = vrot.lane.b32.xlu0 %v2591, 125
  %v3502 = vpop.permute.xlu0 %3501
  %3503 = vrot.lane.b32.xlu0 %v2592, 125
  %v3504 = vpop.permute.xlu0 %3503
  %3505 = vrot.lane.b32.xlu0 %v2593, 125
  %v3506 = vpop.permute.xlu0 %3505
  %3507 = vrot.lane.b32.xlu0 %v2594, 125
  %v3508 = vpop.permute.xlu0 %3507
  %vm3509 = vcmp.lt.s32.totalorder %v68, 125
  %v3510 = vsel %vm3509, %v3506, %v3508
  %v3511 = vsel %vm3509, %v3504, %v3506
  %v3512 = vsel %vm3509, %v3502, %v3504
  %v3513 = vsel %vm3509, %v3508, %v3502
  %v3514 = vlaneseq
  %v3515 = vshrl.u32 %v3514, 7
  %v3516 = vsub.s32 3, %v3515
  %v3517 = vrot.slane %v2617, %v3516
  %v3518 = vlaneseq
  %v3519 = vshrl.u32 %v3518, 7
  %v3520 = vsub.s32 3, %v3519
  %v3521 = vrot.slane %v2618, %v3520
  %v3522 = vlaneseq
  %v3523 = vshrl.u32 %v3522, 7
  %v3524 = vsub.s32 3, %v3523
  %v3525 = vrot.slane %v2619, %v3524
  %v3526 = vlaneseq
  %v3527 = vshrl.u32 %v3526, 7
  %v3528 = vsub.s32 3, %v3527
  %v3529 = vrot.slane %v2620, %v3528
  %v3530 = vmul.f32 %v3512, %v3517
  %v3531 = vmul.f32 %v3511, %v3521
  %v3532 = vmul.f32 %v3510, %v3525
  %v3533 = vmul.f32 %v3513, %v3529
  %3534 = vrot.lane.b32.xlu0 %v2591, 115
  %v3535 = vpop.permute.xlu0 %3534
  %3536 = vrot.lane.b32.xlu0 %v2592, 115
  %v3537 = vpop.permute.xlu0 %3536
  %3538 = vrot.lane.b32.xlu0 %v2593, 115
  %v3539 = vpop.permute.xlu0 %3538
  %3540 = vrot.lane.b32.xlu0 %v2594, 115
  %v3541 = vpop.permute.xlu0 %3540
  %vm3542 = vcmp.lt.s32.totalorder %v68, 115
  %v3543 = vsel %vm3542, %v3539, %v3541
  %v3544 = vsel %vm3542, %v3537, %v3539
  %v3545 = vsel %vm3542, %v3535, %v3537
  %v3546 = vsel %vm3542, %v3541, %v3535
  %v3547 = vlaneseq
  %v3548 = vshrl.u32 %v3547, 7
  %v3549 = vsub.s32 4, %v3548
  %v3550 = vrot.slane %v2617, %v3549
  %v3551 = vlaneseq
  %v3552 = vshrl.u32 %v3551, 7
  %v3553 = vsub.s32 4, %v3552
  %v3554 = vrot.slane %v2618, %v3553
  %v3555 = vlaneseq
  %v3556 = vshrl.u32 %v3555, 7
  %v3557 = vsub.s32 4, %v3556
  %v3558 = vrot.slane %v2619, %v3557
  %v3559 = vlaneseq
  %v3560 = vshrl.u32 %v3559, 7
  %v3561 = vsub.s32 4, %v3560
  %v3562 = vrot.slane %v2620, %v3561
  %v3563 = vmul.f32 %v3545, %v3550
  %v3564 = vmul.f32 %v3544, %v3554
  %v3565 = vmul.f32 %v3543, %v3558
  %v3566 = vmul.f32 %v3546, %v3562
  %3567 = vrot.lane.b32.xlu0 %v2591, 114
  %v3568 = vpop.permute.xlu0 %3567
  %3569 = vrot.lane.b32.xlu0 %v2592, 114
  %v3570 = vpop.permute.xlu0 %3569
  %3571 = vrot.lane.b32.xlu0 %v2593, 114
  %v3572 = vpop.permute.xlu0 %3571
  %3573 = vrot.lane.b32.xlu0 %v2594, 114
  %v3574 = vpop.permute.xlu0 %3573
  %vm3575 = vcmp.lt.s32.totalorder %v68, 114
  %v3576 = vsel %vm3575, %v3572, %v3574
  %v3577 = vsel %vm3575, %v3570, %v3572
  %v3578 = vsel %vm3575, %v3568, %v3570
  %v3579 = vsel %vm3575, %v3574, %v3568
  %v3580 = vlaneseq
  %v3581 = vshrl.u32 %v3580, 7
  %v3582 = vsub.s32 5, %v3581
  %v3583 = vrot.slane %v2617, %v3582
  %v3584 = vlaneseq
  %v3585 = vshrl.u32 %v3584, 7
  %v3586 = vsub.s32 5, %v3585
  %v3587 = vrot.slane %v2618, %v3586
  %v3588 = vlaneseq
  %v3589 = vshrl.u32 %v3588, 7
  %v3590 = vsub.s32 5, %v3589
  %v3591 = vrot.slane %v2619, %v3590
  %v3592 = vlaneseq
  %v3593 = vshrl.u32 %v3592, 7
  %v3594 = vsub.s32 5, %v3593
  %v3595 = vrot.slane %v2620, %v3594
  %v3596 = vmul.f32 %v3578, %v3583
  %v3597 = vmul.f32 %v3577, %v3587
  %v3598 = vmul.f32 %v3576, %v3591
  %v3599 = vmul.f32 %v3579, %v3595
  %3600 = vrot.lane.b32.xlu0 %v2591, 113
  %v3601 = vpop.permute.xlu0 %3600
  %3602 = vrot.lane.b32.xlu0 %v2592, 113
  %v3603 = vpop.permute.xlu0 %3602
  %3604 = vrot.lane.b32.xlu0 %v2593, 113
  %v3605 = vpop.permute.xlu0 %3604
  %3606 = vrot.lane.b32.xlu0 %v2594, 113
  %v3607 = vpop.permute.xlu0 %3606
  %v3608 = vsel %vm997, %v3605, %v3607
  %v3609 = vsel %vm997, %v3603, %v3605
  %v3610 = vsel %vm997, %v3601, %v3603
  %v3611 = vsel %vm997, %v3607, %v3601
  %v3612 = vlaneseq
  %v3613 = vshrl.u32 %v3612, 7
  %v3614 = vsub.s32 6, %v3613
  %v3615 = vrot.slane %v2617, %v3614
  %v3616 = vlaneseq
  %v3617 = vshrl.u32 %v3616, 7
  %v3618 = vsub.s32 6, %v3617
  %v3619 = vrot.slane %v2618, %v3618
  %v3620 = vlaneseq
  %v3621 = vshrl.u32 %v3620, 7
  %v3622 = vsub.s32 6, %v3621
  %v3623 = vrot.slane %v2619, %v3622
  %v3624 = vlaneseq
  %v3625 = vshrl.u32 %v3624, 7
  %v3626 = vsub.s32 6, %v3625
  %v3627 = vrot.slane %v2620, %v3626
  %v3628 = vmul.f32 %v3610, %v3615
  %v3629 = vmul.f32 %v3609, %v3619
  %v3630 = vmul.f32 %v3608, %v3623
  %v3631 = vmul.f32 %v3611, %v3627
  %3632 = vrot.lane.b32.xlu0 %v2591, 112
  %v3633 = vpop.permute.xlu0 %3632
  %3634 = vrot.lane.b32.xlu0 %v2592, 112
  %v3635 = vpop.permute.xlu0 %3634
  %3636 = vrot.lane.b32.xlu0 %v2593, 112
  %v3637 = vpop.permute.xlu0 %3636
  %3638 = vrot.lane.b32.xlu0 %v2594, 112
  %v3639 = vpop.permute.xlu0 %3638
  %v3640 = vsel %vm1052, %v3637, %v3639
  %v3641 = vsel %vm1052, %v3635, %v3637
  %v3642 = vsel %vm1052, %v3633, %v3635
  %v3643 = vsel %vm1052, %v3639, %v3633
  %v3644 = vlaneseq
  %v3645 = vshrl.u32 %v3644, 7
  %v3646 = vsub.s32 7, %v3645
  %v3647 = vrot.slane %v2617, %v3646
  %v3648 = vlaneseq
  %v3649 = vshrl.u32 %v3648, 7
  %v3650 = vsub.s32 7, %v3649
  %v3651 = vrot.slane %v2618, %v3650
  %v3652 = vlaneseq
  %v3653 = vshrl.u32 %v3652, 7
  %v3654 = vsub.s32 7, %v3653
  %v3655 = vrot.slane %v2619, %v3654
  %v3656 = vlaneseq
  %v3657 = vshrl.u32 %v3656, 7
  %v3658 = vsub.s32 7, %v3657
  %v3659 = vrot.slane %v2620, %v3658
  %v3660 = vmul.f32 %v3642, %v3647
  %v3661 = vmul.f32 %v3641, %v3651
  %v3662 = vmul.f32 %v3640, %v3655
  %v3663 = vmul.f32 %v3643, %v3659
  %3664 = vrot.lane.b32.xlu0 %v2591, 111
  %v3665 = vpop.permute.xlu0 %3664
  %3666 = vrot.lane.b32.xlu0 %v2592, 111
  %v3667 = vpop.permute.xlu0 %3666
  %3668 = vrot.lane.b32.xlu0 %v2593, 111
  %v3669 = vpop.permute.xlu0 %3668
  %3670 = vrot.lane.b32.xlu0 %v2594, 111
  %v3671 = vpop.permute.xlu0 %3670
  %v3672 = vsel %vm1107, %v3669, %v3671
  %v3673 = vsel %vm1107, %v3667, %v3669
  %v3674 = vsel %vm1107, %v3665, %v3667
  %v3675 = vsel %vm1107, %v3671, %v3665
  %v3676 = vlaneseq
  %v3677 = vshrl.u32 %v3676, 7
  %v3678 = vsub.s32 0, %v3677
  %v3679 = vrot.slane %v2621, %v3678
  %v3680 = vlaneseq
  %v3681 = vshrl.u32 %v3680, 7
  %v3682 = vsub.s32 0, %v3681
  %v3683 = vrot.slane %v2622, %v3682
  %v3684 = vlaneseq
  %v3685 = vshrl.u32 %v3684, 7
  %v3686 = vsub.s32 0, %v3685
  %v3687 = vrot.slane %v2623, %v3686
  %v3688 = vlaneseq
  %v3689 = vshrl.u32 %v3688, 7
  %v3690 = vsub.s32 0, %v3689
  %v3691 = vrot.slane %v2624, %v3690
  %v3692 = vmul.f32 %v3674, %v3679
  %v3693 = vmul.f32 %v3673, %v3683
  %v3694 = vmul.f32 %v3672, %v3687
  %v3695 = vmul.f32 %v3675, %v3691
  %3696 = vrot.lane.b32.xlu0 %v2591, 110
  %v3697 = vpop.permute.xlu0 %3696
  %3698 = vrot.lane.b32.xlu0 %v2592, 110
  %v3699 = vpop.permute.xlu0 %3698
  %3700 = vrot.lane.b32.xlu0 %v2593, 110
  %v3701 = vpop.permute.xlu0 %3700
  %3702 = vrot.lane.b32.xlu0 %v2594, 110
  %v3703 = vpop.permute.xlu0 %3702
  %vm3704 = vcmp.lt.s32.totalorder %v68, 110
  %v3705 = vsel %vm3704, %v3701, %v3703
  %v3706 = vsel %vm3704, %v3699, %v3701
  %v3707 = vsel %vm3704, %v3697, %v3699
  %v3708 = vsel %vm3704, %v3703, %v3697
  %v3709 = vlaneseq
  %v3710 = vshrl.u32 %v3709, 7
  %v3711 = vsub.s32 1, %v3710
  %v3712 = vrot.slane %v2621, %v3711
  %v3713 = vlaneseq
  %v3714 = vshrl.u32 %v3713, 7
  %v3715 = vsub.s32 1, %v3714
  %v3716 = vrot.slane %v2622, %v3715
  %v3717 = vlaneseq
  %v3718 = vshrl.u32 %v3717, 7
  %v3719 = vsub.s32 1, %v3718
  %v3720 = vrot.slane %v2623, %v3719
  %v3721 = vlaneseq
  %v3722 = vshrl.u32 %v3721, 7
  %v3723 = vsub.s32 1, %v3722
  %v3724 = vrot.slane %v2624, %v3723
  %v3725 = vmul.f32 %v3707, %v3712
  %v3726 = vmul.f32 %v3706, %v3716
  %v3727 = vmul.f32 %v3705, %v3720
  %v3728 = vmul.f32 %v3708, %v3724
  %3729 = vrot.lane.b32.xlu0 %v2591, 109
  %v3730 = vpop.permute.xlu0 %3729
  %3731 = vrot.lane.b32.xlu0 %v2592, 109
  %v3732 = vpop.permute.xlu0 %3731
  %3733 = vrot.lane.b32.xlu0 %v2593, 109
  %v3734 = vpop.permute.xlu0 %3733
  %3735 = vrot.lane.b32.xlu0 %v2594, 109
  %v3736 = vpop.permute.xlu0 %3735
  %vm3737 = vcmp.lt.s32.totalorder %v68, 109
  %v3738 = vsel %vm3737, %v3734, %v3736
  %v3739 = vsel %vm3737, %v3732, %v3734
  %v3740 = vsel %vm3737, %v3730, %v3732
  %v3741 = vsel %vm3737, %v3736, %v3730
  %v3742 = vlaneseq
  %v3743 = vshrl.u32 %v3742, 7
  %v3744 = vsub.s32 2, %v3743
  %v3745 = vrot.slane %v2621, %v3744
  %v3746 = vlaneseq
  %v3747 = vshrl.u32 %v3746, 7
  %v3748 = vsub.s32 2, %v3747
  %v3749 = vrot.slane %v2622, %v3748
  %v3750 = vlaneseq
  %v3751 = vshrl.u32 %v3750, 7
  %v3752 = vsub.s32 2, %v3751
  %v3753 = vrot.slane %v2623, %v3752
  %v3754 = vlaneseq
  %v3755 = vshrl.u32 %v3754, 7
  %v3756 = vsub.s32 2, %v3755
  %v3757 = vrot.slane %v2624, %v3756
  %v3758 = vmul.f32 %v3740, %v3745
  %v3759 = vmul.f32 %v3739, %v3749
  %v3760 = vmul.f32 %v3738, %v3753
  %v3761 = vmul.f32 %v3741, %v3757
  %3762 = vrot.lane.b32.xlu0 %v2591, 99
  %v3763 = vpop.permute.xlu0 %3762
  %3764 = vrot.lane.b32.xlu0 %v2592, 99
  %v3765 = vpop.permute.xlu0 %3764
  %3766 = vrot.lane.b32.xlu0 %v2593, 99
  %v3767 = vpop.permute.xlu0 %3766
  %3768 = vrot.lane.b32.xlu0 %v2594, 99
  %v3769 = vpop.permute.xlu0 %3768
  %vm3770 = vcmp.lt.s32.totalorder %v68, 99
  %v3771 = vsel %vm3770, %v3767, %v3769
  %v3772 = vsel %vm3770, %v3765, %v3767
  %v3773 = vsel %vm3770, %v3763, %v3765
  %v3774 = vsel %vm3770, %v3769, %v3763
  %v3775 = vlaneseq
  %v3776 = vshrl.u32 %v3775, 7
  %v3777 = vsub.s32 3, %v3776
  %v3778 = vrot.slane %v2621, %v3777
  %v3779 = vlaneseq
  %v3780 = vshrl.u32 %v3779, 7
  %v3781 = vsub.s32 3, %v3780
  %v3782 = vrot.slane %v2622, %v3781
  %v3783 = vlaneseq
  %v3784 = vshrl.u32 %v3783, 7
  %v3785 = vsub.s32 3, %v3784
  %v3786 = vrot.slane %v2623, %v3785
  %v3787 = vlaneseq
  %v3788 = vshrl.u32 %v3787, 7
  %v3789 = vsub.s32 3, %v3788
  %v3790 = vrot.slane %v2624, %v3789
  %v3791 = vmul.f32 %v3773, %v3778
  %v3792 = vmul.f32 %v3772, %v3782
  %v3793 = vmul.f32 %v3771, %v3786
  %v3794 = vmul.f32 %v3774, %v3790
  %3795 = vrot.lane.b32.xlu0 %v2591, 98
  %v3796 = vpop.permute.xlu0 %3795
  %3797 = vrot.lane.b32.xlu0 %v2592, 98
  %v3798 = vpop.permute.xlu0 %3797
  %3799 = vrot.lane.b32.xlu0 %v2593, 98
  %v3800 = vpop.permute.xlu0 %3799
  %3801 = vrot.lane.b32.xlu0 %v2594, 98
  %v3802 = vpop.permute.xlu0 %3801
  %v3803 = vsel %vm254, %v3800, %v3802
  %v3804 = vsel %vm254, %v3798, %v3800
  %v3805 = vsel %vm254, %v3796, %v3798
  %v3806 = vsel %vm254, %v3802, %v3796
  %v3807 = vlaneseq
  %v3808 = vshrl.u32 %v3807, 7
  %v3809 = vsub.s32 4, %v3808
  %v3810 = vrot.slane %v2621, %v3809
  %v3811 = vlaneseq
  %v3812 = vshrl.u32 %v3811, 7
  %v3813 = vsub.s32 4, %v3812
  %v3814 = vrot.slane %v2622, %v3813
  %v3815 = vlaneseq
  %v3816 = vshrl.u32 %v3815, 7
  %v3817 = vsub.s32 4, %v3816
  %v3818 = vrot.slane %v2623, %v3817
  %v3819 = vlaneseq
  %v3820 = vshrl.u32 %v3819, 7
  %v3821 = vsub.s32 4, %v3820
  %v3822 = vrot.slane %v2624, %v3821
  %v3823 = vmul.f32 %v3805, %v3810
  %v3824 = vmul.f32 %v3804, %v3814
  %v3825 = vmul.f32 %v3803, %v3818
  %v3826 = vmul.f32 %v3806, %v3822
  %3827 = vrot.lane.b32.xlu0 %v2591, 97
  %v3828 = vpop.permute.xlu0 %3827
  %3829 = vrot.lane.b32.xlu0 %v2592, 97
  %v3830 = vpop.permute.xlu0 %3829
  %3831 = vrot.lane.b32.xlu0 %v2593, 97
  %v3832 = vpop.permute.xlu0 %3831
  %3833 = vrot.lane.b32.xlu0 %v2594, 97
  %v3834 = vpop.permute.xlu0 %3833
  %vm3835 = vcmp.lt.s32.totalorder %v68, 97
  %v3836 = vsel %vm3835, %v3832, %v3834
  %v3837 = vsel %vm3835, %v3830, %v3832
  %v3838 = vsel %vm3835, %v3828, %v3830
  %v3839 = vsel %vm3835, %v3834, %v3828
  %v3840 = vlaneseq
  %v3841 = vshrl.u32 %v3840, 7
  %v3842 = vsub.s32 5, %v3841
  %v3843 = vrot.slane %v2621, %v3842
  %v3844 = vlaneseq
  %v3845 = vshrl.u32 %v3844, 7
  %v3846 = vsub.s32 5, %v3845
  %v3847 = vrot.slane %v2622, %v3846
  %v3848 = vlaneseq
  %v3849 = vshrl.u32 %v3848, 7
  %v3850 = vsub.s32 5, %v3849
  %v3851 = vrot.slane %v2623, %v3850
  %v3852 = vlaneseq
  %v3853 = vshrl.u32 %v3852, 7
  %v3854 = vsub.s32 5, %v3853
  %v3855 = vrot.slane %v2624, %v3854
  %v3856 = vmul.f32 %v3838, %v3843
  %v3857 = vmul.f32 %v3837, %v3847
  %v3858 = vmul.f32 %v3836, %v3851
  %v3859 = vmul.f32 %v3839, %v3855
  %3860 = vrot.lane.b32.xlu0 %v2591, 96
  %v3861 = vpop.permute.xlu0 %3860
  %3862 = vrot.lane.b32.xlu0 %v2592, 96
  %v3863 = vpop.permute.xlu0 %3862
  %3864 = vrot.lane.b32.xlu0 %v2593, 96
  %v3865 = vpop.permute.xlu0 %3864
  %3866 = vrot.lane.b32.xlu0 %v2594, 96
  %v3867 = vpop.permute.xlu0 %3866
  %v3868 = vsel %vm287, %v3865, %v3867
  %v3869 = vsel %vm287, %v3863, %v3865
  %v3870 = vsel %vm287, %v3861, %v3863
  %v3871 = vsel %vm287, %v3867, %v3861
  %v3872 = vlaneseq
  %v3873 = vshrl.u32 %v3872, 7
  %v3874 = vsub.s32 6, %v3873
  %v3875 = vrot.slane %v2621, %v3874
  %v3876 = vlaneseq
  %v3877 = vshrl.u32 %v3876, 7
  %v3878 = vsub.s32 6, %v3877
  %v3879 = vrot.slane %v2622, %v3878
  %v3880 = vlaneseq
  %v3881 = vshrl.u32 %v3880, 7
  %v3882 = vsub.s32 6, %v3881
  %v3883 = vrot.slane %v2623, %v3882
  %v3884 = vlaneseq
  %v3885 = vshrl.u32 %v3884, 7
  %v3886 = vsub.s32 6, %v3885
  %v3887 = vrot.slane %v2624, %v3886
  %v3888 = vmul.f32 %v3870, %v3875
  %v3889 = vmul.f32 %v3869, %v3879
  %v3890 = vmul.f32 %v3868, %v3883
  %v3891 = vmul.f32 %v3871, %v3887
  %3892 = vrot.lane.b32.xlu0 %v2591, 95
  %v3893 = vpop.permute.xlu0 %3892
  %3894 = vrot.lane.b32.xlu0 %v2592, 95
  %v3895 = vpop.permute.xlu0 %3894
  %3896 = vrot.lane.b32.xlu0 %v2593, 95
  %v3897 = vpop.permute.xlu0 %3896
  %3898 = vrot.lane.b32.xlu0 %v2594, 95
  %v3899 = vpop.permute.xlu0 %3898
  %vm3900 = vcmp.lt.s32.totalorder %v68, 95
  %v3901 = vsel %vm3900, %v3897, %v3899
  %v3902 = vsel %vm3900, %v3895, %v3897
  %v3903 = vsel %vm3900, %v3893, %v3895
  %v3904 = vsel %vm3900, %v3899, %v3893
  %v3905 = vlaneseq
  %v3906 = vshrl.u32 %v3905, 7
  %v3907 = vsub.s32 7, %v3906
  %v3908 = vrot.slane %v2621, %v3907
  %v3909 = vlaneseq
  %v3910 = vshrl.u32 %v3909, 7
  %v3911 = vsub.s32 7, %v3910
  %v3912 = vrot.slane %v2622, %v3911
  %v3913 = vlaneseq
  %v3914 = vshrl.u32 %v3913, 7
  %v3915 = vsub.s32 7, %v3914
  %v3916 = vrot.slane %v2623, %v3915
  %v3917 = vlaneseq
  %v3918 = vshrl.u32 %v3917, 7
  %v3919 = vsub.s32 7, %v3918
  %v3920 = vrot.slane %v2624, %v3919
  %v3921 = vmul.f32 %v3903, %v3908
  %v3922 = vmul.f32 %v3902, %v3912
  %v3923 = vmul.f32 %v3901, %v3916
  %v3924 = vmul.f32 %v3904, %v3920
  %3925 = vrot.lane.b32.xlu0 %v2591, 94
  %v3926 = vpop.permute.xlu0 %3925
  %3927 = vrot.lane.b32.xlu0 %v2592, 94
  %v3928 = vpop.permute.xlu0 %3927
  %3929 = vrot.lane.b32.xlu0 %v2593, 94
  %v3930 = vpop.permute.xlu0 %3929
  %3931 = vrot.lane.b32.xlu0 %v2594, 94
  %v3932 = vpop.permute.xlu0 %3931
  %v3933 = vsel %vm320, %v3930, %v3932
  %v3934 = vsel %vm320, %v3928, %v3930
  %v3935 = vsel %vm320, %v3926, %v3928
  %v3936 = vsel %vm320, %v3932, %v3926
  %v3937 = vlaneseq
  %v3938 = vshrl.u32 %v3937, 7
  %v3939 = vsub.s32 0, %v3938
  %v3940 = vrot.slane %v2625, %v3939
  %v3941 = vlaneseq
  %v3942 = vshrl.u32 %v3941, 7
  %v3943 = vsub.s32 0, %v3942
  %v3944 = vrot.slane %v2626, %v3943
  %v3945 = vlaneseq
  %v3946 = vshrl.u32 %v3945, 7
  %v3947 = vsub.s32 0, %v3946
  %v3948 = vrot.slane %v2627, %v3947
  %v3949 = vlaneseq
  %v3950 = vshrl.u32 %v3949, 7
  %v3951 = vsub.s32 0, %v3950
  %v3952 = vrot.slane %v2628, %v3951
  %v3953 = vmul.f32 %v3935, %v3940
  %v3954 = vmul.f32 %v3934, %v3944
  %v3955 = vmul.f32 %v3933, %v3948
  %v3956 = vmul.f32 %v3936, %v3952
  %3957 = vrot.lane.b32.xlu0 %v2591, 93
  %v3958 = vpop.permute.xlu0 %3957
  %3959 = vrot.lane.b32.xlu0 %v2592, 93
  %v3960 = vpop.permute.xlu0 %3959
  %3961 = vrot.lane.b32.xlu0 %v2593, 93
  %v3962 = vpop.permute.xlu0 %3961
  %3963 = vrot.lane.b32.xlu0 %v2594, 93
  %v3964 = vpop.permute.xlu0 %3963
  %vm3965 = vcmp.lt.s32.totalorder %v68, 93
  %v3966 = vsel %vm3965, %v3962, %v3964
  %v3967 = vsel %vm3965, %v3960, %v3962
  %v3968 = vsel %vm3965, %v3958, %v3960
  %v3969 = vsel %vm3965, %v3964, %v3958
  %v3970 = vlaneseq
  %v3971 = vshrl.u32 %v3970, 7
  %v3972 = vsub.s32 1, %v3971
  %v3973 = vrot.slane %v2625, %v3972
  %v3974 = vlaneseq
  %v3975 = vshrl.u32 %v3974, 7
  %v3976 = vsub.s32 1, %v3975
  %v3977 = vrot.slane %v2626, %v3976
  %v3978 = vlaneseq
  %v3979 = vshrl.u32 %v3978, 7
  %v3980 = vsub.s32 1, %v3979
  %v3981 = vrot.slane %v2627, %v3980
  %v3982 = vlaneseq
  %v3983 = vshrl.u32 %v3982, 7
  %v3984 = vsub.s32 1, %v3983
  %v3985 = vrot.slane %v2628, %v3984
  %v3986 = vmul.f32 %v3968, %v3973
  %v3987 = vmul.f32 %v3967, %v3977
  %v3988 = vmul.f32 %v3966, %v3981
  %v3989 = vmul.f32 %v3969, %v3985
  %3990 = vrot.lane.b32.xlu0 %v2591, 83
  %v3991 = vpop.permute.xlu0 %3990
  %3992 = vrot.lane.b32.xlu0 %v2592, 83
  %v3993 = vpop.permute.xlu0 %3992
  %3994 = vrot.lane.b32.xlu0 %v2593, 83
  %v3995 = vpop.permute.xlu0 %3994
  %3996 = vrot.lane.b32.xlu0 %v2594, 83
  %v3997 = vpop.permute.xlu0 %3996
  %vm3998 = vcmp.lt.s32.totalorder %v68, 83
  %v3999 = vsel %vm3998, %v3995, %v3997
  %v4000 = vsel %vm3998, %v3993, %v3995
  %v4001 = vsel %vm3998, %v3991, %v3993
  %v4002 = vsel %vm3998, %v3997, %v3991
  %v4003 = vlaneseq
  %v4004 = vshrl.u32 %v4003, 7
  %v4005 = vsub.s32 2, %v4004
  %v4006 = vrot.slane %v2625, %v4005
  %v4007 = vlaneseq
  %v4008 = vshrl.u32 %v4007, 7
  %v4009 = vsub.s32 2, %v4008
  %v4010 = vrot.slane %v2626, %v4009
  %v4011 = vlaneseq
  %v4012 = vshrl.u32 %v4011, 7
  %v4013 = vsub.s32 2, %v4012
  %v4014 = vrot.slane %v2627, %v4013
  %v4015 = vlaneseq
  %v4016 = vshrl.u32 %v4015, 7
  %v4017 = vsub.s32 2, %v4016
  %v4018 = vrot.slane %v2628, %v4017
  %v4019 = vmul.f32 %v4001, %v4006
  %v4020 = vmul.f32 %v4000, %v4010
  %v4021 = vmul.f32 %v3999, %v4014
  %v4022 = vmul.f32 %v4002, %v4018
  %4023 = vrot.lane.b32.xlu0 %v2591, 82
  %v4024 = vpop.permute.xlu0 %4023
  %4025 = vrot.lane.b32.xlu0 %v2592, 82
  %v4026 = vpop.permute.xlu0 %4025
  %4027 = vrot.lane.b32.xlu0 %v2593, 82
  %v4028 = vpop.permute.xlu0 %4027
  %4029 = vrot.lane.b32.xlu0 %v2594, 82
  %v4030 = vpop.permute.xlu0 %4029
  %vm4031 = vcmp.lt.s32.totalorder %v68, 82
  %v4032 = vsel %vm4031, %v4028, %v4030
  %v4033 = vsel %vm4031, %v4026, %v4028
  %v4034 = vsel %vm4031, %v4024, %v4026
  %v4035 = vsel %vm4031, %v4030, %v4024
  %v4036 = vlaneseq
  %v4037 = vshrl.u32 %v4036, 7
  %v4038 = vsub.s32 3, %v4037
  %v4039 = vrot.slane %v2625, %v4038
  %v4040 = vlaneseq
  %v4041 = vshrl.u32 %v4040, 7
  %v4042 = vsub.s32 3, %v4041
  %v4043 = vrot.slane %v2626, %v4042
  %v4044 = vlaneseq
  %v4045 = vshrl.u32 %v4044, 7
  %v4046 = vsub.s32 3, %v4045
  %v4047 = vrot.slane %v2627, %v4046
  %v4048 = vlaneseq
  %v4049 = vshrl.u32 %v4048, 7
  %v4050 = vsub.s32 3, %v4049
  %v4051 = vrot.slane %v2628, %v4050
  %v4052 = vmul.f32 %v4034, %v4039
  %v4053 = vmul.f32 %v4033, %v4043
  %v4054 = vmul.f32 %v4032, %v4047
  %v4055 = vmul.f32 %v4035, %v4051
  %4056 = vrot.lane.b32.xlu0 %v2591, 81
  %v4057 = vpop.permute.xlu0 %4056
  %4058 = vrot.lane.b32.xlu0 %v2592, 81
  %v4059 = vpop.permute.xlu0 %4058
  %4060 = vrot.lane.b32.xlu0 %v2593, 81
  %v4061 = vpop.permute.xlu0 %4060
  %4062 = vrot.lane.b32.xlu0 %v2594, 81
  %v4063 = vpop.permute.xlu0 %4062
  %vm4064 = vcmp.lt.s32.totalorder %v68, 81
  %v4065 = vsel %vm4064, %v4061, %v4063
  %v4066 = vsel %vm4064, %v4059, %v4061
  %v4067 = vsel %vm4064, %v4057, %v4059
  %v4068 = vsel %vm4064, %v4063, %v4057
  %v4069 = vlaneseq
  %v4070 = vshrl.u32 %v4069, 7
  %v4071 = vsub.s32 4, %v4070
  %v4072 = vrot.slane %v2625, %v4071
  %v4073 = vlaneseq
  %v4074 = vshrl.u32 %v4073, 7
  %v4075 = vsub.s32 4, %v4074
  %v4076 = vrot.slane %v2626, %v4075
  %v4077 = vlaneseq
  %v4078 = vshrl.u32 %v4077, 7
  %v4079 = vsub.s32 4, %v4078
  %v4080 = vrot.slane %v2627, %v4079
  %v4081 = vlaneseq
  %v4082 = vshrl.u32 %v4081, 7
  %v4083 = vsub.s32 4, %v4082
  %v4084 = vrot.slane %v2628, %v4083
  %v4085 = vmul.f32 %v4067, %v4072
  %v4086 = vmul.f32 %v4066, %v4076
  %v4087 = vmul.f32 %v4065, %v4080
  %v4088 = vmul.f32 %v4068, %v4084
  %4089 = vrot.lane.b32.xlu0 %v2591, 80
  %v4090 = vpop.permute.xlu0 %4089
  %4091 = vrot.lane.b32.xlu0 %v2592, 80
  %v4092 = vpop.permute.xlu0 %4091
  %4093 = vrot.lane.b32.xlu0 %v2593, 80
  %v4094 = vpop.permute.xlu0 %4093
  %4095 = vrot.lane.b32.xlu0 %v2594, 80
  %v4096 = vpop.permute.xlu0 %4095
  %vm4097 = vcmp.lt.s32.totalorder %v68, 80
  %v4098 = vsel %vm4097, %v4094, %v4096
  %v4099 = vsel %vm4097, %v4092, %v4094
  %v4100 = vsel %vm4097, %v4090, %v4092
  %v4101 = vsel %vm4097, %v4096, %v4090
  %v4102 = vlaneseq
  %v4103 = vshrl.u32 %v4102, 7
  %v4104 = vsub.s32 5, %v4103
  %v4105 = vrot.slane %v2625, %v4104
  %v4106 = vlaneseq
  %v4107 = vshrl.u32 %v4106, 7
  %v4108 = vsub.s32 5, %v4107
  %v4109 = vrot.slane %v2626, %v4108
  %v4110 = vlaneseq
  %v4111 = vshrl.u32 %v4110, 7
  %v4112 = vsub.s32 5, %v4111
  %v4113 = vrot.slane %v2627, %v4112
  %v4114 = vlaneseq
  %v4115 = vshrl.u32 %v4114, 7
  %v4116 = vsub.s32 5, %v4115
  %v4117 = vrot.slane %v2628, %v4116
  %v4118 = vmul.f32 %v4100, %v4105
  %v4119 = vmul.f32 %v4099, %v4109
  %v4120 = vmul.f32 %v4098, %v4113
  %v4121 = vmul.f32 %v4101, %v4117
  %4122 = vrot.lane.b32.xlu0 %v2591, 79
  %v4123 = vpop.permute.xlu0 %4122
  %4124 = vrot.lane.b32.xlu0 %v2592, 79
  %v4125 = vpop.permute.xlu0 %4124
  %4126 = vrot.lane.b32.xlu0 %v2593, 79
  %v4127 = vpop.permute.xlu0 %4126
  %4128 = vrot.lane.b32.xlu0 %v2594, 79
  %v4129 = vpop.permute.xlu0 %4128
  %vm4130 = vcmp.lt.s32.totalorder %v68, 79
  %v4131 = vsel %vm4130, %v4127, %v4129
  %v4132 = vsel %vm4130, %v4125, %v4127
  %v4133 = vsel %vm4130, %v4123, %v4125
  %v4134 = vsel %vm4130, %v4129, %v4123
  %v4135 = vlaneseq
  %v4136 = vshrl.u32 %v4135, 7
  %v4137 = vsub.s32 6, %v4136
  %v4138 = vrot.slane %v2625, %v4137
  %v4139 = vlaneseq
  %v4140 = vshrl.u32 %v4139, 7
  %v4141 = vsub.s32 6, %v4140
  %v4142 = vrot.slane %v2626, %v4141
  %v4143 = vlaneseq
  %v4144 = vshrl.u32 %v4143, 7
  %v4145 = vsub.s32 6, %v4144
  %v4146 = vrot.slane %v2627, %v4145
  %v4147 = vlaneseq
  %v4148 = vshrl.u32 %v4147, 7
  %v4149 = vsub.s32 6, %v4148
  %v4150 = vrot.slane %v2628, %v4149
  %v4151 = vmul.f32 %v4133, %v4138
  %v4152 = vmul.f32 %v4132, %v4142
  %v4153 = vmul.f32 %v4131, %v4146
  %v4154 = vmul.f32 %v4134, %v4150
  %4155 = vrot.lane.b32.xlu0 %v2591, 78
  %v4156 = vpop.permute.xlu0 %4155
  %4157 = vrot.lane.b32.xlu0 %v2592, 78
  %v4158 = vpop.permute.xlu0 %4157
  %4159 = vrot.lane.b32.xlu0 %v2593, 78
  %v4160 = vpop.permute.xlu0 %4159
  %4161 = vrot.lane.b32.xlu0 %v2594, 78
  %v4162 = vpop.permute.xlu0 %4161
  %vm4163 = vcmp.lt.s32.totalorder %v68, 78
  %v4164 = vsel %vm4163, %v4160, %v4162
  %v4165 = vsel %vm4163, %v4158, %v4160
  %v4166 = vsel %vm4163, %v4156, %v4158
  %v4167 = vsel %vm4163, %v4162, %v4156
  %v4168 = vlaneseq
  %v4169 = vshrl.u32 %v4168, 7
  %v4170 = vsub.s32 7, %v4169
  %v4171 = vrot.slane %v2625, %v4170
  %v4172 = vlaneseq
  %v4173 = vshrl.u32 %v4172, 7
  %v4174 = vsub.s32 7, %v4173
  %v4175 = vrot.slane %v2626, %v4174
  %v4176 = vlaneseq
  %v4177 = vshrl.u32 %v4176, 7
  %v4178 = vsub.s32 7, %v4177
  %v4179 = vrot.slane %v2627, %v4178
  %v4180 = vlaneseq
  %v4181 = vshrl.u32 %v4180, 7
  %v4182 = vsub.s32 7, %v4181
  %v4183 = vrot.slane %v2628, %v4182
  %v4184 = vmul.f32 %v4166, %v4171
  %v4185 = vmul.f32 %v4165, %v4175
  %v4186 = vmul.f32 %v4164, %v4179
  %v4187 = vmul.f32 %v4167, %v4183
  %4188 = vrot.lane.b32.xlu0 %v2591, 77
  %v4189 = vpop.permute.xlu0 %4188
  %4190 = vrot.lane.b32.xlu0 %v2592, 77
  %v4191 = vpop.permute.xlu0 %4190
  %4192 = vrot.lane.b32.xlu0 %v2593, 77
  %v4193 = vpop.permute.xlu0 %4192
  %4194 = vrot.lane.b32.xlu0 %v2594, 77
  %v4195 = vpop.permute.xlu0 %4194
  %vm4196 = vcmp.lt.s32.totalorder %v68, 77
  %v4197 = vsel %vm4196, %v4193, %v4195
  %v4198 = vsel %vm4196, %v4191, %v4193
  %v4199 = vsel %vm4196, %v4189, %v4191
  %v4200 = vsel %vm4196, %v4195, %v4189
  %v4201 = vlaneseq
  %v4202 = vshrl.u32 %v4201, 7
  %v4203 = vsub.s32 0, %v4202
  %v4204 = vrot.slane %v2629, %v4203
  %v4205 = vlaneseq
  %v4206 = vshrl.u32 %v4205, 7
  %v4207 = vsub.s32 0, %v4206
  %v4208 = vrot.slane %v2630, %v4207
  %v4209 = vlaneseq
  %v4210 = vshrl.u32 %v4209, 7
  %v4211 = vsub.s32 0, %v4210
  %v4212 = vrot.slane %v2631, %v4211
  %v4213 = vlaneseq
  %v4214 = vshrl.u32 %v4213, 7
  %v4215 = vsub.s32 0, %v4214
  %v4216 = vrot.slane %v2632, %v4215
  %v4217 = vmul.f32 %v4199, %v4204
  %v4218 = vmul.f32 %v4198, %v4208
  %v4219 = vmul.f32 %v4197, %v4212
  %v4220 = vmul.f32 %v4200, %v4216
  %v4225 = vrot.slane %v2695, 4
  %v4226 = vrot.slane %v2696, 4
  %v4227 = vrot.slane %v2697, 4
  %v4228 = vrot.slane %v2698, 4
  %v4237 = vrot.slane %v2761, 4
  %v4238 = vrot.slane %v2762, 4
  %v4239 = vrot.slane %v2763, 4
  %v4240 = vrot.slane %v2764, 4
  %v4249 = vrot.slane %v2827, 4
  %v4250 = vrot.slane %v2828, 4
  %v4251 = vrot.slane %v2829, 4
  %v4252 = vrot.slane %v2830, 4
  %v4261 = vrot.slane %v2893, 4
  %v4262 = vrot.slane %v2894, 4
  %v4263 = vrot.slane %v2895, 4
  %v4264 = vrot.slane %v2896, 4
  %v4273 = vrot.slane %v2958, 4
  %v4274 = vrot.slane %v2959, 4
  %v4275 = vrot.slane %v2960, 4
  %v4276 = vrot.slane %v2961, 4
  %v4285 = vrot.slane %v3023, 4
  %v4286 = vrot.slane %v3024, 4
  %v4287 = vrot.slane %v3025, 4
  %v4288 = vrot.slane %v3026, 4
  %v4297 = vrot.slane %v3088, 4
  %v4298 = vrot.slane %v3089, 4
  %v4299 = vrot.slane %v3090, 4
  %v4300 = vrot.slane %v3091, 4
  %v4309 = vrot.slane %v3154, 4
  %v4310 = vrot.slane %v3155, 4
  %v4311 = vrot.slane %v3156, 4
  %v4312 = vrot.slane %v3157, 4
  %v4317 = vsel %vm376, %v2662, %v4225
  %v4318 = vsel %vm376, %v2663, %v4226
  %v4319 = vsel %vm376, %v2664, %v4227
  %v4320 = vsel %vm376, %v2665, %v4228
  %v4321 = vsel %vm376, %v2728, %v4237
  %v4322 = vsel %vm376, %v2729, %v4238
  %v4323 = vsel %vm376, %v2730, %v4239
  %v4324 = vsel %vm376, %v2731, %v4240
  %v4325 = vsel %vm376, %v2794, %v4249
  %v4326 = vsel %vm376, %v2795, %v4250
  %v4327 = vsel %vm376, %v2796, %v4251
  %v4328 = vsel %vm376, %v2797, %v4252
  %v4329 = vsel %vm376, %v2860, %v4261
  %v4330 = vsel %vm376, %v2861, %v4262
  %v4331 = vsel %vm376, %v2862, %v4263
  %v4332 = vsel %vm376, %v2863, %v4264
  %v4333 = vsel %vm376, %v2925, %v4273
  %v4334 = vsel %vm376, %v2926, %v4274
  %v4335 = vsel %vm376, %v2927, %v4275
  %v4336 = vsel %vm376, %v2928, %v4276
  %v4337 = vsel %vm376, %v2990, %v4285
  %v4338 = vsel %vm376, %v2991, %v4286
  %v4339 = vsel %vm376, %v2992, %v4287
  %v4340 = vsel %vm376, %v2993, %v4288
  %v4341 = vsel %vm376, %v3055, %v4297
  %v4342 = vsel %vm376, %v3056, %v4298
  %v4343 = vsel %vm376, %v3057, %v4299
  %v4344 = vsel %vm376, %v3058, %v4300
  %v4345 = vsel %vm376, %v3121, %v4309
  %v4346 = vsel %vm376, %v3122, %v4310
  %v4347 = vsel %vm376, %v3123, %v4311
  %v4348 = vsel %vm376, %v3124, %v4312
  %v4353 = vrot.slane %v3218, 4
  %v4354 = vrot.slane %v3219, 4
  %v4355 = vrot.slane %v3220, 4
  %v4356 = vrot.slane %v3221, 4
  %v4365 = vrot.slane %v3283, 4
  %v4366 = vrot.slane %v3284, 4
  %v4367 = vrot.slane %v3285, 4
  %v4368 = vrot.slane %v3286, 4
  %v4377 = vrot.slane %v3349, 4
  %v4378 = vrot.slane %v3350, 4
  %v4379 = vrot.slane %v3351, 4
  %v4380 = vrot.slane %v3352, 4
  %v4389 = vrot.slane %v3413, 4
  %v4390 = vrot.slane %v3414, 4
  %v4391 = vrot.slane %v3415, 4
  %v4392 = vrot.slane %v3416, 4
  %v4401 = vrot.slane %v3465, 4
  %v4402 = vrot.slane %v3466, 4
  %v4403 = vrot.slane %v3467, 4
  %v4404 = vrot.slane %v3468, 4
  %v4413 = vrot.slane %v3530, 4
  %v4414 = vrot.slane %v3531, 4
  %v4415 = vrot.slane %v3532, 4
  %v4416 = vrot.slane %v3533, 4
  %v4425 = vrot.slane %v3596, 4
  %v4426 = vrot.slane %v3597, 4
  %v4427 = vrot.slane %v3598, 4
  %v4428 = vrot.slane %v3599, 4
  %v4437 = vrot.slane %v3660, 4
  %v4438 = vrot.slane %v3661, 4
  %v4439 = vrot.slane %v3662, 4
  %v4440 = vrot.slane %v3663, 4
  %v4445 = vsel %vm376, %v3186, %v4353
  %v4446 = vsel %vm376, %v3187, %v4354
  %v4447 = vsel %vm376, %v3188, %v4355
  %v4448 = vsel %vm376, %v3189, %v4356
  %v4449 = vsel %vm376, %v3250, %v4365
  %v4450 = vsel %vm376, %v3251, %v4366
  %v4451 = vsel %vm376, %v3252, %v4367
  %v4452 = vsel %vm376, %v3253, %v4368
  %v4453 = vsel %vm376, %v3316, %v4377
  %v4454 = vsel %vm376, %v3317, %v4378
  %v4455 = vsel %vm376, %v3318, %v4379
  %v4456 = vsel %vm376, %v3319, %v4380
  %v4457 = vsel %vm376, %v3381, %v4389
  %v4458 = vsel %vm376, %v3382, %v4390
  %v4459 = vsel %vm376, %v3383, %v4391
  %v4460 = vsel %vm376, %v3384, %v4392
  %v4461 = vsel %vm376, %v3433, %v4401
  %v4462 = vsel %vm376, %v3434, %v4402
  %v4463 = vsel %vm376, %v3435, %v4403
  %v4464 = vsel %vm376, %v3436, %v4404
  %v4465 = vsel %vm376, %v3497, %v4413
  %v4466 = vsel %vm376, %v3498, %v4414
  %v4467 = vsel %vm376, %v3499, %v4415
  %v4468 = vsel %vm376, %v3500, %v4416
  %v4469 = vsel %vm376, %v3563, %v4425
  %v4470 = vsel %vm376, %v3564, %v4426
  %v4471 = vsel %vm376, %v3565, %v4427
  %v4472 = vsel %vm376, %v3566, %v4428
  %v4473 = vsel %vm376, %v3628, %v4437
  %v4474 = vsel %vm376, %v3629, %v4438
  %v4475 = vsel %vm376, %v3630, %v4439
  %v4476 = vsel %vm376, %v3631, %v4440
  %v4481 = vrot.slane %v3725, 4
  %v4482 = vrot.slane %v3726, 4
  %v4483 = vrot.slane %v3727, 4
  %v4484 = vrot.slane %v3728, 4
  %v4493 = vrot.slane %v3791, 4
  %v4494 = vrot.slane %v3792, 4
  %v4495 = vrot.slane %v3793, 4
  %v4496 = vrot.slane %v3794, 4
  %v4505 = vrot.slane %v3856, 4
  %v4506 = vrot.slane %v3857, 4
  %v4507 = vrot.slane %v3858, 4
  %v4508 = vrot.slane %v3859, 4
  %v4517 = vrot.slane %v3921, 4
  %v4518 = vrot.slane %v3922, 4
  %v4519 = vrot.slane %v3923, 4
  %v4520 = vrot.slane %v3924, 4
  %v4529 = vrot.slane %v3986, 4
  %v4530 = vrot.slane %v3987, 4
  %v4531 = vrot.slane %v3988, 4
  %v4532 = vrot.slane %v3989, 4
  %v4541 = vrot.slane %v4052, 4
  %v4542 = vrot.slane %v4053, 4
  %v4543 = vrot.slane %v4054, 4
  %v4544 = vrot.slane %v4055, 4
  %v4553 = vrot.slane %v4118, 4
  %v4554 = vrot.slane %v4119, 4
  %v4555 = vrot.slane %v4120, 4
  %v4556 = vrot.slane %v4121, 4
  %v4565 = vrot.slane %v4184, 4
  %v4566 = vrot.slane %v4185, 4
  %v4567 = vrot.slane %v4186, 4
  %v4568 = vrot.slane %v4187, 4
  %v4573 = vsel %vm376, %v3692, %v4481
  %v4574 = vsel %vm376, %v3693, %v4482
  %v4575 = vsel %vm376, %v3694, %v4483
  %v4576 = vsel %vm376, %v3695, %v4484
  %v4577 = vsel %vm376, %v3758, %v4493
  %v4578 = vsel %vm376, %v3759, %v4494
  %v4579 = vsel %vm376, %v3760, %v4495
  %v4580 = vsel %vm376, %v3761, %v4496
  %v4581 = vsel %vm376, %v3823, %v4505
  %v4582 = vsel %vm376, %v3824, %v4506
  %v4583 = vsel %vm376, %v3825, %v4507
  %v4584 = vsel %vm376, %v3826, %v4508
  %v4585 = vsel %vm376, %v3888, %v4517
  %v4586 = vsel %vm376, %v3889, %v4518
  %v4587 = vsel %vm376, %v3890, %v4519
  %v4588 = vsel %vm376, %v3891, %v4520
  %v4589 = vsel %vm376, %v3953, %v4529
  %v4590 = vsel %vm376, %v3954, %v4530
  %v4591 = vsel %vm376, %v3955, %v4531
  %v4592 = vsel %vm376, %v3956, %v4532
  %v4593 = vsel %vm376, %v4019, %v4541
  %v4594 = vsel %vm376, %v4020, %v4542
  %v4595 = vsel %vm376, %v4021, %v4543
  %v4596 = vsel %vm376, %v4022, %v4544
  %v4597 = vsel %vm376, %v4085, %v4553
  %v4598 = vsel %vm376, %v4086, %v4554
  %v4599 = vsel %vm376, %v4087, %v4555
  %v4600 = vsel %vm376, %v4088, %v4556
  %v4601 = vsel %vm376, %v4151, %v4565
  %v4602 = vsel %vm376, %v4152, %v4566
  %v4603 = vsel %vm376, %v4153, %v4567
  %v4604 = vsel %vm376, %v4154, %v4568
  %v4605 = vsel %vm376, %v4217, 1.0
  %v4606 = vsel %vm376, %v4218, 1.0
  %v4607 = vsel %vm376, %v4219, 1.0
  %v4608 = vsel %vm376, %v4220, 1.0
  %v4609 = vpack.c.bf16 %v4321, %v4317
  %v4610 = vpack.c.bf16 %v4322, %v4318
  %v4611 = vpack.c.bf16 %v4323, %v4319
  %v4612 = vpack.c.bf16 %v4324, %v4320
  %v4613 = vpack.c.bf16 %v4329, %v4325
  %v4614 = vpack.c.bf16 %v4330, %v4326
  %v4615 = vpack.c.bf16 %v4331, %v4327
  %v4616 = vpack.c.bf16 %v4332, %v4328
  %v4617 = vpack.c.bf16 %v4337, %v4333
  %v4618 = vpack.c.bf16 %v4338, %v4334
  %v4619 = vpack.c.bf16 %v4339, %v4335
  %v4620 = vpack.c.bf16 %v4340, %v4336
  %v4621 = vpack.c.bf16 %v4345, %v4341
  %v4622 = vpack.c.bf16 %v4346, %v4342
  %v4623 = vpack.c.bf16 %v4347, %v4343
  %v4624 = vpack.c.bf16 %v4348, %v4344
  %v4625 = vpack.c.bf16 %v4449, %v4445
  %v4626 = vpack.c.bf16 %v4450, %v4446
  %v4627 = vpack.c.bf16 %v4451, %v4447
  %v4628 = vpack.c.bf16 %v4452, %v4448
  %v4629 = vpack.c.bf16 %v4457, %v4453
  %v4630 = vpack.c.bf16 %v4458, %v4454
  %v4631 = vpack.c.bf16 %v4459, %v4455
  %v4632 = vpack.c.bf16 %v4460, %v4456
  %v4633 = vpack.c.bf16 %v4465, %v4461
  %v4634 = vpack.c.bf16 %v4466, %v4462
  %v4635 = vpack.c.bf16 %v4467, %v4463
  %v4636 = vpack.c.bf16 %v4468, %v4464
  %v4637 = vpack.c.bf16 %v4473, %v4469
  %v4638 = vpack.c.bf16 %v4474, %v4470
  %v4639 = vpack.c.bf16 %v4475, %v4471
  %v4640 = vpack.c.bf16 %v4476, %v4472
  %v4641 = vpack.c.bf16 %v4577, %v4573
  %v4642 = vpack.c.bf16 %v4578, %v4574
  %v4643 = vpack.c.bf16 %v4579, %v4575
  %v4644 = vpack.c.bf16 %v4580, %v4576
  %v4645 = vpack.c.bf16 %v4585, %v4581
  %v4646 = vpack.c.bf16 %v4586, %v4582
  %v4647 = vpack.c.bf16 %v4587, %v4583
  %v4648 = vpack.c.bf16 %v4588, %v4584
  %v4649 = vpack.c.bf16 %v4593, %v4589
  %v4650 = vpack.c.bf16 %v4594, %v4590
  %v4651 = vpack.c.bf16 %v4595, %v4591
  %v4652 = vpack.c.bf16 %v4596, %v4592
  %v4653 = vpack.c.bf16 %v4601, %v4597
  %v4654 = vpack.c.bf16 %v4602, %v4598
  %v4655 = vpack.c.bf16 %v4603, %v4599
  %v4656 = vpack.c.bf16 %v4604, %v4600
  %v4657 = vpack.c.bf16 %v4605, %v4605
  %v4658 = vpack.c.bf16 %v4606, %v4606
  %v4659 = vpack.c.bf16 %v4607, %v4607
  %v4660 = vpack.c.bf16 %v4608, %v4608
  %v4661 = vld [vmem:[%s8] sm:$0x3]
  %v4664 = vunpack.c.l.s4 1966171168
  %v4665 = vunpack.c.0.s8 %v4664
  %v4666 = vlaneseq
  %v4667 = vshrl.u32 %v4666, 7
  %v4668 = vsub.s32 %v4665, %v4667
  %v4669 = vrot.slane %v4661, %v4668
  %v4670 = vcombine.high %v4669, %v4669
  %v4672 = vunpack.c.l.s4 1966171168
  %v4673 = vunpack.c.0.s8 %v4672
  %v4674 = vlaneseq
  %v4675 = vshrl.u32 %v4674, 7
  %v4676 = vsub.s32 %v4673, %v4675
  %v4677 = vrot.slane %v4669, %v4676
  %v4679 = vunpack.c.l.s4 1966171168
  %v4680 = vunpack.c.0.s8 %v4679
  %v4681 = vlaneseq
  %v4682 = vshrl.u32 %v4681, 7
  %v4683 = vsub.s32 %v4680, %v4682
  %v4684 = vrot.slane %v4670, %v4683
  %vm4686 = vcmask 564224
  %v4688 = vsel %vm4686, %v4684, 0
  %v4691 = vand.u32 %v4657, %v1554
  %v4694 = vand.u32 %v4658, %v1554
  %v4697 = vand.u32 %v4659, %v1554
  %v4700 = vand.u32 %v4660, %v1554
  %4702 = vmatprep.subr.bf16.mxu0 %v4610
  %4703 = vmatpush1.bf16.msra.mxu0 %v4609
  %4704 = vmatprep.subr.bf16.mxu0 %v4614
  %4705 = vmatpush1.bf16.msra.mxu0 %v4613
  %4706 = vmatprep.subr.bf16.mxu0 %v4618
  %4707 = vmatpush1.bf16.msra.mxu0 %v4617
  %4708 = vmatprep.subr.bf16.mxu0 %v4622
  %4709 = vmatpush1.bf16.msra.mxu0 %v4621
  %4710 = vmatprep.subr.bf16.mxu0 %v4626
  %4711 = vmatpush1.bf16.msra.mxu0 %v4625
  %4712 = vmatprep.subr.bf16.mxu0 %v4630
  %4713 = vmatpush1.bf16.msra.mxu0 %v4629
  %4714 = vmatprep.subr.bf16.mxu0 %v4634
  %4715 = vmatpush1.bf16.msra.mxu0 %v4633
  %4716 = vmatprep.subr.bf16.mxu0 %v4638
  %4717 = vmatpush1.bf16.msra.mxu0 %v4637
  %4718 = vmatprep.subr.bf16.mxu0 %v4642
  %4719 = vmatpush1.bf16.msra.mxu0 %v4641
  %4720 = vmatprep.subr.bf16.mxu0 %v4646
  %4721 = vmatpush1.bf16.msra.mxu0 %v4645
  %4722 = vmatprep.subr.bf16.mxu0 %v4650
  %4723 = vmatpush1.bf16.msra.mxu0 %v4649
  %4724 = vmatprep.subr.bf16.mxu0 %v4654
  %4725 = vmatpush1.bf16.msra.mxu0 %v4653
  %4726 = vmatprep.subr.bf16.mxu0 %v4694
  %4727 = vmatpush1.bf16.msra.mxu0 %v4691
  %4728 = vmatprep.subr.bf16.mxu0 0
  %4729 = vmatpush1.bf16.msra.mxu0 0
  %4730 = vmatprep.subr.bf16.mxu0 0
  %4731 = vmatpush1.bf16.msra.mxu0 0
  %4732 = vmatprep.subr.bf16.mxu0 0
  %4733 = vmatpush1.bf16.msra.mxu0 0
  %4734 = vmatprep.mubr.bf16.mxu0 %v4688
  %4735 = vmatmul.mubr.bf16.gmra.mrb[0].mxu0 %v4677
  %v4736 = vpop.f32.mrb[0].mxu0
  %v4737 = vadd.f32 0.0, %v4736
  %v4738 = vpop.f32.mrb[0].mxu0
  %v4739 = vadd.f32 0.0, %v4738
  %v4740 = vpop.f32.mrb[0].mxu0
  %v4741 = vpop.f32.mrb[0].mxu0
  %4742 = vdwg.mxu0
  %4743 = vmatprep.subr.bf16.mxu0 %v4612
  %4744 = vmatpush1.bf16.msra.mxu0 %v4611
  %4745 = vmatprep.subr.bf16.mxu0 %v4616
  %4746 = vmatpush1.bf16.msra.mxu0 %v4615
  %4747 = vmatprep.subr.bf16.mxu0 %v4620
  %4748 = vmatpush1.bf16.msra.mxu0 %v4619
  %4749 = vmatprep.subr.bf16.mxu0 %v4624
  %4750 = vmatpush1.bf16.msra.mxu0 %v4623
  %4751 = vmatprep.subr.bf16.mxu0 %v4628
  %4752 = vmatpush1.bf16.msra.mxu0 %v4627
  %4753 = vmatprep.subr.bf16.mxu0 %v4632
  %4754 = vmatpush1.bf16.msra.mxu0 %v4631
  %4755 = vmatprep.subr.bf16.mxu0 %v4636
  %4756 = vmatpush1.bf16.msra.mxu0 %v4635
  %4757 = vmatprep.subr.bf16.mxu0 %v4640
  %4758 = vmatpush1.bf16.msra.mxu0 %v4639
  %4759 = vmatprep.subr.bf16.mxu0 %v4644
  %4760 = vmatpush1.bf16.msra.mxu0 %v4643
  %4761 = vmatprep.subr.bf16.mxu0 %v4648
  %4762 = vmatpush1.bf16.msra.mxu0 %v4647
  %4763 = vmatprep.subr.bf16.mxu0 %v4652
  %4764 = vmatpush1.bf16.msra.mxu0 %v4651
  %4765 = vmatprep.subr.bf16.mxu0 %v4656
  %4766 = vmatpush1.bf16.msra.mxu0 %v4655
  %4767 = vmatprep.subr.bf16.mxu0 %v4700
  %4768 = vmatpush1.bf16.msra.mxu0 %v4697
  %4769 = vmatprep.subr.bf16.mxu0 0
  %4770 = vmatpush1.bf16.msra.mxu0 0
  %4771 = vmatprep.subr.bf16.mxu0 0
  %4772 = vmatpush1.bf16.msra.mxu0 0
  %4773 = vmatprep.subr.bf16.mxu0 0
  %4774 = vmatpush1.bf16.msra.mxu0 0
  %4775 = vmatprep.mubr.bf16.mxu0 %v4688
  %4776 = vmatmul.mubr.bf16.gmra.mrb[0].mxu0 %v4677
  %v4777 = vpop.f32.mrb[0].mxu0
  %v4778 = vadd.f32 0.0, %v4777
  %v4779 = vpop.f32.mrb[0].mxu0
  %v4780 = vadd.f32 0.0, %v4779
  %v4781 = vpop.f32.mrb[0].mxu0
  %v4782 = vpop.f32.mrb[0].mxu0
  %4783 = vdwg.mxu0
  %v4788 = vcombine.low %v4737, %v4739
  %v4789 = vcombine.low %v4778, %v4780
  %v4791 = vunpack.c.l.s4 1966171168
  %v4792 = vunpack.c.0.s8 %v4791
  %v4793 = vlaneseq
  %v4794 = vshrl.u32 %v4793, 7
  %v4795 = vsub.s32 %v4792, %v4794
  %v4796 = vrot.slane %v4788, %v4795
  %v4798 = vunpack.c.l.s4 1966171168
  %v4799 = vunpack.c.0.s8 %v4798
  %v4800 = vlaneseq
  %v4801 = vshrl.u32 %v4800, 7
  %v4802 = vsub.s32 %v4799, %v4801
  %v4803 = vrot.slane %v4789, %v4802
  %v4804 = vcombine.low %v4796, %v4803
  %v4806 = vunpack.c.l.s4 1966171168
  %v4807 = vunpack.c.0.s8 %v4806
  %v4808 = vlaneseq
  %v4809 = vshrl.u32 %v4808, 7
  %v4810 = vsub.s32 %v4807, %v4809
  %v4811 = vrot.slane %v4804, %v4810
  %v4813 = vlaneseq
  %vm4814 = vcmp.ge.s32.totalorder %v4813, 0
  %vm4815 = vcmp.lt.s32.totalorder %v4813, 512
  %vm4816 = vmand %vm4814, %vm4815
  %4817 = vst.msk [vmem:[%s14] sm:$0xf] %vm4816, %v4811
  // Predicated region
  $region54: #{fgrm_forward.1} parent=0 // pred_check
    _
  $region55: #{fgrm_forward.1} parent=0 // pred_check_branch
    %4819 = sbr.rel (0) target = $region57
  $region56: #{fgrm_forward.1} parent=0 // pred_region
    _
  $region57: #{fgrm_forward.1} parent=0 // pred_fallthru
    _
  // Predicated region
  $region58: #{fgrm_forward.1} parent=0 // pred_check
    _
  $region59: #{fgrm_forward.1} parent=0 // pred_check_branch
    %4821 = sbr.rel (0) target = $region61
  $region60: #{fgrm_forward.1} parent=0 // pred_region
    _
  $region61: #{fgrm_forward.1} parent=0 // pred_fallthru
    _
  // Predicated region
  $region62: #{fgrm_forward.1} parent=0 // pred_check
    _
  $region63: #{fgrm_forward.1} parent=0 // pred_check_branch
    %4823 = sbr.rel (0) target = $region65
  $region64: #{fgrm_forward.1} parent=0 // pred_region
    _
  $region65: #{fgrm_forward.1} parent=0 // pred_fallthru
    _
  // Predicated region
  $region66: #{fgrm_forward.1} parent=0 // pred_check
    _
  $region67: #{fgrm_forward.1} parent=0 // pred_check_branch
    %4825 = sbr.rel (0) target = $region69
  $region68: #{fgrm_forward.1} parent=0 // pred_region
    _
  $region69: #{fgrm_forward.1} parent=0 // pred_fallthru
    _

</llo_original>
